<compile_context>
chip_gen: v7x
topology: tpu7x:2x2x1
jax: 0.10.0
libtpu: 0.0.40
codegen_flags: <defaults>
</compile_context>

<pallas_src>
import math
import numpy as np
import jax
import jax.numpy as jnp
from jax import lax
from jax.experimental import pallas as pl
from jax.experimental.pallas import tpu as pltpu  # noqa: F401  (TPU backend)

# ---------------- configuration (small, consistent with the module) ----------
B = 2            # batch
S = 16           # input_dim  (sequence length / d_model of PositionalEncoding)
D = 32           # dim_feedforward (transformer d_model)
NHEAD = 2
HD = D // NHEAD  # head dim
L = 2            # encoder layers
DFF = 2 * D      # transformer FFN hidden dim
EPS = 1e-5       # LayerNorm eps (PyTorch default)


# ---------------- positional-encoding table (PositionalEncoding(d_model=S)) --
def make_pe_add():
    # pe has shape (max_len, S); the forward adds pe[d, s] to x[b, s, d]
    # (because PE is applied on x.permute(0, 2, 1)).  We only need rows 0..D-1.
    position = np.arange(D, dtype=np.float32)[:, None]
    div_term = np.exp(np.arange(0, S, 2, dtype=np.float32) *
                      (-math.log(10000.0) / S))
    pe = np.zeros((D, S), dtype=np.float32)
    pe[:, 0::2] = np.sin(position * div_term)
    pe[:, 1::2] = np.cos(position * div_term)      # S is even
    return jnp.asarray(pe.T)                        # (S, D): pe_add[s, d] = pe[d, s]


# ---------------- deterministic parameter init --------------------------------
def init_params(key):
    ks = jax.random.split(key, 12)

    def rnd(k, shape, scale=0.05):
        return (scale * jax.random.normal(k, shape)).astype(jnp.float32)

    p = dict(
        emb_w=rnd(ks[0], (1, D)),            # Linear(1, D).weight.T
        emb_b=rnd(ks[1], (1, D)),
        pe=make_pe_add(),                    # (S, D)
        norm_g=jnp.ones((1, D), jnp.float32),
        norm_b=jnp.zeros((1, D), jnp.float32),
        ipw_t=rnd(ks[2], (L, D, 3 * D)),     # in_proj_weight.T per layer
        ipb=rnd(ks[3], (L, 1, 3 * D)),
        opw_t=rnd(ks[4], (L, D, D)),         # out_proj.weight.T per layer
        opb=rnd(ks[5], (L, 1, D)),
        l1g=jnp.ones((L, 1, D), jnp.float32),
        l1b=jnp.zeros((L, 1, D), jnp.float32),
        w1_t=rnd(ks[6], (L, D, DFF)),        # linear1.weight.T
        b1=rnd(ks[7], (L, 1, DFF)),
        w2_t=rnd(ks[8], (L, DFF, D)),        # linear2.weight.T
        b2=rnd(ks[9], (L, 1, D)),
        l2g=jnp.ones((L, 1, D), jnp.float32),
        l2b=jnp.zeros((L, 1, D), jnp.float32),
        wout=rnd(ks[10], (D, S * D)),        # output_linear.weight
        bout=rnd(ks[11], (1, D)),
    )
    return p


# ---------------- shared LayerNorm ---------------------------------------------
def _ln(x, g, b):
    mu = jnp.mean(x, axis=-1, keepdims=True)
    xc = x - mu
    var = jnp.mean(xc * xc, axis=-1, keepdims=True)
    return xc * lax.rsqrt(var + EPS) * g + b


# ---------------- kernel ------------------------------------------------------
def transformer_ps_kernel(x_ref, emb_w_ref, embpe_ref, ng_ref, nb_ref,
                          ipw_ref, ipb_ref, opw_ref, opb_ref,
                          l1g_ref, l1b_ref, w1_ref, b1_ref, w2_ref, b2_ref,
                          l2g_ref, l2b_ref, mask_ref, bsel_ref, woutT_ref,
                          bout_ref, o_ref):
    # input_embed + positional encoding (embedding bias pre-folded into embpe).
    # x is (B*S, 1); result tile is (B*S, D) with batch folded onto sublanes.
    h = x_ref[...] * emb_w_ref[...] + embpe_ref[...]
    # self.norm (LayerNorm over D)
    h = _ln(h, ng_ref[...], nb_ref[...])

    for l in range(L):
        # ---- self attention (post-norm encoder layer) ----
        # single qkv projection for all batches: (B*S, 3D)
        qkv = jnp.dot(h, ipw_ref[l],
                      preferred_element_type=jnp.float32) + ipb_ref[l]
        batch_outs = []
        for b in range(B):
            r0 = b * S
            head_outs = []
            for hh in range(NHEAD):
                qh = qkv[r0:r0 + S, hh * HD:(hh + 1) * HD]
                kh = qkv[r0:r0 + S, D + hh * HD:D + (hh + 1) * HD]
                vh = qkv[r0:r0 + S, 2 * D + hh * HD:2 * D + (hh + 1) * HD]
                # 1/sqrt(HD) already folded into the Q projection weights.
                sc = lax.dot_general(qh, kh, (((1,), (1,)), ((), ())),
                                     preferred_element_type=jnp.float32)
                sc = sc - jnp.max(sc, axis=-1, keepdims=True)
                e = jnp.exp(sc)
                inv = pl.reciprocal(jnp.sum(e, axis=-1, keepdims=True),
                                    approx=True)
                pr = e * inv
                head_outs.append(jnp.dot(pr, vh,
                                         preferred_element_type=jnp.float32))
            # fuse heads along lanes -> (S, D)
            batch_outs.append(jnp.concatenate(head_outs, axis=-1))
        ao = jnp.concatenate(batch_outs, axis=0)                     # (B*S, D)
        # single out_proj matmul for all batches / heads
        ao = jnp.dot(ao, opw_ref[l],
                     preferred_element_type=jnp.float32) + opb_ref[l]
        h = _ln(h + ao, l1g_ref[l], l1b_ref[l])                      # norm1

        # ---- feed-forward block (relu) ----
        ff = jnp.dot(h, w1_ref[l], preferred_element_type=jnp.float32) + b1_ref[l]
        ff = jnp.maximum(ff, 0.0)
        ff = jnp.dot(ff, w2_ref[l], preferred_element_type=jnp.float32) + b2_ref[l]
        h = _ln(h + ff, l2g_ref[l], l2b_ref[l])                      # norm2

    # ---- output_linear on the flattened (S*D) vector ----
    # Single K = S*D contraction: lane-tile h (B*S, D) -> (B*S, S*D), mask it
    # to a block-diagonal layout (row (b,s) keeps its values only in lane block
    # s), then one matmul against wout.T, then sum rows within each batch with
    # a tiny 0/1 selection matmul.
    h_rep = jnp.concatenate([h] * S, axis=1)                         # (B*S, S*D)
    part = jnp.dot(h_rep * mask_ref[...], woutT_ref[...],
                   preferred_element_type=jnp.float32)               # (B*S, D)
    out = jnp.dot(bsel_ref[...], part,
                  preferred_element_type=jnp.float32) + bout_ref[...]  # (B, D)
    o_ref[...] = out


# ---------------- wrapper -----------------------------------------------------
@jax.jit
def transformer_ps(x, p):
    scale = 1.0 / math.sqrt(HD)
    # fold the attention scale into the Q third of the in-proj weights/bias
    ipw = p['ipw_t'].at[:, :, :D].multiply(scale)
    ipb = p['ipb'].at[:, :, :D].multiply(scale)
    # fold the embedding bias into the positional-encoding add, tiled over batch
    embpe = jnp.concatenate([p['emb_b'] + p['pe']] * B, axis=0)      # (B*S, D)
    x2 = x.reshape(B * S, 1)
    woutT = p['wout'].T                                              # (S*D, D)
    # mask[r, c] = 1 where lane block (c // D) equals the sequence index (r % S)
    mask = (jnp.arange(B * S, dtype=jnp.int32)[:, None] % S
            == jnp.arange(S * D, dtype=jnp.int32)[None, :] // D
            ).astype(jnp.float32)                                    # (B*S, S*D)
    # bsel[b, r] = 1 where row r belongs to batch b (sums rows within a batch)
    bsel = (jnp.arange(B * S, dtype=jnp.int32)[None, :] // S
            == jnp.arange(B, dtype=jnp.int32)[:, None]
            ).astype(jnp.float32)                                    # (B, B*S)

    args = [x2, p['emb_w'], embpe, p['norm_g'], p['norm_b'],
            ipw, ipb, p['opw_t'], p['opb'],
            p['l1g'], p['l1b'], p['w1_t'], p['b1'], p['w2_t'], p['b2'],
            p['l2g'], p['l2b'], mask, bsel, woutT, p['bout']]

    # Single invocation (no grid): every array is resident in VMEM for the
    # whole kernel; total footprint is well under the scoped VMEM limit on
    # v5e / v6e / v7x.
    return pl.pallas_call(
        transformer_ps_kernel,
        out_shape=jax.ShapeDtypeStruct((B, D), jnp.float32),
    )(*args)


# ---------------- pure-JAX reference (for correctness check) ------------------
def reference(x, p):
    h = x[:, :, None] * p['emb_w'][None] + p['emb_b'][None]      # (B, S, D)
    h = h + p['pe'][None]
    h = _ln(h, p['norm_g'], p['norm_b'])
    for l in range(L):
        qkv = h @ p['ipw_t'][l] + p['ipb'][l]
        q, k, v = qkv[..., :D], qkv[..., D:2 * D], qkv[..., 2 * D:]

        def split(t):
            return t.reshape(B, S, NHEAD, HD).transpose(0, 2, 1, 3)
        qh, kh, vh = split(q), split(k), split(v)
        sc = jnp.einsum('bhqd,bhkd->bhqk', qh, kh) / math.sqrt(HD)
        pr = jax.nn.softmax(sc, axis=-1)
        ao = jnp.einsum('bhqk,bhkd->bhqd', pr, vh)
        ao = ao.transpose(0, 2, 1, 3).reshape(B, S, D)
        ao = ao @ p['opw_t'][l] + p['opb'][l]
        h = _ln(h + ao, p['l1g'][l], p['l1b'][l])
        ff = jnp.maximum(h @ p['w1_t'][l] + p['b1'][l], 0.0)
        ff = ff @ p['w2_t'][l] + p['b2'][l]
        h = _ln(h + ff, p['l2g'][l], p['l2b'][l])
    flat = h.reshape(B, S * D)
    return flat @ p['wout'].T + p['bout']


# ---------------- main --------------------------------------------------------
if __name__ == "__main__":
    root = jax.random.PRNGKey(0)
    kx, kp = jax.random.split(root)
    params = init_params(kp)
    x = jax.random.normal(kx, (B, S), dtype=jnp.float32)

    out = jax.block_until_ready(transformer_ps(x, params))
    ref = reference(x, params)

    assert out.shape == (B, D)
    # tolerance covers pl.reciprocal(approx=True) in the softmax
    np.testing.assert_allclose(np.asarray(out), np.asarray(ref),
                               rtol=3e-3, atol=3e-3)
    print("KERNEL_OK")
</pallas_src>

<mosaic_0001>
module attributes {stable_mosaic.version = 11 : i64} {
  func.func @transformer_ps_kernel(%arg0: memref<32x1xf32, #tpu.memory_space<vmem>>, %arg1: memref<1x32xf32, #tpu.memory_space<vmem>>, %arg2: memref<32x32xf32, #tpu.memory_space<vmem>>, %arg3: memref<1x32xf32, #tpu.memory_space<vmem>>, %arg4: memref<1x32xf32, #tpu.memory_space<vmem>>, %arg5: memref<2x32x96xf32, #tpu.memory_space<vmem>>, %arg6: memref<2x1x96xf32, #tpu.memory_space<vmem>>, %arg7: memref<2x32x32xf32, #tpu.memory_space<vmem>>, %arg8: memref<2x1x32xf32, #tpu.memory_space<vmem>>, %arg9: memref<2x1x32xf32, #tpu.memory_space<vmem>>, %arg10: memref<2x1x32xf32, #tpu.memory_space<vmem>>, %arg11: memref<2x32x64xf32, #tpu.memory_space<vmem>>, %arg12: memref<2x1x64xf32, #tpu.memory_space<vmem>>, %arg13: memref<2x64x32xf32, #tpu.memory_space<vmem>>, %arg14: memref<2x1x32xf32, #tpu.memory_space<vmem>>, %arg15: memref<2x1x32xf32, #tpu.memory_space<vmem>>, %arg16: memref<2x1x32xf32, #tpu.memory_space<vmem>>, %arg17: memref<32x512xf32, #tpu.memory_space<vmem>>, %arg18: memref<2x32xf32, #tpu.memory_space<vmem>>, %arg19: memref<512x32xf32, #tpu.memory_space<vmem>>, %arg20: memref<1x32xf32, #tpu.memory_space<vmem>>, %arg21: memref<2x32xf32, #tpu.memory_space<vmem>>) attributes {dimension_semantics = [], scalar_prefetch = 0 : i64, scratch_operands = 0 : i64, tpu.core_type = #tpu.core_type<tc>} {
    %c0 = arith.constant 0 : index
    %c0_0 = arith.constant 0 : index
    %0 = vector.load %arg0[%c0, %c0_0] : memref<32x1xf32, #tpu.memory_space<vmem>>, vector<32x1xf32>
    %c0_1 = arith.constant 0 : index
    %c0_2 = arith.constant 0 : index
    %1 = vector.load %arg1[%c0_1, %c0_2] : memref<1x32xf32, #tpu.memory_space<vmem>>, vector<1x32xf32>
    %2 = vector.broadcast %0 : vector<32x1xf32> to vector<32x32xf32>
    %3 = vector.broadcast %1 : vector<1x32xf32> to vector<32x32xf32>
    %4 = arith.mulf %2, %3 : vector<32x32xf32>
    %c0_3 = arith.constant 0 : index
    %c0_4 = arith.constant 0 : index
    %5 = vector.load %arg2[%c0_3, %c0_4] : memref<32x32xf32, #tpu.memory_space<vmem>>, vector<32x32xf32>
    %6 = arith.addf %4, %5 : vector<32x32xf32>
    %c0_5 = arith.constant 0 : index
    %c0_6 = arith.constant 0 : index
    %7 = vector.load %arg3[%c0_5, %c0_6] : memref<1x32xf32, #tpu.memory_space<vmem>>, vector<1x32xf32>
    %c0_7 = arith.constant 0 : index
    %c0_8 = arith.constant 0 : index
    %8 = vector.load %arg4[%c0_7, %c0_8] : memref<1x32xf32, #tpu.memory_space<vmem>>, vector<1x32xf32>
    %cst = arith.constant dense<0.000000e+00> : vector<32xf32>
    %9 = vector.multi_reduction <add>, %6, %cst [1] : vector<32x32xf32> to vector<32xf32>
    %10 = vector.shape_cast %9 : vector<32xf32> to vector<32x1xf32>
    %cst_9 = arith.constant 3.200000e+01 : f32
    %11 = vector.broadcast %cst_9 : f32 to vector<32x1xf32>
    %12 = arith.divf %10, %11 : vector<32x1xf32>
    %13 = vector.broadcast %12 : vector<32x1xf32> to vector<32x32xf32>
    %14 = arith.subf %6, %13 : vector<32x32xf32>
    %15 = arith.mulf %14, %14 : vector<32x32xf32>
    %cst_10 = arith.constant dense<0.000000e+00> : vector<32xf32>
    %16 = vector.multi_reduction <add>, %15, %cst_10 [1] : vector<32x32xf32> to vector<32xf32>
    %17 = vector.shape_cast %16 : vector<32xf32> to vector<32x1xf32>
    %cst_11 = arith.constant 3.200000e+01 : f32
    %18 = vector.broadcast %cst_11 : f32 to vector<32x1xf32>
    %19 = arith.divf %17, %18 : vector<32x1xf32>
    %cst_12 = arith.constant 9.99999974E-6 : f32
    %20 = vector.broadcast %cst_12 : f32 to vector<32x1xf32>
    %21 = arith.addf %19, %20 : vector<32x1xf32>
    %22 = math.rsqrt %21 : vector<32x1xf32>
    %23 = vector.broadcast %22 : vector<32x1xf32> to vector<32x32xf32>
    %24 = arith.mulf %14, %23 : vector<32x32xf32>
    %25 = vector.broadcast %7 : vector<1x32xf32> to vector<32x32xf32>
    %26 = arith.mulf %24, %25 : vector<32x32xf32>
    %27 = vector.broadcast %8 : vector<1x32xf32> to vector<32x32xf32>
    %28 = arith.addf %26, %27 : vector<32x32xf32>
    %c0_13 = arith.constant 0 : index
    %c0_14 = arith.constant 0 : index
    %c0_15 = arith.constant 0 : index
    %29 = vector.load %arg5[%c0_13, %c0_14, %c0_15] : memref<2x32x96xf32, #tpu.memory_space<vmem>>, vector<1x32x96xf32>
    %30 = vector.shape_cast %29 : vector<1x32x96xf32> to vector<32x96xf32>
    %cst_16 = arith.constant dense<0.000000e+00> : vector<32x96xf32>
    %31 = tpu.matmul %28, %30, %cst_16 {dimension_numbers = #tpu.dot_dimension_numbers<[1], [0], [0], [1], [0, 0, 1, 1], [], []>} : vector<32x32xf32>, vector<32x96xf32>, vector<32x96xf32> -> vector<32x96xf32>
    %c0_17 = arith.constant 0 : index
    %c0_18 = arith.constant 0 : index
    %c0_19 = arith.constant 0 : index
    %32 = vector.load %arg6[%c0_17, %c0_18, %c0_19] : memref<2x1x96xf32, #tpu.memory_space<vmem>>, vector<1x1x96xf32>
    %33 = vector.shape_cast %32 : vector<1x1x96xf32> to vector<1x96xf32>
    %34 = vector.broadcast %33 : vector<1x96xf32> to vector<32x96xf32>
    %35 = arith.addf %31, %34 : vector<32x96xf32>
    %36 = vector.extract_strided_slice %35 {offsets = [0, 0], sizes = [16, 16], strides = [1, 1]} : vector<32x96xf32> to vector<16x16xf32>
    %37 = vector.extract_strided_slice %35 {offsets = [0, 32], sizes = [16, 16], strides = [1, 1]} : vector<32x96xf32> to vector<16x16xf32>
    %38 = vector.extract_strided_slice %35 {offsets = [0, 64], sizes = [16, 16], strides = [1, 1]} : vector<32x96xf32> to vector<16x16xf32>
    %cst_20 = arith.constant dense<0.000000e+00> : vector<16x16xf32>
    %39 = tpu.matmul %36, %37, %cst_20 {dimension_numbers = #tpu.dot_dimension_numbers<[1], [1], [0], [0], [0, 0, 1, 0], [], []>} : vector<16x16xf32>, vector<16x16xf32>, vector<16x16xf32> -> vector<16x16xf32>
    %cst_21 = arith.constant dense<0xFF800000> : vector<16xf32>
    %40 = vector.multi_reduction <maximumf>, %39, %cst_21 [1] : vector<16x16xf32> to vector<16xf32>
    %41 = vector.shape_cast %40 : vector<16xf32> to vector<16x1xf32>
    %42 = vector.broadcast %41 : vector<16x1xf32> to vector<16x16xf32>
    %43 = arith.subf %39, %42 : vector<16x16xf32>
    %44 = math.exp %43 : vector<16x16xf32>
    %cst_22 = arith.constant dense<0.000000e+00> : vector<16xf32>
    %45 = vector.multi_reduction <add>, %44, %cst_22 [1] : vector<16x16xf32> to vector<16xf32>
    %46 = vector.shape_cast %45 : vector<16xf32> to vector<16x1xf32>
    %47 = tpu.reciprocal %46 {approx = true} : vector<16x1xf32> -> vector<16x1xf32>
    %48 = vector.broadcast %47 : vector<16x1xf32> to vector<16x16xf32>
    %49 = arith.mulf %44, %48 : vector<16x16xf32>
    %cst_23 = arith.constant dense<0.000000e+00> : vector<16x16xf32>
    %50 = tpu.matmul %49, %38, %cst_23 {dimension_numbers = #tpu.dot_dimension_numbers<[1], [0], [0], [1], [0, 0, 1, 1], [], []>} : vector<16x16xf32>, vector<16x16xf32>, vector<16x16xf32> -> vector<16x16xf32>
    %51 = vector.extract_strided_slice %35 {offsets = [0, 16], sizes = [16, 16], strides = [1, 1]} : vector<32x96xf32> to vector<16x16xf32>
    %52 = vector.extract_strided_slice %35 {offsets = [0, 48], sizes = [16, 16], strides = [1, 1]} : vector<32x96xf32> to vector<16x16xf32>
    %53 = vector.extract_strided_slice %35 {offsets = [0, 80], sizes = [16, 16], strides = [1, 1]} : vector<32x96xf32> to vector<16x16xf32>
    %cst_24 = arith.constant dense<0.000000e+00> : vector<16x16xf32>
    %54 = tpu.matmul %51, %52, %cst_24 {dimension_numbers = #tpu.dot_dimension_numbers<[1], [1], [0], [0], [0, 0, 1, 0], [], []>} : vector<16x16xf32>, vector<16x16xf32>, vector<16x16xf32> -> vector<16x16xf32>
    %cst_25 = arith.constant dense<0xFF800000> : vector<16xf32>
    %55 = vector.multi_reduction <maximumf>, %54, %cst_25 [1] : vector<16x16xf32> to vector<16xf32>
    %56 = vector.shape_cast %55 : vector<16xf32> to vector<16x1xf32>
    %57 = vector.broadcast %56 : vector<16x1xf32> to vector<16x16xf32>
    %58 = arith.subf %54, %57 : vector<16x16xf32>
    %59 = math.exp %58 : vector<16x16xf32>
    %cst_26 = arith.constant dense<0.000000e+00> : vector<16xf32>
    %60 = vector.multi_reduction <add>, %59, %cst_26 [1] : vector<16x16xf32> to vector<16xf32>
    %61 = vector.shape_cast %60 : vector<16xf32> to vector<16x1xf32>
    %62 = tpu.reciprocal %61 {approx = true} : vector<16x1xf32> -> vector<16x1xf32>
    %63 = vector.broadcast %62 : vector<16x1xf32> to vector<16x16xf32>
    %64 = arith.mulf %59, %63 : vector<16x16xf32>
    %cst_27 = arith.constant dense<0.000000e+00> : vector<16x16xf32>
    %65 = tpu.matmul %64, %53, %cst_27 {dimension_numbers = #tpu.dot_dimension_numbers<[1], [0], [0], [1], [0, 0, 1, 1], [], []>} : vector<16x16xf32>, vector<16x16xf32>, vector<16x16xf32> -> vector<16x16xf32>
    %66 = tpu.concatenate %50, %65 in 1 : vector<16x16xf32>, vector<16x16xf32> -> vector<16x32xf32>
    %67 = vector.extract_strided_slice %35 {offsets = [16, 0], sizes = [16, 16], strides = [1, 1]} : vector<32x96xf32> to vector<16x16xf32>
    %68 = vector.extract_strided_slice %35 {offsets = [16, 32], sizes = [16, 16], strides = [1, 1]} : vector<32x96xf32> to vector<16x16xf32>
    %69 = vector.extract_strided_slice %35 {offsets = [16, 64], sizes = [16, 16], strides = [1, 1]} : vector<32x96xf32> to vector<16x16xf32>
    %cst_28 = arith.constant dense<0.000000e+00> : vector<16x16xf32>
    %70 = tpu.matmul %67, %68, %cst_28 {dimension_numbers = #tpu.dot_dimension_numbers<[1], [1], [0], [0], [0, 0, 1, 0], [], []>} : vector<16x16xf32>, vector<16x16xf32>, vector<16x16xf32> -> vector<16x16xf32>
    %cst_29 = arith.constant dense<0xFF800000> : vector<16xf32>
    %71 = vector.multi_reduction <maximumf>, %70, %cst_29 [1] : vector<16x16xf32> to vector<16xf32>
    %72 = vector.shape_cast %71 : vector<16xf32> to vector<16x1xf32>
    %73 = vector.broadcast %72 : vector<16x1xf32> to vector<16x16xf32>
    %74 = arith.subf %70, %73 : vector<16x16xf32>
    %75 = math.exp %74 : vector<16x16xf32>
    %cst_30 = arith.constant dense<0.000000e+00> : vector<16xf32>
    %76 = vector.multi_reduction <add>, %75, %cst_30 [1] : vector<16x16xf32> to vector<16xf32>
    %77 = vector.shape_cast %76 : vector<16xf32> to vector<16x1xf32>
    %78 = tpu.reciprocal %77 {approx = true} : vector<16x1xf32> -> vector<16x1xf32>
    %79 = vector.broadcast %78 : vector<16x1xf32> to vector<16x16xf32>
    %80 = arith.mulf %75, %79 : vector<16x16xf32>
    %cst_31 = arith.constant dense<0.000000e+00> : vector<16x16xf32>
    %81 = tpu.matmul %80, %69, %cst_31 {dimension_numbers = #tpu.dot_dimension_numbers<[1], [0], [0], [1], [0, 0, 1, 1], [], []>} : vector<16x16xf32>, vector<16x16xf32>, vector<16x16xf32> -> vector<16x16xf32>
    %82 = vector.extract_strided_slice %35 {offsets = [16, 16], sizes = [16, 16], strides = [1, 1]} : vector<32x96xf32> to vector<16x16xf32>
    %83 = vector.extract_strided_slice %35 {offsets = [16, 48], sizes = [16, 16], strides = [1, 1]} : vector<32x96xf32> to vector<16x16xf32>
    %84 = vector.extract_strided_slice %35 {offsets = [16, 80], sizes = [16, 16], strides = [1, 1]} : vector<32x96xf32> to vector<16x16xf32>
    %cst_32 = arith.constant dense<0.000000e+00> : vector<16x16xf32>
    %85 = tpu.matmul %82, %83, %cst_32 {dimension_numbers = #tpu.dot_dimension_numbers<[1], [1], [0], [0], [0, 0, 1, 0], [], []>} : vector<16x16xf32>, vector<16x16xf32>, vector<16x16xf32> -> vector<16x16xf32>
    %cst_33 = arith.constant dense<0xFF800000> : vector<16xf32>
    %86 = vector.multi_reduction <maximumf>, %85, %cst_33 [1] : vector<16x16xf32> to vector<16xf32>
    %87 = vector.shape_cast %86 : vector<16xf32> to vector<16x1xf32>
    %88 = vector.broadcast %87 : vector<16x1xf32> to vector<16x16xf32>
    %89 = arith.subf %85, %88 : vector<16x16xf32>
    %90 = math.exp %89 : vector<16x16xf32>
    %cst_34 = arith.constant dense<0.000000e+00> : vector<16xf32>
    %91 = vector.multi_reduction <add>, %90, %cst_34 [1] : vector<16x16xf32> to vector<16xf32>
    %92 = vector.shape_cast %91 : vector<16xf32> to vector<16x1xf32>
    %93 = tpu.reciprocal %92 {approx = true} : vector<16x1xf32> -> vector<16x1xf32>
    %94 = vector.broadcast %93 : vector<16x1xf32> to vector<16x16xf32>
    %95 = arith.mulf %90, %94 : vector<16x16xf32>
    %cst_35 = arith.constant dense<0.000000e+00> : vector<16x16xf32>
    %96 = tpu.matmul %95, %84, %cst_35 {dimension_numbers = #tpu.dot_dimension_numbers<[1], [0], [0], [1], [0, 0, 1, 1], [], []>} : vector<16x16xf32>, vector<16x16xf32>, vector<16x16xf32> -> vector<16x16xf32>
    %97 = tpu.concatenate %81, %96 in 1 : vector<16x16xf32>, vector<16x16xf32> -> vector<16x32xf32>
    %98 = tpu.concatenate %66, %97 in 0 : vector<16x32xf32>, vector<16x32xf32> -> vector<32x32xf32>
    %c0_36 = arith.constant 0 : index
    %c0_37 = arith.constant 0 : index
    %c0_38 = arith.constant 0 : index
    %99 = vector.load %arg7[%c0_36, %c0_37, %c0_38] : memref<2x32x32xf32, #tpu.memory_space<vmem>>, vector<1x32x32xf32>
    %100 = vector.shape_cast %99 : vector<1x32x32xf32> to vector<32x32xf32>
    %cst_39 = arith.constant dense<0.000000e+00> : vector<32x32xf32>
    %101 = tpu.matmul %98, %100, %cst_39 {dimension_numbers = #tpu.dot_dimension_numbers<[1], [0], [0], [1], [0, 0, 1, 1], [], []>} : vector<32x32xf32>, vector<32x32xf32>, vector<32x32xf32> -> vector<32x32xf32>
    %c0_40 = arith.constant 0 : index
    %c0_41 = arith.constant 0 : index
    %c0_42 = arith.constant 0 : index
    %102 = vector.load %arg8[%c0_40, %c0_41, %c0_42] : memref<2x1x32xf32, #tpu.memory_space<vmem>>, vector<1x1x32xf32>
    %103 = vector.shape_cast %102 : vector<1x1x32xf32> to vector<1x32xf32>
    %104 = vector.broadcast %103 : vector<1x32xf32> to vector<32x32xf32>
    %105 = arith.addf %101, %104 : vector<32x32xf32>
    %106 = arith.addf %28, %105 : vector<32x32xf32>
    %c0_43 = arith.constant 0 : index
    %c0_44 = arith.constant 0 : index
    %c0_45 = arith.constant 0 : index
    %107 = vector.load %arg9[%c0_43, %c0_44, %c0_45] : memref<2x1x32xf32, #tpu.memory_space<vmem>>, vector<1x1x32xf32>
    %108 = vector.shape_cast %107 : vector<1x1x32xf32> to vector<1x32xf32>
    %c0_46 = arith.constant 0 : index
    %c0_47 = arith.constant 0 : index
    %c0_48 = arith.constant 0 : index
    %109 = vector.load %arg10[%c0_46, %c0_47, %c0_48] : memref<2x1x32xf32, #tpu.memory_space<vmem>>, vector<1x1x32xf32>
    %110 = vector.shape_cast %109 : vector<1x1x32xf32> to vector<1x32xf32>
    %cst_49 = arith.constant dense<0.000000e+00> : vector<32xf32>
    %111 = vector.multi_reduction <add>, %106, %cst_49 [1] : vector<32x32xf32> to vector<32xf32>
    %112 = vector.shape_cast %111 : vector<32xf32> to vector<32x1xf32>
    %cst_50 = arith.constant 3.200000e+01 : f32
    %113 = vector.broadcast %cst_50 : f32 to vector<32x1xf32>
    %114 = arith.divf %112, %113 : vector<32x1xf32>
    %115 = vector.broadcast %114 : vector<32x1xf32> to vector<32x32xf32>
    %116 = arith.subf %106, %115 : vector<32x32xf32>
    %117 = arith.mulf %116, %116 : vector<32x32xf32>
    %cst_51 = arith.constant dense<0.000000e+00> : vector<32xf32>
    %118 = vector.multi_reduction <add>, %117, %cst_51 [1] : vector<32x32xf32> to vector<32xf32>
    %119 = vector.shape_cast %118 : vector<32xf32> to vector<32x1xf32>
    %cst_52 = arith.constant 3.200000e+01 : f32
    %120 = vector.broadcast %cst_52 : f32 to vector<32x1xf32>
    %121 = arith.divf %119, %120 : vector<32x1xf32>
    %cst_53 = arith.constant 9.99999974E-6 : f32
    %122 = vector.broadcast %cst_53 : f32 to vector<32x1xf32>
    %123 = arith.addf %121, %122 : vector<32x1xf32>
    %124 = math.rsqrt %123 : vector<32x1xf32>
    %125 = vector.broadcast %124 : vector<32x1xf32> to vector<32x32xf32>
    %126 = arith.mulf %116, %125 : vector<32x32xf32>
    %127 = vector.broadcast %108 : vector<1x32xf32> to vector<32x32xf32>
    %128 = arith.mulf %126, %127 : vector<32x32xf32>
    %129 = vector.broadcast %110 : vector<1x32xf32> to vector<32x32xf32>
    %130 = arith.addf %128, %129 : vector<32x32xf32>
    %c0_54 = arith.constant 0 : index
    %c0_55 = arith.constant 0 : index
    %c0_56 = arith.constant 0 : index
    %131 = vector.load %arg11[%c0_54, %c0_55, %c0_56] : memref<2x32x64xf32, #tpu.memory_space<vmem>>, vector<1x32x64xf32>
    %132 = vector.shape_cast %131 : vector<1x32x64xf32> to vector<32x64xf32>
    %cst_57 = arith.constant dense<0.000000e+00> : vector<32x64xf32>
    %133 = tpu.matmul %130, %132, %cst_57 {dimension_numbers = #tpu.dot_dimension_numbers<[1], [0], [0], [1], [0, 0, 1, 1], [], []>} : vector<32x32xf32>, vector<32x64xf32>, vector<32x64xf32> -> vector<32x64xf32>
    %c0_58 = arith.constant 0 : index
    %c0_59 = arith.constant 0 : index
    %c0_60 = arith.constant 0 : index
    %134 = vector.load %arg12[%c0_58, %c0_59, %c0_60] : memref<2x1x64xf32, #tpu.memory_space<vmem>>, vector<1x1x64xf32>
    %135 = vector.shape_cast %134 : vector<1x1x64xf32> to vector<1x64xf32>
    %136 = vector.broadcast %135 : vector<1x64xf32> to vector<32x64xf32>
    %137 = arith.addf %133, %136 : vector<32x64xf32>
    %cst_61 = arith.constant 0.000000e+00 : f32
    %138 = vector.broadcast %cst_61 : f32 to vector<32x64xf32>
    %139 = arith.maximumf %137, %138 : vector<32x64xf32>
    %c0_62 = arith.constant 0 : index
    %c0_63 = arith.constant 0 : index
    %c0_64 = arith.constant 0 : index
    %140 = vector.load %arg13[%c0_62, %c0_63, %c0_64] : memref<2x64x32xf32, #tpu.memory_space<vmem>>, vector<1x64x32xf32>
    %141 = vector.shape_cast %140 : vector<1x64x32xf32> to vector<64x32xf32>
    %cst_65 = arith.constant dense<0.000000e+00> : vector<32x32xf32>
    %142 = tpu.matmul %139, %141, %cst_65 {dimension_numbers = #tpu.dot_dimension_numbers<[1], [0], [0], [1], [0, 0, 1, 1], [], []>} : vector<32x64xf32>, vector<64x32xf32>, vector<32x32xf32> -> vector<32x32xf32>
    %c0_66 = arith.constant 0 : index
    %c0_67 = arith.constant 0 : index
    %c0_68 = arith.constant 0 : index
    %143 = vector.load %arg14[%c0_66, %c0_67, %c0_68] : memref<2x1x32xf32, #tpu.memory_space<vmem>>, vector<1x1x32xf32>
    %144 = vector.shape_cast %143 : vector<1x1x32xf32> to vector<1x32xf32>
    %145 = vector.broadcast %144 : vector<1x32xf32> to vector<32x32xf32>
    %146 = arith.addf %142, %145 : vector<32x32xf32>
    %147 = arith.addf %130, %146 : vector<32x32xf32>
    %c0_69 = arith.constant 0 : index
    %c0_70 = arith.constant 0 : index
    %c0_71 = arith.constant 0 : index
    %148 = vector.load %arg15[%c0_69, %c0_70, %c0_71] : memref<2x1x32xf32, #tpu.memory_space<vmem>>, vector<1x1x32xf32>
    %149 = vector.shape_cast %148 : vector<1x1x32xf32> to vector<1x32xf32>
    %c0_72 = arith.constant 0 : index
    %c0_73 = arith.constant 0 : index
    %c0_74 = arith.constant 0 : index
    %150 = vector.load %arg16[%c0_72, %c0_73, %c0_74] : memref<2x1x32xf32, #tpu.memory_space<vmem>>, vector<1x1x32xf32>
    %151 = vector.shape_cast %150 : vector<1x1x32xf32> to vector<1x32xf32>
    %cst_75 = arith.constant dense<0.000000e+00> : vector<32xf32>
    %152 = vector.multi_reduction <add>, %147, %cst_75 [1] : vector<32x32xf32> to vector<32xf32>
    %153 = vector.shape_cast %152 : vector<32xf32> to vector<32x1xf32>
    %cst_76 = arith.constant 3.200000e+01 : f32
    %154 = vector.broadcast %cst_76 : f32 to vector<32x1xf32>
    %155 = arith.divf %153, %154 : vector<32x1xf32>
    %156 = vector.broadcast %155 : vector<32x1xf32> to vector<32x32xf32>
    %157 = arith.subf %147, %156 : vector<32x32xf32>
    %158 = arith.mulf %157, %157 : vector<32x32xf32>
    %cst_77 = arith.constant dense<0.000000e+00> : vector<32xf32>
    %159 = vector.multi_reduction <add>, %158, %cst_77 [1] : vector<32x32xf32> to vector<32xf32>
    %160 = vector.shape_cast %159 : vector<32xf32> to vector<32x1xf32>
    %cst_78 = arith.constant 3.200000e+01 : f32
    %161 = vector.broadcast %cst_78 : f32 to vector<32x1xf32>
    %162 = arith.divf %160, %161 : vector<32x1xf32>
    %cst_79 = arith.constant 9.99999974E-6 : f32
    %163 = vector.broadcast %cst_79 : f32 to vector<32x1xf32>
    %164 = arith.addf %162, %163 : vector<32x1xf32>
    %165 = math.rsqrt %164 : vector<32x1xf32>
    %166 = vector.broadcast %165 : vector<32x1xf32> to vector<32x32xf32>
    %167 = arith.mulf %157, %166 : vector<32x32xf32>
    %168 = vector.broadcast %149 : vector<1x32xf32> to vector<32x32xf32>
    %169 = arith.mulf %167, %168 : vector<32x32xf32>
    %170 = vector.broadcast %151 : vector<1x32xf32> to vector<32x32xf32>
    %171 = arith.addf %169, %170 : vector<32x32xf32>
    %c1 = arith.constant 1 : index
    %c0_80 = arith.constant 0 : index
    %c0_81 = arith.constant 0 : index
    %172 = vector.load %arg5[%c1, %c0_80, %c0_81] : memref<2x32x96xf32, #tpu.memory_space<vmem>>, vector<1x32x96xf32>
    %173 = vector.shape_cast %172 : vector<1x32x96xf32> to vector<32x96xf32>
    %cst_82 = arith.constant dense<0.000000e+00> : vector<32x96xf32>
    %174 = tpu.matmul %171, %173, %cst_82 {dimension_numbers = #tpu.dot_dimension_numbers<[1], [0], [0], [1], [0, 0, 1, 1], [], []>} : vector<32x32xf32>, vector<32x96xf32>, vector<32x96xf32> -> vector<32x96xf32>
    %c1_83 = arith.constant 1 : index
    %c0_84 = arith.constant 0 : index
    %c0_85 = arith.constant 0 : index
    %175 = vector.load %arg6[%c1_83, %c0_84, %c0_85] : memref<2x1x96xf32, #tpu.memory_space<vmem>>, vector<1x1x96xf32>
    %176 = vector.shape_cast %175 : vector<1x1x96xf32> to vector<1x96xf32>
    %177 = vector.broadcast %176 : vector<1x96xf32> to vector<32x96xf32>
    %178 = arith.addf %174, %177 : vector<32x96xf32>
    %179 = vector.extract_strided_slice %178 {offsets = [0, 0], sizes = [16, 16], strides = [1, 1]} : vector<32x96xf32> to vector<16x16xf32>
    %180 = vector.extract_strided_slice %178 {offsets = [0, 32], sizes = [16, 16], strides = [1, 1]} : vector<32x96xf32> to vector<16x16xf32>
    %181 = vector.extract_strided_slice %178 {offsets = [0, 64], sizes = [16, 16], strides = [1, 1]} : vector<32x96xf32> to vector<16x16xf32>
    %cst_86 = arith.constant dense<0.000000e+00> : vector<16x16xf32>
    %182 = tpu.matmul %179, %180, %cst_86 {dimension_numbers = #tpu.dot_dimension_numbers<[1], [1], [0], [0], [0, 0, 1, 0], [], []>} : vector<16x16xf32>, vector<16x16xf32>, vector<16x16xf32> -> vector<16x16xf32>
    %cst_87 = arith.constant dense<0xFF800000> : vector<16xf32>
    %183 = vector.multi_reduction <maximumf>, %182, %cst_87 [1] : vector<16x16xf32> to vector<16xf32>
    %184 = vector.shape_cast %183 : vector<16xf32> to vector<16x1xf32>
    %185 = vector.broadcast %184 : vector<16x1xf32> to vector<16x16xf32>
    %186 = arith.subf %182, %185 : vector<16x16xf32>
    %187 = math.exp %186 : vector<16x16xf32>
    %cst_88 = arith.constant dense<0.000000e+00> : vector<16xf32>
    %188 = vector.multi_reduction <add>, %187, %cst_88 [1] : vector<16x16xf32> to vector<16xf32>
    %189 = vector.shape_cast %188 : vector<16xf32> to vector<16x1xf32>
    %190 = tpu.reciprocal %189 {approx = true} : vector<16x1xf32> -> vector<16x1xf32>
    %191 = vector.broadcast %190 : vector<16x1xf32> to vector<16x16xf32>
    %192 = arith.mulf %187, %191 : vector<16x16xf32>
    %cst_89 = arith.constant dense<0.000000e+00> : vector<16x16xf32>
    %193 = tpu.matmul %192, %181, %cst_89 {dimension_numbers = #tpu.dot_dimension_numbers<[1], [0], [0], [1], [0, 0, 1, 1], [], []>} : vector<16x16xf32>, vector<16x16xf32>, vector<16x16xf32> -> vector<16x16xf32>
    %194 = vector.extract_strided_slice %178 {offsets = [0, 16], sizes = [16, 16], strides = [1, 1]} : vector<32x96xf32> to vector<16x16xf32>
    %195 = vector.extract_strided_slice %178 {offsets = [0, 48], sizes = [16, 16], strides = [1, 1]} : vector<32x96xf32> to vector<16x16xf32>
    %196 = vector.extract_strided_slice %178 {offsets = [0, 80], sizes = [16, 16], strides = [1, 1]} : vector<32x96xf32> to vector<16x16xf32>
    %cst_90 = arith.constant dense<0.000000e+00> : vector<16x16xf32>
    %197 = tpu.matmul %194, %195, %cst_90 {dimension_numbers = #tpu.dot_dimension_numbers<[1], [1], [0], [0], [0, 0, 1, 0], [], []>} : vector<16x16xf32>, vector<16x16xf32>, vector<16x16xf32> -> vector<16x16xf32>
    %cst_91 = arith.constant dense<0xFF800000> : vector<16xf32>
    %198 = vector.multi_reduction <maximumf>, %197, %cst_91 [1] : vector<16x16xf32> to vector<16xf32>
    %199 = vector.shape_cast %198 : vector<16xf32> to vector<16x1xf32>
    %200 = vector.broadcast %199 : vector<16x1xf32> to vector<16x16xf32>
    %201 = arith.subf %197, %200 : vector<16x16xf32>
    %202 = math.exp %201 : vector<16x16xf32>
    %cst_92 = arith.constant dense<0.000000e+00> : vector<16xf32>
    %203 = vector.multi_reduction <add>, %202, %cst_92 [1] : vector<16x16xf32> to vector<16xf32>
    %204 = vector.shape_cast %203 : vector<16xf32> to vector<16x1xf32>
    %205 = tpu.reciprocal %204 {approx = true} : vector<16x1xf32> -> vector<16x1xf32>
    %206 = vector.broadcast %205 : vector<16x1xf32> to vector<16x16xf32>
    %207 = arith.mulf %202, %206 : vector<16x16xf32>
    %cst_93 = arith.constant dense<0.000000e+00> : vector<16x16xf32>
    %208 = tpu.matmul %207, %196, %cst_93 {dimension_numbers = #tpu.dot_dimension_numbers<[1], [0], [0], [1], [0, 0, 1, 1], [], []>} : vector<16x16xf32>, vector<16x16xf32>, vector<16x16xf32> -> vector<16x16xf32>
    %209 = tpu.concatenate %193, %208 in 1 : vector<16x16xf32>, vector<16x16xf32> -> vector<16x32xf32>
    %210 = vector.extract_strided_slice %178 {offsets = [16, 0], sizes = [16, 16], strides = [1, 1]} : vector<32x96xf32> to vector<16x16xf32>
    %211 = vector.extract_strided_slice %178 {offsets = [16, 32], sizes = [16, 16], strides = [1, 1]} : vector<32x96xf32> to vector<16x16xf32>
    %212 = vector.extract_strided_slice %178 {offsets = [16, 64], sizes = [16, 16], strides = [1, 1]} : vector<32x96xf32> to vector<16x16xf32>
    %cst_94 = arith.constant dense<0.000000e+00> : vector<16x16xf32>
    %213 = tpu.matmul %210, %211, %cst_94 {dimension_numbers = #tpu.dot_dimension_numbers<[1], [1], [0], [0], [0, 0, 1, 0], [], []>} : vector<16x16xf32>, vector<16x16xf32>, vector<16x16xf32> -> vector<16x16xf32>
    %cst_95 = arith.constant dense<0xFF800000> : vector<16xf32>
    %214 = vector.multi_reduction <maximumf>, %213, %cst_95 [1] : vector<16x16xf32> to vector<16xf32>
    %215 = vector.shape_cast %214 : vector<16xf32> to vector<16x1xf32>
    %216 = vector.broadcast %215 : vector<16x1xf32> to vector<16x16xf32>
    %217 = arith.subf %213, %216 : vector<16x16xf32>
    %218 = math.exp %217 : vector<16x16xf32>
    %cst_96 = arith.constant dense<0.000000e+00> : vector<16xf32>
    %219 = vector.multi_reduction <add>, %218, %cst_96 [1] : vector<16x16xf32> to vector<16xf32>
    %220 = vector.shape_cast %219 : vector<16xf32> to vector<16x1xf32>
    %221 = tpu.reciprocal %220 {approx = true} : vector<16x1xf32> -> vector<16x1xf32>
    %222 = vector.broadcast %221 : vector<16x1xf32> to vector<16x16xf32>
    %223 = arith.mulf %218, %222 : vector<16x16xf32>
    %cst_97 = arith.constant dense<0.000000e+00> : vector<16x16xf32>
    %224 = tpu.matmul %223, %212, %cst_97 {dimension_numbers = #tpu.dot_dimension_numbers<[1], [0], [0], [1], [0, 0, 1, 1], [], []>} : vector<16x16xf32>, vector<16x16xf32>, vector<16x16xf32> -> vector<16x16xf32>
    %225 = vector.extract_strided_slice %178 {offsets = [16, 16], sizes = [16, 16], strides = [1, 1]} : vector<32x96xf32> to vector<16x16xf32>
    %226 = vector.extract_strided_slice %178 {offsets = [16, 48], sizes = [16, 16], strides = [1, 1]} : vector<32x96xf32> to vector<16x16xf32>
    %227 = vector.extract_strided_slice %178 {offsets = [16, 80], sizes = [16, 16], strides = [1, 1]} : vector<32x96xf32> to vector<16x16xf32>
    %cst_98 = arith.constant dense<0.000000e+00> : vector<16x16xf32>
    %228 = tpu.matmul %225, %226, %cst_98 {dimension_numbers = #tpu.dot_dimension_numbers<[1], [1], [0], [0], [0, 0, 1, 0], [], []>} : vector<16x16xf32>, vector<16x16xf32>, vector<16x16xf32> -> vector<16x16xf32>
    %cst_99 = arith.constant dense<0xFF800000> : vector<16xf32>
    %229 = vector.multi_reduction <maximumf>, %228, %cst_99 [1] : vector<16x16xf32> to vector<16xf32>
    %230 = vector.shape_cast %229 : vector<16xf32> to vector<16x1xf32>
    %231 = vector.broadcast %230 : vector<16x1xf32> to vector<16x16xf32>
    %232 = arith.subf %228, %231 : vector<16x16xf32>
    %233 = math.exp %232 : vector<16x16xf32>
    %cst_100 = arith.constant dense<0.000000e+00> : vector<16xf32>
    %234 = vector.multi_reduction <add>, %233, %cst_100 [1] : vector<16x16xf32> to vector<16xf32>
    %235 = vector.shape_cast %234 : vector<16xf32> to vector<16x1xf32>
    %236 = tpu.reciprocal %235 {approx = true} : vector<16x1xf32> -> vector<16x1xf32>
    %237 = vector.broadcast %236 : vector<16x1xf32> to vector<16x16xf32>
    %238 = arith.mulf %233, %237 : vector<16x16xf32>
    %cst_101 = arith.constant dense<0.000000e+00> : vector<16x16xf32>
    %239 = tpu.matmul %238, %227, %cst_101 {dimension_numbers = #tpu.dot_dimension_numbers<[1], [0], [0], [1], [0, 0, 1, 1], [], []>} : vector<16x16xf32>, vector<16x16xf32>, vector<16x16xf32> -> vector<16x16xf32>
    %240 = tpu.concatenate %224, %239 in 1 : vector<16x16xf32>, vector<16x16xf32> -> vector<16x32xf32>
    %241 = tpu.concatenate %209, %240 in 0 : vector<16x32xf32>, vector<16x32xf32> -> vector<32x32xf32>
    %c1_102 = arith.constant 1 : index
    %c0_103 = arith.constant 0 : index
    %c0_104 = arith.constant 0 : index
    %242 = vector.load %arg7[%c1_102, %c0_103, %c0_104] : memref<2x32x32xf32, #tpu.memory_space<vmem>>, vector<1x32x32xf32>
    %243 = vector.shape_cast %242 : vector<1x32x32xf32> to vector<32x32xf32>
    %cst_105 = arith.constant dense<0.000000e+00> : vector<32x32xf32>
    %244 = tpu.matmul %241, %243, %cst_105 {dimension_numbers = #tpu.dot_dimension_numbers<[1], [0], [0], [1], [0, 0, 1, 1], [], []>} : vector<32x32xf32>, vector<32x32xf32>, vector<32x32xf32> -> vector<32x32xf32>
    %c1_106 = arith.constant 1 : index
    %c0_107 = arith.constant 0 : index
    %c0_108 = arith.constant 0 : index
    %245 = vector.load %arg8[%c1_106, %c0_107, %c0_108] : memref<2x1x32xf32, #tpu.memory_space<vmem>>, vector<1x1x32xf32>
    %246 = vector.shape_cast %245 : vector<1x1x32xf32> to vector<1x32xf32>
    %247 = vector.broadcast %246 : vector<1x32xf32> to vector<32x32xf32>
    %248 = arith.addf %244, %247 : vector<32x32xf32>
    %249 = arith.addf %171, %248 : vector<32x32xf32>
    %c1_109 = arith.constant 1 : index
    %c0_110 = arith.constant 0 : index
    %c0_111 = arith.constant 0 : index
    %250 = vector.load %arg9[%c1_109, %c0_110, %c0_111] : memref<2x1x32xf32, #tpu.memory_space<vmem>>, vector<1x1x32xf32>
    %251 = vector.shape_cast %250 : vector<1x1x32xf32> to vector<1x32xf32>
    %c1_112 = arith.constant 1 : index
    %c0_113 = arith.constant 0 : index
    %c0_114 = arith.constant 0 : index
    %252 = vector.load %arg10[%c1_112, %c0_113, %c0_114] : memref<2x1x32xf32, #tpu.memory_space<vmem>>, vector<1x1x32xf32>
    %253 = vector.shape_cast %252 : vector<1x1x32xf32> to vector<1x32xf32>
    %cst_115 = arith.constant dense<0.000000e+00> : vector<32xf32>
    %254 = vector.multi_reduction <add>, %249, %cst_115 [1] : vector<32x32xf32> to vector<32xf32>
    %255 = vector.shape_cast %254 : vector<32xf32> to vector<32x1xf32>
    %cst_116 = arith.constant 3.200000e+01 : f32
    %256 = vector.broadcast %cst_116 : f32 to vector<32x1xf32>
    %257 = arith.divf %255, %256 : vector<32x1xf32>
    %258 = vector.broadcast %257 : vector<32x1xf32> to vector<32x32xf32>
    %259 = arith.subf %249, %258 : vector<32x32xf32>
    %260 = arith.mulf %259, %259 : vector<32x32xf32>
    %cst_117 = arith.constant dense<0.000000e+00> : vector<32xf32>
    %261 = vector.multi_reduction <add>, %260, %cst_117 [1] : vector<32x32xf32> to vector<32xf32>
    %262 = vector.shape_cast %261 : vector<32xf32> to vector<32x1xf32>
    %cst_118 = arith.constant 3.200000e+01 : f32
    %263 = vector.broadcast %cst_118 : f32 to vector<32x1xf32>
    %264 = arith.divf %262, %263 : vector<32x1xf32>
    %cst_119 = arith.constant 9.99999974E-6 : f32
    %265 = vector.broadcast %cst_119 : f32 to vector<32x1xf32>
    %266 = arith.addf %264, %265 : vector<32x1xf32>
    %267 = math.rsqrt %266 : vector<32x1xf32>
    %268 = vector.broadcast %267 : vector<32x1xf32> to vector<32x32xf32>
    %269 = arith.mulf %259, %268 : vector<32x32xf32>
    %270 = vector.broadcast %251 : vector<1x32xf32> to vector<32x32xf32>
    %271 = arith.mulf %269, %270 : vector<32x32xf32>
    %272 = vector.broadcast %253 : vector<1x32xf32> to vector<32x32xf32>
    %273 = arith.addf %271, %272 : vector<32x32xf32>
    %c1_120 = arith.constant 1 : index
    %c0_121 = arith.constant 0 : index
    %c0_122 = arith.constant 0 : index
    %274 = vector.load %arg11[%c1_120, %c0_121, %c0_122] : memref<2x32x64xf32, #tpu.memory_space<vmem>>, vector<1x32x64xf32>
    %275 = vector.shape_cast %274 : vector<1x32x64xf32> to vector<32x64xf32>
    %cst_123 = arith.constant dense<0.000000e+00> : vector<32x64xf32>
    %276 = tpu.matmul %273, %275, %cst_123 {dimension_numbers = #tpu.dot_dimension_numbers<[1], [0], [0], [1], [0, 0, 1, 1], [], []>} : vector<32x32xf32>, vector<32x64xf32>, vector<32x64xf32> -> vector<32x64xf32>
    %c1_124 = arith.constant 1 : index
    %c0_125 = arith.constant 0 : index
    %c0_126 = arith.constant 0 : index
    %277 = vector.load %arg12[%c1_124, %c0_125, %c0_126] : memref<2x1x64xf32, #tpu.memory_space<vmem>>, vector<1x1x64xf32>
    %278 = vector.shape_cast %277 : vector<1x1x64xf32> to vector<1x64xf32>
    %279 = vector.broadcast %278 : vector<1x64xf32> to vector<32x64xf32>
    %280 = arith.addf %276, %279 : vector<32x64xf32>
    %cst_127 = arith.constant 0.000000e+00 : f32
    %281 = vector.broadcast %cst_127 : f32 to vector<32x64xf32>
    %282 = arith.maximumf %280, %281 : vector<32x64xf32>
    %c1_128 = arith.constant 1 : index
    %c0_129 = arith.constant 0 : index
    %c0_130 = arith.constant 0 : index
    %283 = vector.load %arg13[%c1_128, %c0_129, %c0_130] : memref<2x64x32xf32, #tpu.memory_space<vmem>>, vector<1x64x32xf32>
    %284 = vector.shape_cast %283 : vector<1x64x32xf32> to vector<64x32xf32>
    %cst_131 = arith.constant dense<0.000000e+00> : vector<32x32xf32>
    %285 = tpu.matmul %282, %284, %cst_131 {dimension_numbers = #tpu.dot_dimension_numbers<[1], [0], [0], [1], [0, 0, 1, 1], [], []>} : vector<32x64xf32>, vector<64x32xf32>, vector<32x32xf32> -> vector<32x32xf32>
    %c1_132 = arith.constant 1 : index
    %c0_133 = arith.constant 0 : index
    %c0_134 = arith.constant 0 : index
    %286 = vector.load %arg14[%c1_132, %c0_133, %c0_134] : memref<2x1x32xf32, #tpu.memory_space<vmem>>, vector<1x1x32xf32>
    %287 = vector.shape_cast %286 : vector<1x1x32xf32> to vector<1x32xf32>
    %288 = vector.broadcast %287 : vector<1x32xf32> to vector<32x32xf32>
    %289 = arith.addf %285, %288 : vector<32x32xf32>
    %290 = arith.addf %273, %289 : vector<32x32xf32>
    %c1_135 = arith.constant 1 : index
    %c0_136 = arith.constant 0 : index
    %c0_137 = arith.constant 0 : index
    %291 = vector.load %arg15[%c1_135, %c0_136, %c0_137] : memref<2x1x32xf32, #tpu.memory_space<vmem>>, vector<1x1x32xf32>
    %292 = vector.shape_cast %291 : vector<1x1x32xf32> to vector<1x32xf32>
    %c1_138 = arith.constant 1 : index
    %c0_139 = arith.constant 0 : index
    %c0_140 = arith.constant 0 : index
    %293 = vector.load %arg16[%c1_138, %c0_139, %c0_140] : memref<2x1x32xf32, #tpu.memory_space<vmem>>, vector<1x1x32xf32>
    %294 = vector.shape_cast %293 : vector<1x1x32xf32> to vector<1x32xf32>
    %cst_141 = arith.constant dense<0.000000e+00> : vector<32xf32>
    %295 = vector.multi_reduction <add>, %290, %cst_141 [1] : vector<32x32xf32> to vector<32xf32>
    %296 = vector.shape_cast %295 : vector<32xf32> to vector<32x1xf32>
    %cst_142 = arith.constant 3.200000e+01 : f32
    %297 = vector.broadcast %cst_142 : f32 to vector<32x1xf32>
    %298 = arith.divf %296, %297 : vector<32x1xf32>
    %299 = vector.broadcast %298 : vector<32x1xf32> to vector<32x32xf32>
    %300 = arith.subf %290, %299 : vector<32x32xf32>
    %301 = arith.mulf %300, %300 : vector<32x32xf32>
    %cst_143 = arith.constant dense<0.000000e+00> : vector<32xf32>
    %302 = vector.multi_reduction <add>, %301, %cst_143 [1] : vector<32x32xf32> to vector<32xf32>
    %303 = vector.shape_cast %302 : vector<32xf32> to vector<32x1xf32>
    %cst_144 = arith.constant 3.200000e+01 : f32
    %304 = vector.broadcast %cst_144 : f32 to vector<32x1xf32>
    %305 = arith.divf %303, %304 : vector<32x1xf32>
    %cst_145 = arith.constant 9.99999974E-6 : f32
    %306 = vector.broadcast %cst_145 : f32 to vector<32x1xf32>
    %307 = arith.addf %305, %306 : vector<32x1xf32>
    %308 = math.rsqrt %307 : vector<32x1xf32>
    %309 = vector.broadcast %308 : vector<32x1xf32> to vector<32x32xf32>
    %310 = arith.mulf %300, %309 : vector<32x32xf32>
    %311 = vector.broadcast %292 : vector<1x32xf32> to vector<32x32xf32>
    %312 = arith.mulf %310, %311 : vector<32x32xf32>
    %313 = vector.broadcast %294 : vector<1x32xf32> to vector<32x32xf32>
    %314 = arith.addf %312, %313 : vector<32x32xf32>
    %315 = tpu.concatenate %314, %314, %314, %314, %314, %314, %314, %314, %314, %314, %314, %314, %314, %314, %314, %314 in 1 : vector<32x32xf32>, vector<32x32xf32>, vector<32x32xf32>, vector<32x32xf32>, vector<32x32xf32>, vector<32x32xf32>, vector<32x32xf32>, vector<32x32xf32>, vector<32x32xf32>, vector<32x32xf32>, vector<32x32xf32>, vector<32x32xf32>, vector<32x32xf32>, vector<32x32xf32>, vector<32x32xf32>, vector<32x32xf32> -> vector<32x512xf32>
    %c0_146 = arith.constant 0 : index
    %c0_147 = arith.constant 0 : index
    %316 = vector.load %arg17[%c0_146, %c0_147] : memref<32x512xf32, #tpu.memory_space<vmem>>, vector<32x512xf32>
    %317 = arith.mulf %315, %316 : vector<32x512xf32>
    %c0_148 = arith.constant 0 : index
    %c0_149 = arith.constant 0 : index
    %318 = vector.load %arg19[%c0_148, %c0_149] : memref<512x32xf32, #tpu.memory_space<vmem>>, vector<512x32xf32>
    %cst_150 = arith.constant dense<0.000000e+00> : vector<32x32xf32>
    %319 = tpu.matmul %317, %318, %cst_150 {dimension_numbers = #tpu.dot_dimension_numbers<[1], [0], [0], [1], [0, 0, 1, 1], [], []>} : vector<32x512xf32>, vector<512x32xf32>, vector<32x32xf32> -> vector<32x32xf32>
    %c0_151 = arith.constant 0 : index
    %c0_152 = arith.constant 0 : index
    %320 = vector.load %arg18[%c0_151, %c0_152] : memref<2x32xf32, #tpu.memory_space<vmem>>, vector<2x32xf32>
    %cst_153 = arith.constant dense<0.000000e+00> : vector<2x32xf32>
    %321 = tpu.matmul %320, %319, %cst_153 {dimension_numbers = #tpu.dot_dimension_numbers<[1], [0], [0], [1], [0, 0, 1, 1], [], []>} : vector<2x32xf32>, vector<32x32xf32>, vector<2x32xf32> -> vector<2x32xf32>
    %c0_154 = arith.constant 0 : index
    %c0_155 = arith.constant 0 : index
    %322 = vector.load %arg20[%c0_154, %c0_155] : memref<1x32xf32, #tpu.memory_space<vmem>>, vector<1x32xf32>
    %323 = vector.broadcast %322 : vector<1x32xf32> to vector<2x32xf32>
    %324 = arith.addf %321, %323 : vector<2x32xf32>
    %c0_156 = arith.constant 0 : index
    %c0_157 = arith.constant 0 : index
    %325 = vector.load %arg21[%c0_156, %c0_157] : memref<2x32xf32, #tpu.memory_space<vmem>>, vector<2x32xf32>
    tpu.vector_store %arg21[%c0_156, %c0_157], %324 {strides = array<i32>} : memref<2x32xf32, #tpu.memory_space<vmem>>, vector<2x32xf32>,
    return
  }
}

</mosaic_0001>

<llo_original>
// kernel: transformer_ps.1
$region0: #{transformer_ps.1}
  #allocation0 [shape = 'u32[]', space=smem, size = 0x4, offset = 0x4, fixed_abs, tag = 'smem constant byte address 0x4 - core index']
  #allocation1 [shape = 'u32[144,128]{1,0:T(1,128)}', space=vmem, size = 0x12000, scoped, tag = 'internal scratch']
  %s0 = inlined_call_operand.vmem [shape: f32[32,1], index: 0, kind: input, shape index: {}]
  %s1 = inlined_call_operand.vmem [shape: f32[1,32], index: 1, kind: input, shape index: {}]
  %s2 = inlined_call_operand.vmem [shape: f32[32,32], index: 2, kind: input, shape index: {}]
  %s3 = inlined_call_operand.vmem [shape: f32[1,32], index: 3, kind: input, shape index: {}]
  %s4 = inlined_call_operand.vmem [shape: f32[1,32], index: 4, kind: input, shape index: {}]
  %s5 = inlined_call_operand.vmem [shape: f32[2,32,96], index: 5, kind: input, shape index: {}]
  %s6 = inlined_call_operand.vmem [shape: f32[2,1,96], index: 6, kind: input, shape index: {}]
  %s7 = inlined_call_operand.vmem [shape: f32[2,32,32], index: 7, kind: input, shape index: {}]
  %s8 = inlined_call_operand.vmem [shape: f32[2,1,32], index: 8, kind: input, shape index: {}]
  %s9 = inlined_call_operand.vmem [shape: f32[2,1,32], index: 9, kind: input, shape index: {}]
  %s10 = inlined_call_operand.vmem [shape: f32[2,1,32], index: 10, kind: input, shape index: {}]
  %s11 = inlined_call_operand.vmem [shape: f32[2,32,64], index: 11, kind: input, shape index: {}]
  %s12 = inlined_call_operand.vmem [shape: f32[2,1,64], index: 12, kind: input, shape index: {}]
  %s13 = inlined_call_operand.vmem [shape: f32[2,64,32], index: 13, kind: input, shape index: {}]
  %s14 = inlined_call_operand.vmem [shape: f32[2,1,32], index: 14, kind: input, shape index: {}]
  %s15 = inlined_call_operand.vmem [shape: f32[2,1,32], index: 15, kind: input, shape index: {}]
  %s16 = inlined_call_operand.vmem [shape: f32[2,1,32], index: 16, kind: input, shape index: {}]
  %s17 = inlined_call_operand.vmem [shape: f32[32,512], index: 17, kind: input, shape index: {}]
  %s18 = inlined_call_operand.vmem [shape: f32[2,32], index: 18, kind: input, shape index: {}]
  %s19 = inlined_call_operand.vmem [shape: f32[512,32], index: 19, kind: input, shape index: {}]
  %s20 = inlined_call_operand.vmem [shape: f32[1,32], index: 20, kind: input, shape index: {}]
  %s21 = inlined_call_operand.hbm [shape: f32[2,32], index: 21, kind: output, shape index: {}]
  %s22 = sld [smem:[#allocation0]]
  $region94: #{transformer_ps.1} parent=0
    _
  %s24 = ssub.s32 1, %s22
  %s25 = scalar_select 0, %s24, %s22
  $region1: #{transformer_ps.1} parent=0
    #allocation2 [shape = 'u8[1024]{0}', space=vmem, size = 0x400, scoped, tag = 'output window, operand 0, single buffered']
    #allocation3 [shape = 's32[1]{0}', space=sflag, size = 0x4, scoped, tag = 'scoped memory for transformer_ps.1']
    %26 = vsyncpa [#allocation3], 0
    // Predicated region
    $region2: #{transformer_ps.1} parent=1 // pred_check
      _
    $region3: #{transformer_ps.1} parent=1 // pred_check_branch
      %28 = sbr.rel (0) target = $region5
    $region4: #{transformer_ps.1} parent=1 // pred_region
      _
    $region5: #{transformer_ps.1} parent=1 // pred_fallthru
      _
    // Predicated region
    $region6: #{transformer_ps.1} parent=1 // pred_check
      _
    $region7: #{transformer_ps.1} parent=1 // pred_check_branch
      %30 = sbr.rel (0) target = $region9
    $region8: #{transformer_ps.1} parent=1 // pred_region
      _
    $region9: #{transformer_ps.1} parent=1 // pred_fallthru
      _
    // Predicated region
    $region10: #{transformer_ps.1} parent=1 // pred_check
      _
    $region11: #{transformer_ps.1} parent=1 // pred_check_branch
      %32 = sbr.rel (0) target = $region13
    $region12: #{transformer_ps.1} parent=1 // pred_region
      _
    $region13: #{transformer_ps.1} parent=1 // pred_fallthru
      _
    // Predicated region
    $region14: #{transformer_ps.1} parent=1 // pred_check
      _
    $region15: #{transformer_ps.1} parent=1 // pred_check_branch
      %34 = sbr.rel (0) target = $region17
    $region16: #{transformer_ps.1} parent=1 // pred_region
      _
    $region17: #{transformer_ps.1} parent=1 // pred_fallthru
      _
    // Predicated region
    $region18: #{transformer_ps.1} parent=1 // pred_check
      _
    $region19: #{transformer_ps.1} parent=1 // pred_check_branch
      %36 = sbr.rel (0) target = $region21
    $region20: #{transformer_ps.1} parent=1 // pred_region
      _
    $region21: #{transformer_ps.1} parent=1 // pred_fallthru
      _
    // Predicated region
    $region22: #{transformer_ps.1} parent=1 // pred_check
      _
    $region23: #{transformer_ps.1} parent=1 // pred_check_branch
      %38 = sbr.rel (0) target = $region25
    $region24: #{transformer_ps.1} parent=1 // pred_region
      _
    $region25: #{transformer_ps.1} parent=1 // pred_fallthru
      _
    // Predicated region
    $region26: #{transformer_ps.1} parent=1 // pred_check
      _
    $region27: #{transformer_ps.1} parent=1 // pred_check_branch
      %40 = sbr.rel (0) target = $region29
    $region28: #{transformer_ps.1} parent=1 // pred_region
      _
    $region29: #{transformer_ps.1} parent=1 // pred_fallthru
      _
    // Predicated region
    $region30: #{transformer_ps.1} parent=1 // pred_check
      _
    $region31: #{transformer_ps.1} parent=1 // pred_check_branch
      %42 = sbr.rel (0) target = $region33
    $region32: #{transformer_ps.1} parent=1 // pred_region
      _
    $region33: #{transformer_ps.1} parent=1 // pred_fallthru
      _
    // Predicated region
    $region34: #{transformer_ps.1} parent=1 // pred_check
      _
    $region35: #{transformer_ps.1} parent=1 // pred_check_branch
      %44 = sbr.rel (0) target = $region37
    $region36: #{transformer_ps.1} parent=1 // pred_region
      _
    $region37: #{transformer_ps.1} parent=1 // pred_fallthru
      _
    // Predicated region
    $region38: #{transformer_ps.1} parent=1 // pred_check
      _
    $region39: #{transformer_ps.1} parent=1 // pred_check_branch
      %46 = sbr.rel (0) target = $region41
    $region40: #{transformer_ps.1} parent=1 // pred_region
      _
    $region41: #{transformer_ps.1} parent=1 // pred_fallthru
      _
    // Predicated region
    $region42: #{transformer_ps.1} parent=1 // pred_check
      _
    $region43: #{transformer_ps.1} parent=1 // pred_check_branch
      %48 = sbr.rel (0) target = $region45
    $region44: #{transformer_ps.1} parent=1 // pred_region
      _
    $region45: #{transformer_ps.1} parent=1 // pred_fallthru
      _
    // Predicated region
    $region46: #{transformer_ps.1} parent=1 // pred_check
      _
    $region47: #{transformer_ps.1} parent=1 // pred_check_branch
      %50 = sbr.rel (0) target = $region49
    $region48: #{transformer_ps.1} parent=1 // pred_region
      _
    $region49: #{transformer_ps.1} parent=1 // pred_fallthru
      _
    // Predicated region
    $region50: #{transformer_ps.1} parent=1 // pred_check
      _
    $region51: #{transformer_ps.1} parent=1 // pred_check_branch
      %52 = sbr.rel (0) target = $region53
    $region52: #{transformer_ps.1} parent=1 // pred_region
      _
    $region53: #{transformer_ps.1} parent=1 // pred_fallthru
      _
    // Predicated region
    $region54: #{transformer_ps.1} parent=1 // pred_check
      _
    $region55: #{transformer_ps.1} parent=1 // pred_check_branch
      %54 = sbr.rel (0) target = $region57
    $region56: #{transformer_ps.1} parent=1 // pred_region
      _
    $region57: #{transformer_ps.1} parent=1 // pred_fallthru
      _
    // Predicated region
    $region58: #{transformer_ps.1} parent=1 // pred_check
      _
    $region59: #{transformer_ps.1} parent=1 // pred_check_branch
      %56 = sbr.rel (0) target = $region61
    $region60: #{transformer_ps.1} parent=1 // pred_region
      _
    $region61: #{transformer_ps.1} parent=1 // pred_fallthru
      _
    // Predicated region
    $region62: #{transformer_ps.1} parent=1 // pred_check
      _
    $region63: #{transformer_ps.1} parent=1 // pred_check_branch
      %58 = sbr.rel (0) target = $region65
    $region64: #{transformer_ps.1} parent=1 // pred_region
      _
    $region65: #{transformer_ps.1} parent=1 // pred_fallthru
      _
    // Predicated region
    $region66: #{transformer_ps.1} parent=1 // pred_check
      _
    $region67: #{transformer_ps.1} parent=1 // pred_check_branch
      %60 = sbr.rel (0) target = $region69
    $region68: #{transformer_ps.1} parent=1 // pred_region
      _
    $region69: #{transformer_ps.1} parent=1 // pred_fallthru
      _
    // Predicated region
    $region70: #{transformer_ps.1} parent=1 // pred_check
      _
    $region71: #{transformer_ps.1} parent=1 // pred_check_branch
      %62 = sbr.rel (0) target = $region73
    $region72: #{transformer_ps.1} parent=1 // pred_region
      _
    $region73: #{transformer_ps.1} parent=1 // pred_fallthru
      _
    // Predicated region
    $region74: #{transformer_ps.1} parent=1 // pred_check
      _
    $region75: #{transformer_ps.1} parent=1 // pred_check_branch
      %64 = sbr.rel (0) target = $region77
    $region76: #{transformer_ps.1} parent=1 // pred_region
      _
    $region77: #{transformer_ps.1} parent=1 // pred_fallthru
      _
    // Predicated region
    $region78: #{transformer_ps.1} parent=1 // pred_check
      _
    $region79: #{transformer_ps.1} parent=1 // pred_check_branch
      %66 = sbr.rel (0) target = $region81
    $region80: #{transformer_ps.1} parent=1 // pred_region
      _
    $region81: #{transformer_ps.1} parent=1 // pred_fallthru
      _
    // Predicated region
    $region82: #{transformer_ps.1} parent=1 // pred_check
      _
    $region83: #{transformer_ps.1} parent=1 // pred_check_branch
      %68 = sbr.rel (0) target = $region85
    $region84: #{transformer_ps.1} parent=1 // pred_region
      _
    $region85: #{transformer_ps.1} parent=1 // pred_fallthru
      _
    %v69 = vld [vmem:[%s0] sm:$0xff]
    %v70 = vld [vmem:[%s0 + $0x8] sm:$0xff]
    %v71 = vld [vmem:[%s0 + $0x10] sm:$0xff]
    %v72 = vld [vmem:[%s0 + $0x18] sm:$0xff]
    %v73 = vld [vmem:[%s1] sm:$0x1]
    %75 = vset.pattern.permute.xlu0 0
    %76 = vperm.xlu0 %75, %v69
    %v77 = vpop.permute.xlu0 %76
    %80 = vset.pattern.permute.xlu0 0
    %81 = vperm.xlu0 %80, %v70
    %v82 = vpop.permute.xlu0 %81
    %85 = vset.pattern.permute.xlu0 0
    %86 = vperm.xlu0 %85, %v71
    %v87 = vpop.permute.xlu0 %86
    %90 = vset.pattern.permute.xlu0 0
    %91 = vperm.xlu0 %90, %v72
    %v92 = vpop.permute.xlu0 %91
    %v95 = vlaneseq
    %v96 = vshrl.u32 %v95, 7
    %v97 = vsub.s32 0, %v96
    %v98 = vrot.slane %v73, %v97
    %v100 = vmul.f32 %v77, %v98
    %v101 = vmul.f32 %v82, %v98
    %v102 = vmul.f32 %v87, %v98
    %v103 = vmul.f32 %v92, %v98
    %v104 = vld [vmem:[%s2] sm:$0xff]
    %v105 = vld [vmem:[%s2 + $0x8] sm:$0xff]
    %v106 = vld [vmem:[%s2 + $0x10] sm:$0xff]
    %v107 = vld [vmem:[%s2 + $0x18] sm:$0xff]
    %v108 = vadd.f32 %v100, %v104
    %v109 = vadd.f32 %v101, %v105
    %v110 = vadd.f32 %v102, %v106
    %v111 = vadd.f32 %v103, %v107
    %v112 = vld [vmem:[%s3] sm:$0x1]
    %v113 = vld [vmem:[%s4] sm:$0x1]
    %vm114 = vcmask 261120
    %v115 = vsel %vm114, %v108, 0.0
    %116 = vadd.xlane.f32.xlu0 %v115
    %v117 = vpop.xlane.xlu0 %116
    %v118 = vsel %vm114, %v109, 0.0
    %119 = vadd.xlane.f32.xlu0 %v118
    %v120 = vpop.xlane.xlu0 %119
    %v121 = vsel %vm114, %v110, 0.0
    %122 = vadd.xlane.f32.xlu0 %v121
    %v123 = vpop.xlane.xlu0 %122
    %v124 = vsel %vm114, %v111, 0.0
    %125 = vadd.xlane.f32.xlu0 %v124
    %v126 = vpop.xlane.xlu0 %125
    %v127 = vrcp.pop 32.0
    %v128 = vmul.f32 %v117, %v127
    %v129 = vmul.f32 %v120, %v127
    %v130 = vmul.f32 %v123, %v127
    %v131 = vmul.f32 %v126, %v127
    %v132 = vsub.f32 %v108, %v128
    %v133 = vsub.f32 %v109, %v129
    %v134 = vsub.f32 %v110, %v130
    %v135 = vsub.f32 %v111, %v131
    %v136 = vmul.f32 %v132, %v132
    %v137 = vmul.f32 %v133, %v133
    %v138 = vmul.f32 %v134, %v134
    %v139 = vmul.f32 %v135, %v135
    %v140 = vsel %vm114, %v136, 0.0
    %141 = vadd.xlane.f32.xlu0 %v140
    %v142 = vpop.xlane.xlu0 %141
    %v143 = vsel %vm114, %v137, 0.0
    %144 = vadd.xlane.f32.xlu0 %v143
    %v145 = vpop.xlane.xlu0 %144
    %v146 = vsel %vm114, %v138, 0.0
    %147 = vadd.xlane.f32.xlu0 %v146
    %v148 = vpop.xlane.xlu0 %147
    %v149 = vsel %vm114, %v139, 0.0
    %150 = vadd.xlane.f32.xlu0 %v149
    %v151 = vpop.xlane.xlu0 %150
    %v152 = vmul.f32 %v142, %v127
    %v153 = vmul.f32 %v145, %v127
    %v154 = vmul.f32 %v148, %v127
    %v155 = vmul.f32 %v151, %v127
    %v156 = vadd.f32 %v152, 1e-05
    %v157 = vadd.f32 %v153, 1e-05
    %v158 = vadd.f32 %v154, 1e-05
    %v159 = vadd.f32 %v155, 1e-05
    %v160 = vrsqrt.pop %v156
    %v161 = vrsqrt.pop %v157
    %v162 = vrsqrt.pop %v158
    %v163 = vrsqrt.pop %v159
    %v164 = vmul.f32 %v132, %v160
    %v165 = vmul.f32 %v133, %v161
    %v166 = vmul.f32 %v134, %v162
    %v167 = vmul.f32 %v135, %v163
    %v169 = vlaneseq
    %v170 = vshrl.u32 %v169, 7
    %v171 = vsub.s32 0, %v170
    %v172 = vrot.slane %v112, %v171
    %v174 = vmul.f32 %v164, %v172
    %v175 = vmul.f32 %v165, %v172
    %v176 = vmul.f32 %v166, %v172
    %v177 = vmul.f32 %v167, %v172
    %v179 = vlaneseq
    %v180 = vshrl.u32 %v179, 7
    %v181 = vsub.s32 0, %v180
    %v182 = vrot.slane %v113, %v181
    %v184 = vadd.f32 %v174, %v182
    %v185 = vadd.f32 %v175, %v182
    %v186 = vadd.f32 %v176, %v182
    %v187 = vadd.f32 %v177, %v182
    %v188 = vld [vmem:[%s5] sm:$0xff]
    %v189 = vld [vmem:[%s5 + $0x8] sm:$0xff]
    %v190 = vld [vmem:[%s5 + $0x10] sm:$0xff]
    %v191 = vld [vmem:[%s5 + $0x18] sm:$0xff]
    %v192 = vld [vmem:[%s6] sm:$0x1]
    %v194 = vlaneseq
    %v195 = vshrl.u32 %v194, 7
    %v196 = vsub.s32 0, %v195
    %v197 = vrot.slane %v192, %v196
    %v200 = vsel %vm114, %v184, 0
    %v203 = vsel %vm114, %v185, 0
    %v206 = vsel %vm114, %v186, 0
    %v209 = vsel %vm114, %v187, 0
    %211 = vmatprep.subr.mxu0 0.0
    %212 = vmatpush1.msra.mxu0 %v188
    %213 = vmatprep.subr.mxu0 0.0
    %214 = vmatpush1.msra.mxu0 %v189
    %215 = vmatprep.subr.mxu0 0.0
    %216 = vmatpush1.msra.mxu0 %v190
    %217 = vmatprep.subr.mxu0 0.0
    %218 = vmatpush1.msra.mxu0 %v191
    %219 = vmatprep.subr.mxu0 0.0
    %220 = vmatpush1.msra.mxu0 0.0
    %221 = vmatprep.subr.mxu0 0.0
    %222 = vmatpush1.msra.mxu0 0.0
    %223 = vmatprep.subr.mxu0 0.0
    %224 = vmatpush1.msra.mxu0 0.0
    %225 = vmatprep.subr.mxu0 0.0
    %226 = vmatpush1.msra.mxu0 0.0
    %227 = vmatprep.subr.mxu0 0.0
    %228 = vmatpush1.msra.mxu0 0.0
    %229 = vmatprep.subr.mxu0 0.0
    %230 = vmatpush1.msra.mxu0 0.0
    %231 = vmatprep.subr.mxu0 0.0
    %232 = vmatpush1.msra.mxu0 0.0
    %233 = vmatprep.subr.mxu0 0.0
    %234 = vmatpush1.msra.mxu0 0.0
    %235 = vmatprep.subr.mxu0 0.0
    %236 = vmatpush1.msra.mxu0 0.0
    %237 = vmatprep.subr.mxu0 0.0
    %238 = vmatpush1.msra.mxu0 0.0
    %239 = vmatprep.subr.mxu0 0.0
    %240 = vmatpush1.msra.mxu0 0.0
    %241 = vmatprep.subr.mxu0 0.0
    %242 = vmatpush1.msra.mxu0 0.0
    %243 = vmatprep.subr.mxu0 0.0
    %244 = vmatpush1.msra.mxu0 0.0
    %245 = vmatprep.subr.mxu0 0.0
    %246 = vmatpush1.msra.mxu0 0.0
    %247 = vmatprep.subr.mxu0 0.0
    %248 = vmatpush1.msra.mxu0 0.0
    %249 = vmatprep.subr.mxu0 0.0
    %250 = vmatpush1.msra.mxu0 0.0
    %251 = vmatprep.subr.mxu0 0.0
    %252 = vmatpush1.msra.mxu0 0.0
    %253 = vmatprep.subr.mxu0 0.0
    %254 = vmatpush1.msra.mxu0 0.0
    %255 = vmatprep.subr.mxu0 0.0
    %256 = vmatpush1.msra.mxu0 0.0
    %257 = vmatprep.subr.mxu0 0.0
    %258 = vmatpush1.msra.mxu0 0.0
    %259 = vmatprep.subr.mxu0 0.0
    %260 = vmatpush1.msra.mxu0 0.0
    %261 = vmatprep.subr.mxu0 0.0
    %262 = vmatpush1.msra.mxu0 0.0
    %263 = vmatprep.subr.mxu0 0.0
    %264 = vmatpush1.msra.mxu0 0.0
    %265 = vmatprep.subr.mxu0 0.0
    %266 = vmatpush1.msra.mxu0 0.0
    %267 = vmatprep.subr.mxu0 0.0
    %268 = vmatpush1.msra.mxu0 0.0
    %269 = vmatprep.subr.mxu0 0.0
    %270 = vmatpush1.msra.mxu0 0.0
    %271 = vmatprep.subr.mxu0 0.0
    %272 = vmatpush1.msra.mxu0 0.0
    %273 = vmatprep.subr.mxu0 0.0
    %274 = vmatpush1.msra.mxu0 0.0
    %275 = vmatprep.mubr.f32.mxu0 0.0
    %276 = vmatmul.mubr.f32.gmra.mrb[0].mxu0 %v200
    %v277 = vpop.f32.mrb[0].mxu0
    %v278 = vadd.f32 %v197, %v277
    %v279 = vpop.f32.mrb[0].mxu0
    %280 = vmatprep.mubr.f32.mxu0 0.0
    %281 = vmatmul.mubr.f32.gmra.mrb[0].mxu0 %v203
    %v282 = vpop.f32.mrb[0].mxu0
    %v283 = vadd.f32 %v197, %v282
    %v284 = vpop.f32.mrb[0].mxu0
    %285 = vmatprep.mubr.f32.mxu0 0.0
    %286 = vmatmul.mubr.f32.gmra.mrb[0].mxu0 %v206
    %v287 = vpop.f32.mrb[0].mxu0
    %v288 = vadd.f32 %v197, %v287
    %v289 = vpop.f32.mrb[0].mxu0
    %290 = vmatprep.mubr.f32.mxu0 0.0
    %291 = vmatmul.mubr.f32.gmra.mrb[0].mxu0 %v209
    %v292 = vpop.f32.mrb[0].mxu0
    %v293 = vadd.f32 %v197, %v292
    %v294 = vpop.f32.mrb[0].mxu0
    %295 = vdwg.mxu0
    %298 = vrot.lane.b32.xlu0 %v278, 96
    %v299 = vpop.permute.xlu0 %298
    %300 = vrot.lane.b32.xlu0 %v283, 96
    %v301 = vpop.permute.xlu0 %300
    %vm302 = vcmask 130048
    %v303 = vsel %vm302, %v278, 0
    %v305 = vsel %vm302, %v283, 0
    %v307 = vsel %vm302, %v299, 0
    %v309 = vsel %vm302, %v301, 0
    %311 = vmatprep.subr.mxu0 0.0
    %312 = vmatpush1.xpose.msra.mxu0 %v307
    %313 = vmatprep.subr.mxu0 0.0
    %314 = vmatpush1.xpose.msra.mxu0 %v309
    %315 = vmatprep.subr.mxu0 0.0
    %316 = vmatpush1.xpose.msra.mxu0 0.0
    %317 = vmatprep.subr.mxu0 0.0
    %318 = vmatpush1.xpose.msra.mxu0 0.0
    %319 = vmatprep.subr.mxu0 0.0
    %320 = vmatpush1.xpose.msra.mxu0 0.0
    %321 = vmatprep.subr.mxu0 0.0
    %322 = vmatpush1.xpose.msra.mxu0 0.0
    %323 = vmatprep.subr.mxu0 0.0
    %324 = vmatpush1.xpose.msra.mxu0 0.0
    %325 = vmatprep.subr.mxu0 0.0
    %326 = vmatpush1.xpose.msra.mxu0 0.0
    %327 = vmatprep.subr.mxu0 0.0
    %328 = vmatpush1.xpose.msra.mxu0 0.0
    %329 = vmatprep.subr.mxu0 0.0
    %330 = vmatpush1.xpose.msra.mxu0 0.0
    %331 = vmatprep.subr.mxu0 0.0
    %332 = vmatpush1.xpose.msra.mxu0 0.0
    %333 = vmatprep.subr.mxu0 0.0
    %334 = vmatpush1.xpose.msra.mxu0 0.0
    %335 = vmatprep.subr.mxu0 0.0
    %336 = vmatpush1.xpose.msra.mxu0 0.0
    %337 = vmatprep.subr.mxu0 0.0
    %338 = vmatpush1.xpose.msra.mxu0 0.0
    %339 = vmatprep.subr.mxu0 0.0
    %340 = vmatpush1.xpose.msra.mxu0 0.0
    %341 = vmatprep.subr.mxu0 0.0
    %342 = vmatpush1.xpose.msra.mxu0 0.0
    %343 = vmatprep.subr.mxu0 0.0
    %344 = vmatpush1.xpose.msra.mxu0 0.0
    %345 = vmatprep.subr.mxu0 0.0
    %346 = vmatpush1.xpose.msra.mxu0 0.0
    %347 = vmatprep.subr.mxu0 0.0
    %348 = vmatpush1.xpose.msra.mxu0 0.0
    %349 = vmatprep.subr.mxu0 0.0
    %350 = vmatpush1.xpose.msra.mxu0 0.0
    %351 = vmatprep.subr.mxu0 0.0
    %352 = vmatpush1.xpose.msra.mxu0 0.0
    %353 = vmatprep.subr.mxu0 0.0
    %354 = vmatpush1.xpose.msra.mxu0 0.0
    %355 = vmatprep.subr.mxu0 0.0
    %356 = vmatpush1.xpose.msra.mxu0 0.0
    %357 = vmatprep.subr.mxu0 0.0
    %358 = vmatpush1.xpose.msra.mxu0 0.0
    %359 = vmatprep.subr.mxu0 0.0
    %360 = vmatpush1.xpose.msra.mxu0 0.0
    %361 = vmatprep.subr.mxu0 0.0
    %362 = vmatpush1.xpose.msra.mxu0 0.0
    %363 = vmatprep.subr.mxu0 0.0
    %364 = vmatpush1.xpose.msra.mxu0 0.0
    %365 = vmatprep.subr.mxu0 0.0
    %366 = vmatpush1.xpose.msra.mxu0 0.0
    %367 = vmatprep.subr.mxu0 0.0
    %368 = vmatpush1.xpose.msra.mxu0 0.0
    %369 = vmatprep.subr.mxu0 0.0
    %370 = vmatpush1.xpose.msra.mxu0 0.0
    %371 = vmatprep.subr.mxu0 0.0
    %372 = vmatpush1.xpose.msra.mxu0 0.0
    %373 = vmatprep.subr.mxu0 0.0
    %374 = vmatpush1.xpose.msra.mxu0 0.0
    %375 = vmatprep.mubr.f32.mxu0 0.0
    %376 = vmatmul.mubr.f32.gmra.mrb[0].mxu0 %v303
    %v377 = vpop.f32.mrb[0].mxu0
    %v378 = vadd.f32 0.0, %v377
    %v379 = vpop.f32.mrb[0].mxu0
    %380 = vmatprep.mubr.f32.mxu0 0.0
    %381 = vmatmul.mubr.f32.gmra.mrb[0].mxu0 %v305
    %v382 = vpop.f32.mrb[0].mxu0
    %v383 = vadd.f32 0.0, %v382
    %v384 = vpop.f32.mrb[0].mxu0
    %385 = vdwg.mxu0
    %v386 = vsel %vm302, %v378, -inf
    %387 = vmax.xlane.f32.xlu0 %v386
    %v388 = vpop.xlane.xlu0 %387
    %v389 = vsel %vm302, %v383, -inf
    %390 = vmax.xlane.f32.xlu0 %v389
    %v391 = vpop.xlane.xlu0 %390
    %v392 = vsub.f32 %v378, %v388
    %v393 = vsub.f32 %v383, %v391
    %v394 = vmul.f32 %v392, 1.442695
    %v395 = vpow.pop %v394
    %v396 = vmul.f32 %v393, 1.442695
    %v397 = vpow.pop %v396
    %v398 = vsel %vm302, %v395, 0.0
    %399 = vadd.xlane.f32.xlu0 %v398
    %v400 = vpop.xlane.xlu0 %399
    %v401 = vsel %vm302, %v397, 0.0
    %402 = vadd.xlane.f32.xlu0 %v401
    %v403 = vpop.xlane.xlu0 %402
    %v404 = vrcp.pop %v400
    %v405 = vrcp.pop %v403
    %v406 = vmul.f32 %v395, %v404
    %v407 = vmul.f32 %v397, %v405
    %408 = vrot.lane.b32.xlu0 %v278, 64
    %v409 = vpop.permute.xlu0 %408
    %410 = vrot.lane.b32.xlu0 %v283, 64
    %v411 = vpop.permute.xlu0 %410
    %v415 = vsel %vm302, %v406, 0
    %v418 = vsel %vm302, %v407, 0
    %420 = vmatprep.subr.mxu0 0.0
    %421 = vmatpush1.msra.mxu0 %v409
    %422 = vmatprep.subr.mxu0 0.0
    %423 = vmatpush1.msra.mxu0 %v411
    %424 = vmatprep.subr.mxu0 0.0
    %425 = vmatpush1.msra.mxu0 0.0
    %426 = vmatprep.subr.mxu0 0.0
    %427 = vmatpush1.msra.mxu0 0.0
    %428 = vmatprep.subr.mxu0 0.0
    %429 = vmatpush1.msra.mxu0 0.0
    %430 = vmatprep.subr.mxu0 0.0
    %431 = vmatpush1.msra.mxu0 0.0
    %432 = vmatprep.subr.mxu0 0.0
    %433 = vmatpush1.msra.mxu0 0.0
    %434 = vmatprep.subr.mxu0 0.0
    %435 = vmatpush1.msra.mxu0 0.0
    %436 = vmatprep.subr.mxu0 0.0
    %437 = vmatpush1.msra.mxu0 0.0
    %438 = vmatprep.subr.mxu0 0.0
    %439 = vmatpush1.msra.mxu0 0.0
    %440 = vmatprep.subr.mxu0 0.0
    %441 = vmatpush1.msra.mxu0 0.0
    %442 = vmatprep.subr.mxu0 0.0
    %443 = vmatpush1.msra.mxu0 0.0
    %444 = vmatprep.subr.mxu0 0.0
    %445 = vmatpush1.msra.mxu0 0.0
    %446 = vmatprep.subr.mxu0 0.0
    %447 = vmatpush1.msra.mxu0 0.0
    %448 = vmatprep.subr.mxu0 0.0
    %449 = vmatpush1.msra.mxu0 0.0
    %450 = vmatprep.subr.mxu0 0.0
    %451 = vmatpush1.msra.mxu0 0.0
    %452 = vmatprep.subr.mxu0 0.0
    %453 = vmatpush1.msra.mxu0 0.0
    %454 = vmatprep.subr.mxu0 0.0
    %455 = vmatpush1.msra.mxu0 0.0
    %456 = vmatprep.subr.mxu0 0.0
    %457 = vmatpush1.msra.mxu0 0.0
    %458 = vmatprep.subr.mxu0 0.0
    %459 = vmatpush1.msra.mxu0 0.0
    %460 = vmatprep.subr.mxu0 0.0
    %461 = vmatpush1.msra.mxu0 0.0
    %462 = vmatprep.subr.mxu0 0.0
    %463 = vmatpush1.msra.mxu0 0.0
    %464 = vmatprep.subr.mxu0 0.0
    %465 = vmatpush1.msra.mxu0 0.0
    %466 = vmatprep.subr.mxu0 0.0
    %467 = vmatpush1.msra.mxu0 0.0
    %468 = vmatprep.subr.mxu0 0.0
    %469 = vmatpush1.msra.mxu0 0.0
    %470 = vmatprep.subr.mxu0 0.0
    %471 = vmatpush1.msra.mxu0 0.0
    %472 = vmatprep.subr.mxu0 0.0
    %473 = vmatpush1.msra.mxu0 0.0
    %474 = vmatprep.subr.mxu0 0.0
    %475 = vmatpush1.msra.mxu0 0.0
    %476 = vmatprep.subr.mxu0 0.0
    %477 = vmatpush1.msra.mxu0 0.0
    %478 = vmatprep.subr.mxu0 0.0
    %479 = vmatpush1.msra.mxu0 0.0
    %480 = vmatprep.subr.mxu0 0.0
    %481 = vmatpush1.msra.mxu0 0.0
    %482 = vmatprep.subr.mxu0 0.0
    %483 = vmatpush1.msra.mxu0 0.0
    %484 = vmatprep.mubr.f32.mxu0 0.0
    %485 = vmatmul.mubr.f32.gmra.mrb[0].mxu0 %v415
    %v486 = vpop.f32.mrb[0].mxu0
    %v487 = vadd.f32 0.0, %v486
    %v488 = vpop.f32.mrb[0].mxu0
    %489 = vmatprep.mubr.f32.mxu0 0.0
    %490 = vmatmul.mubr.f32.gmra.mrb[0].mxu0 %v418
    %v491 = vpop.f32.mrb[0].mxu0
    %v492 = vadd.f32 0.0, %v491
    %v493 = vpop.f32.mrb[0].mxu0
    %494 = vdwg.mxu0
    %495 = vrot.lane.b32.xlu0 %v278, 112
    %v496 = vpop.permute.xlu0 %495
    %497 = vrot.lane.b32.xlu0 %v283, 112
    %v498 = vpop.permute.xlu0 %497
    %499 = vrot.lane.b32.xlu0 %v278, 80
    %v500 = vpop.permute.xlu0 %499
    %501 = vrot.lane.b32.xlu0 %v283, 80
    %v502 = vpop.permute.xlu0 %501
    %v503 = vsel %vm302, %v496, 0
    %v505 = vsel %vm302, %v498, 0
    %v507 = vsel %vm302, %v500, 0
    %v509 = vsel %vm302, %v502, 0
    %511 = vmatprep.subr.mxu0 0.0
    %512 = vmatpush1.xpose.msra.mxu0 %v507
    %513 = vmatprep.subr.mxu0 0.0
    %514 = vmatpush1.xpose.msra.mxu0 %v509
    %515 = vmatprep.subr.mxu0 0.0
    %516 = vmatpush1.xpose.msra.mxu0 0.0
    %517 = vmatprep.subr.mxu0 0.0
    %518 = vmatpush1.xpose.msra.mxu0 0.0
    %519 = vmatprep.subr.mxu0 0.0
    %520 = vmatpush1.xpose.msra.mxu0 0.0
    %521 = vmatprep.subr.mxu0 0.0
    %522 = vmatpush1.xpose.msra.mxu0 0.0
    %523 = vmatprep.subr.mxu0 0.0
    %524 = vmatpush1.xpose.msra.mxu0 0.0
    %525 = vmatprep.subr.mxu0 0.0
    %526 = vmatpush1.xpose.msra.mxu0 0.0
    %527 = vmatprep.subr.mxu0 0.0
    %528 = vmatpush1.xpose.msra.mxu0 0.0
    %529 = vmatprep.subr.mxu0 0.0
    %530 = vmatpush1.xpose.msra.mxu0 0.0
    %531 = vmatprep.subr.mxu0 0.0
    %532 = vmatpush1.xpose.msra.mxu0 0.0
    %533 = vmatprep.subr.mxu0 0.0
    %534 = vmatpush1.xpose.msra.mxu0 0.0
    %535 = vmatprep.subr.mxu0 0.0
    %536 = vmatpush1.xpose.msra.mxu0 0.0
    %537 = vmatprep.subr.mxu0 0.0
    %538 = vmatpush1.xpose.msra.mxu0 0.0
    %539 = vmatprep.subr.mxu0 0.0
    %540 = vmatpush1.xpose.msra.mxu0 0.0
    %541 = vmatprep.subr.mxu0 0.0
    %542 = vmatpush1.xpose.msra.mxu0 0.0
    %543 = vmatprep.subr.mxu0 0.0
    %544 = vmatpush1.xpose.msra.mxu0 0.0
    %545 = vmatprep.subr.mxu0 0.0
    %546 = vmatpush1.xpose.msra.mxu0 0.0
    %547 = vmatprep.subr.mxu0 0.0
    %548 = vmatpush1.xpose.msra.mxu0 0.0
    %549 = vmatprep.subr.mxu0 0.0
    %550 = vmatpush1.xpose.msra.mxu0 0.0
    %551 = vmatprep.subr.mxu0 0.0
    %552 = vmatpush1.xpose.msra.mxu0 0.0
    %553 = vmatprep.subr.mxu0 0.0
    %554 = vmatpush1.xpose.msra.mxu0 0.0
    %555 = vmatprep.subr.mxu0 0.0
    %556 = vmatpush1.xpose.msra.mxu0 0.0
    %557 = vmatprep.subr.mxu0 0.0
    %558 = vmatpush1.xpose.msra.mxu0 0.0
    %559 = vmatprep.subr.mxu0 0.0
    %560 = vmatpush1.xpose.msra.mxu0 0.0
    %561 = vmatprep.subr.mxu0 0.0
    %562 = vmatpush1.xpose.msra.mxu0 0.0
    %563 = vmatprep.subr.mxu0 0.0
    %564 = vmatpush1.xpose.msra.mxu0 0.0
    %565 = vmatprep.subr.mxu0 0.0
    %566 = vmatpush1.xpose.msra.mxu0 0.0
    %567 = vmatprep.subr.mxu0 0.0
    %568 = vmatpush1.xpose.msra.mxu0 0.0
    %569 = vmatprep.subr.mxu0 0.0
    %570 = vmatpush1.xpose.msra.mxu0 0.0
    %571 = vmatprep.subr.mxu0 0.0
    %572 = vmatpush1.xpose.msra.mxu0 0.0
    %573 = vmatprep.subr.mxu0 0.0
    %574 = vmatpush1.xpose.msra.mxu0 0.0
    %575 = vmatprep.mubr.f32.mxu0 0.0
    %576 = vmatmul.mubr.f32.gmra.mrb[0].mxu0 %v503
    %v577 = vpop.f32.mrb[0].mxu0
    %v578 = vadd.f32 0.0, %v577
    %v579 = vpop.f32.mrb[0].mxu0
    %580 = vmatprep.mubr.f32.mxu0 0.0
    %581 = vmatmul.mubr.f32.gmra.mrb[0].mxu0 %v505
    %v582 = vpop.f32.mrb[0].mxu0
    %v583 = vadd.f32 0.0, %v582
    %v584 = vpop.f32.mrb[0].mxu0
    %585 = vdwg.mxu0
    %v586 = vsel %vm302, %v578, -inf
    %587 = vmax.xlane.f32.xlu0 %v586
    %v588 = vpop.xlane.xlu0 %587
    %v589 = vsel %vm302, %v583, -inf
    %590 = vmax.xlane.f32.xlu0 %v589
    %v591 = vpop.xlane.xlu0 %590
    %v592 = vsub.f32 %v578, %v588
    %v593 = vsub.f32 %v583, %v591
    %v594 = vmul.f32 %v592, 1.442695
    %v595 = vpow.pop %v594
    %v596 = vmul.f32 %v593, 1.442695
    %v597 = vpow.pop %v596
    %v598 = vsel %vm302, %v595, 0.0
    %599 = vadd.xlane.f32.xlu0 %v598
    %v600 = vpop.xlane.xlu0 %599
    %v601 = vsel %vm302, %v597, 0.0
    %602 = vadd.xlane.f32.xlu0 %v601
    %v603 = vpop.xlane.xlu0 %602
    %v604 = vrcp.pop %v600
    %v605 = vrcp.pop %v603
    %v606 = vmul.f32 %v595, %v604
    %v607 = vmul.f32 %v597, %v605
    %608 = vrot.lane.b32.xlu0 %v278, 48
    %v609 = vpop.permute.xlu0 %608
    %610 = vrot.lane.b32.xlu0 %v283, 48
    %v611 = vpop.permute.xlu0 %610
    %v615 = vsel %vm302, %v606, 0
    %v618 = vsel %vm302, %v607, 0
    %620 = vmatprep.subr.mxu0 0.0
    %621 = vmatpush1.msra.mxu0 %v609
    %622 = vmatprep.subr.mxu0 0.0
    %623 = vmatpush1.msra.mxu0 %v611
    %624 = vmatprep.subr.mxu0 0.0
    %625 = vmatpush1.msra.mxu0 0.0
    %626 = vmatprep.subr.mxu0 0.0
    %627 = vmatpush1.msra.mxu0 0.0
    %628 = vmatprep.subr.mxu0 0.0
    %629 = vmatpush1.msra.mxu0 0.0
    %630 = vmatprep.subr.mxu0 0.0
    %631 = vmatpush1.msra.mxu0 0.0
    %632 = vmatprep.subr.mxu0 0.0
    %633 = vmatpush1.msra.mxu0 0.0
    %634 = vmatprep.subr.mxu0 0.0
    %635 = vmatpush1.msra.mxu0 0.0
    %636 = vmatprep.subr.mxu0 0.0
    %637 = vmatpush1.msra.mxu0 0.0
    %638 = vmatprep.subr.mxu0 0.0
    %639 = vmatpush1.msra.mxu0 0.0
    %640 = vmatprep.subr.mxu0 0.0
    %641 = vmatpush1.msra.mxu0 0.0
    %642 = vmatprep.subr.mxu0 0.0
    %643 = vmatpush1.msra.mxu0 0.0
    %644 = vmatprep.subr.mxu0 0.0
    %645 = vmatpush1.msra.mxu0 0.0
    %646 = vmatprep.subr.mxu0 0.0
    %647 = vmatpush1.msra.mxu0 0.0
    %648 = vmatprep.subr.mxu0 0.0
    %649 = vmatpush1.msra.mxu0 0.0
    %650 = vmatprep.subr.mxu0 0.0
    %651 = vmatpush1.msra.mxu0 0.0
    %652 = vmatprep.subr.mxu0 0.0
    %653 = vmatpush1.msra.mxu0 0.0
    %654 = vmatprep.subr.mxu0 0.0
    %655 = vmatpush1.msra.mxu0 0.0
    %656 = vmatprep.subr.mxu0 0.0
    %657 = vmatpush1.msra.mxu0 0.0
    %658 = vmatprep.subr.mxu0 0.0
    %659 = vmatpush1.msra.mxu0 0.0
    %660 = vmatprep.subr.mxu0 0.0
    %661 = vmatpush1.msra.mxu0 0.0
    %662 = vmatprep.subr.mxu0 0.0
    %663 = vmatpush1.msra.mxu0 0.0
    %664 = vmatprep.subr.mxu0 0.0
    %665 = vmatpush1.msra.mxu0 0.0
    %666 = vmatprep.subr.mxu0 0.0
    %667 = vmatpush1.msra.mxu0 0.0
    %668 = vmatprep.subr.mxu0 0.0
    %669 = vmatpush1.msra.mxu0 0.0
    %670 = vmatprep.subr.mxu0 0.0
    %671 = vmatpush1.msra.mxu0 0.0
    %672 = vmatprep.subr.mxu0 0.0
    %673 = vmatpush1.msra.mxu0 0.0
    %674 = vmatprep.subr.mxu0 0.0
    %675 = vmatpush1.msra.mxu0 0.0
    %676 = vmatprep.subr.mxu0 0.0
    %677 = vmatpush1.msra.mxu0 0.0
    %678 = vmatprep.subr.mxu0 0.0
    %679 = vmatpush1.msra.mxu0 0.0
    %680 = vmatprep.subr.mxu0 0.0
    %681 = vmatpush1.msra.mxu0 0.0
    %682 = vmatprep.subr.mxu0 0.0
    %683 = vmatpush1.msra.mxu0 0.0
    %684 = vmatprep.mubr.f32.mxu0 0.0
    %685 = vmatmul.mubr.f32.gmra.mrb[0].mxu0 %v615
    %v686 = vpop.f32.mrb[0].mxu0
    %v687 = vadd.f32 0.0, %v686
    %v688 = vpop.f32.mrb[0].mxu0
    %689 = vmatprep.mubr.f32.mxu0 0.0
    %690 = vmatmul.mubr.f32.gmra.mrb[0].mxu0 %v618
    %v691 = vpop.f32.mrb[0].mxu0
    %v692 = vadd.f32 0.0, %v691
    %v693 = vpop.f32.mrb[0].mxu0
    %694 = vdwg.mxu0
    %697 = vrot.lane.b32.xlu0 %v687, 16
    %v698 = vpop.permute.xlu0 %697
    %699 = vrot.lane.b32.xlu0 %v692, 16
    %v700 = vpop.permute.xlu0 %699
    %v703 = vsel %vm302, %v487, %v698
    %v704 = vsel %vm302, %v492, %v700
    %707 = vrot.lane.b32.xlu0 %v288, 96
    %v708 = vpop.permute.xlu0 %707
    %709 = vrot.lane.b32.xlu0 %v293, 96
    %v710 = vpop.permute.xlu0 %709
    %v711 = vsel %vm302, %v288, 0
    %v713 = vsel %vm302, %v293, 0
    %v715 = vsel %vm302, %v708, 0
    %v717 = vsel %vm302, %v710, 0
    %719 = vmatprep.subr.mxu0 0.0
    %720 = vmatpush1.xpose.msra.mxu0 %v715
    %721 = vmatprep.subr.mxu0 0.0
    %722 = vmatpush1.xpose.msra.mxu0 %v717
    %723 = vmatprep.subr.mxu0 0.0
    %724 = vmatpush1.xpose.msra.mxu0 0.0
    %725 = vmatprep.subr.mxu0 0.0
    %726 = vmatpush1.xpose.msra.mxu0 0.0
    %727 = vmatprep.subr.mxu0 0.0
    %728 = vmatpush1.xpose.msra.mxu0 0.0
    %729 = vmatprep.subr.mxu0 0.0
    %730 = vmatpush1.xpose.msra.mxu0 0.0
    %731 = vmatprep.subr.mxu0 0.0
    %732 = vmatpush1.xpose.msra.mxu0 0.0
    %733 = vmatprep.subr.mxu0 0.0
    %734 = vmatpush1.xpose.msra.mxu0 0.0
    %735 = vmatprep.subr.mxu0 0.0
    %736 = vmatpush1.xpose.msra.mxu0 0.0
    %737 = vmatprep.subr.mxu0 0.0
    %738 = vmatpush1.xpose.msra.mxu0 0.0
    %739 = vmatprep.subr.mxu0 0.0
    %740 = vmatpush1.xpose.msra.mxu0 0.0
    %741 = vmatprep.subr.mxu0 0.0
    %742 = vmatpush1.xpose.msra.mxu0 0.0
    %743 = vmatprep.subr.mxu0 0.0
    %744 = vmatpush1.xpose.msra.mxu0 0.0
    %745 = vmatprep.subr.mxu0 0.0
    %746 = vmatpush1.xpose.msra.mxu0 0.0
    %747 = vmatprep.subr.mxu0 0.0
    %748 = vmatpush1.xpose.msra.mxu0 0.0
    %749 = vmatprep.subr.mxu0 0.0
    %750 = vmatpush1.xpose.msra.mxu0 0.0
    %751 = vmatprep.subr.mxu0 0.0
    %752 = vmatpush1.xpose.msra.mxu0 0.0
    %753 = vmatprep.subr.mxu0 0.0
    %754 = vmatpush1.xpose.msra.mxu0 0.0
    %755 = vmatprep.subr.mxu0 0.0
    %756 = vmatpush1.xpose.msra.mxu0 0.0
    %757 = vmatprep.subr.mxu0 0.0
    %758 = vmatpush1.xpose.msra.mxu0 0.0
    %759 = vmatprep.subr.mxu0 0.0
    %760 = vmatpush1.xpose.msra.mxu0 0.0
    %761 = vmatprep.subr.mxu0 0.0
    %762 = vmatpush1.xpose.msra.mxu0 0.0
    %763 = vmatprep.subr.mxu0 0.0
    %764 = vmatpush1.xpose.msra.mxu0 0.0
    %765 = vmatprep.subr.mxu0 0.0
    %766 = vmatpush1.xpose.msra.mxu0 0.0
    %767 = vmatprep.subr.mxu0 0.0
    %768 = vmatpush1.xpose.msra.mxu0 0.0
    %769 = vmatprep.subr.mxu0 0.0
    %770 = vmatpush1.xpose.msra.mxu0 0.0
    %771 = vmatprep.subr.mxu0 0.0
    %772 = vmatpush1.xpose.msra.mxu0 0.0
    %773 = vmatprep.subr.mxu0 0.0
    %774 = vmatpush1.xpose.msra.mxu0 0.0
    %775 = vmatprep.subr.mxu0 0.0
    %776 = vmatpush1.xpose.msra.mxu0 0.0
    %777 = vmatprep.subr.mxu0 0.0
    %778 = vmatpush1.xpose.msra.mxu0 0.0
    %779 = vmatprep.subr.mxu0 0.0
    %780 = vmatpush1.xpose.msra.mxu0 0.0
    %781 = vmatprep.subr.mxu0 0.0
    %782 = vmatpush1.xpose.msra.mxu0 0.0
    %783 = vmatprep.mubr.f32.mxu0 0.0
    %784 = vmatmul.mubr.f32.gmra.mrb[0].mxu0 %v711
    %v785 = vpop.f32.mrb[0].mxu0
    %v786 = vadd.f32 0.0, %v785
    %v787 = vpop.f32.mrb[0].mxu0
    %788 = vmatprep.mubr.f32.mxu0 0.0
    %789 = vmatmul.mubr.f32.gmra.mrb[0].mxu0 %v713
    %v790 = vpop.f32.mrb[0].mxu0
    %v791 = vadd.f32 0.0, %v790
    %v792 = vpop.f32.mrb[0].mxu0
    %793 = vdwg.mxu0
    %v794 = vsel %vm302, %v786, -inf
    %795 = vmax.xlane.f32.xlu0 %v794
    %v796 = vpop.xlane.xlu0 %795
    %v797 = vsel %vm302, %v791, -inf
    %798 = vmax.xlane.f32.xlu0 %v797
    %v799 = vpop.xlane.xlu0 %798
    %v800 = vsub.f32 %v786, %v796
    %v801 = vsub.f32 %v791, %v799
    %v802 = vmul.f32 %v800, 1.442695
    %v803 = vpow.pop %v802
    %v804 = vmul.f32 %v801, 1.442695
    %v805 = vpow.pop %v804
    %v806 = vsel %vm302, %v803, 0.0
    %807 = vadd.xlane.f32.xlu0 %v806
    %v808 = vpop.xlane.xlu0 %807
    %v809 = vsel %vm302, %v805, 0.0
    %810 = vadd.xlane.f32.xlu0 %v809
    %v811 = vpop.xlane.xlu0 %810
    %v812 = vrcp.pop %v808
    %v813 = vrcp.pop %v811
    %v814 = vmul.f32 %v803, %v812
    %v815 = vmul.f32 %v805, %v813
    %816 = vrot.lane.b32.xlu0 %v288, 64
    %v817 = vpop.permute.xlu0 %816
    %818 = vrot.lane.b32.xlu0 %v293, 64
    %v819 = vpop.permute.xlu0 %818
    %v823 = vsel %vm302, %v814, 0
    %v826 = vsel %vm302, %v815, 0
    %828 = vmatprep.subr.mxu0 0.0
    %829 = vmatpush1.msra.mxu0 %v817
    %830 = vmatprep.subr.mxu0 0.0
    %831 = vmatpush1.msra.mxu0 %v819
    %832 = vmatprep.subr.mxu0 0.0
    %833 = vmatpush1.msra.mxu0 0.0
    %834 = vmatprep.subr.mxu0 0.0
    %835 = vmatpush1.msra.mxu0 0.0
    %836 = vmatprep.subr.mxu0 0.0
    %837 = vmatpush1.msra.mxu0 0.0
    %838 = vmatprep.subr.mxu0 0.0
    %839 = vmatpush1.msra.mxu0 0.0
    %840 = vmatprep.subr.mxu0 0.0
    %841 = vmatpush1.msra.mxu0 0.0
    %842 = vmatprep.subr.mxu0 0.0
    %843 = vmatpush1.msra.mxu0 0.0
    %844 = vmatprep.subr.mxu0 0.0
    %845 = vmatpush1.msra.mxu0 0.0
    %846 = vmatprep.subr.mxu0 0.0
    %847 = vmatpush1.msra.mxu0 0.0
    %848 = vmatprep.subr.mxu0 0.0
    %849 = vmatpush1.msra.mxu0 0.0
    %850 = vmatprep.subr.mxu0 0.0
    %851 = vmatpush1.msra.mxu0 0.0
    %852 = vmatprep.subr.mxu0 0.0
    %853 = vmatpush1.msra.mxu0 0.0
    %854 = vmatprep.subr.mxu0 0.0
    %855 = vmatpush1.msra.mxu0 0.0
    %856 = vmatprep.subr.mxu0 0.0
    %857 = vmatpush1.msra.mxu0 0.0
    %858 = vmatprep.subr.mxu0 0.0
    %859 = vmatpush1.msra.mxu0 0.0
    %860 = vmatprep.subr.mxu0 0.0
    %861 = vmatpush1.msra.mxu0 0.0
    %862 = vmatprep.subr.mxu0 0.0
    %863 = vmatpush1.msra.mxu0 0.0
    %864 = vmatprep.subr.mxu0 0.0
    %865 = vmatpush1.msra.mxu0 0.0
    %866 = vmatprep.subr.mxu0 0.0
    %867 = vmatpush1.msra.mxu0 0.0
    %868 = vmatprep.subr.mxu0 0.0
    %869 = vmatpush1.msra.mxu0 0.0
    %870 = vmatprep.subr.mxu0 0.0
    %871 = vmatpush1.msra.mxu0 0.0
    %872 = vmatprep.subr.mxu0 0.0
    %873 = vmatpush1.msra.mxu0 0.0
    %874 = vmatprep.subr.mxu0 0.0
    %875 = vmatpush1.msra.mxu0 0.0
    %876 = vmatprep.subr.mxu0 0.0
    %877 = vmatpush1.msra.mxu0 0.0
    %878 = vmatprep.subr.mxu0 0.0
    %879 = vmatpush1.msra.mxu0 0.0
    %880 = vmatprep.subr.mxu0 0.0
    %881 = vmatpush1.msra.mxu0 0.0
    %882 = vmatprep.subr.mxu0 0.0
    %883 = vmatpush1.msra.mxu0 0.0
    %884 = vmatprep.subr.mxu0 0.0
    %885 = vmatpush1.msra.mxu0 0.0
    %886 = vmatprep.subr.mxu0 0.0
    %887 = vmatpush1.msra.mxu0 0.0
    %888 = vmatprep.subr.mxu0 0.0
    %889 = vmatpush1.msra.mxu0 0.0
    %890 = vmatprep.subr.mxu0 0.0
    %891 = vmatpush1.msra.mxu0 0.0
    %892 = vmatprep.mubr.f32.mxu0 0.0
    %893 = vmatmul.mubr.f32.gmra.mrb[0].mxu0 %v823
    %v894 = vpop.f32.mrb[0].mxu0
    %v895 = vadd.f32 0.0, %v894
    %v896 = vpop.f32.mrb[0].mxu0
    %897 = vmatprep.mubr.f32.mxu0 0.0
    %898 = vmatmul.mubr.f32.gmra.mrb[0].mxu0 %v826
    %v899 = vpop.f32.mrb[0].mxu0
    %v900 = vadd.f32 0.0, %v899
    %v901 = vpop.f32.mrb[0].mxu0
    %902 = vdwg.mxu0
    %903 = vrot.lane.b32.xlu0 %v288, 112
    %v904 = vpop.permute.xlu0 %903
    %905 = vrot.lane.b32.xlu0 %v293, 112
    %v906 = vpop.permute.xlu0 %905
    %907 = vrot.lane.b32.xlu0 %v288, 80
    %v908 = vpop.permute.xlu0 %907
    %909 = vrot.lane.b32.xlu0 %v293, 80
    %v910 = vpop.permute.xlu0 %909
    %v911 = vsel %vm302, %v904, 0
    %v913 = vsel %vm302, %v906, 0
    %v915 = vsel %vm302, %v908, 0
    %v917 = vsel %vm302, %v910, 0
    %919 = vmatprep.subr.mxu0 0.0
    %920 = vmatpush1.xpose.msra.mxu0 %v915
    %921 = vmatprep.subr.mxu0 0.0
    %922 = vmatpush1.xpose.msra.mxu0 %v917
    %923 = vmatprep.subr.mxu0 0.0
    %924 = vmatpush1.xpose.msra.mxu0 0.0
    %925 = vmatprep.subr.mxu0 0.0
    %926 = vmatpush1.xpose.msra.mxu0 0.0
    %927 = vmatprep.subr.mxu0 0.0
    %928 = vmatpush1.xpose.msra.mxu0 0.0
    %929 = vmatprep.subr.mxu0 0.0
    %930 = vmatpush1.xpose.msra.mxu0 0.0
    %931 = vmatprep.subr.mxu0 0.0
    %932 = vmatpush1.xpose.msra.mxu0 0.0
    %933 = vmatprep.subr.mxu0 0.0
    %934 = vmatpush1.xpose.msra.mxu0 0.0
    %935 = vmatprep.subr.mxu0 0.0
    %936 = vmatpush1.xpose.msra.mxu0 0.0
    %937 = vmatprep.subr.mxu0 0.0
    %938 = vmatpush1.xpose.msra.mxu0 0.0
    %939 = vmatprep.subr.mxu0 0.0
    %940 = vmatpush1.xpose.msra.mxu0 0.0
    %941 = vmatprep.subr.mxu0 0.0
    %942 = vmatpush1.xpose.msra.mxu0 0.0
    %943 = vmatprep.subr.mxu0 0.0
    %944 = vmatpush1.xpose.msra.mxu0 0.0
    %945 = vmatprep.subr.mxu0 0.0
    %946 = vmatpush1.xpose.msra.mxu0 0.0
    %947 = vmatprep.subr.mxu0 0.0
    %948 = vmatpush1.xpose.msra.mxu0 0.0
    %949 = vmatprep.subr.mxu0 0.0
    %950 = vmatpush1.xpose.msra.mxu0 0.0
    %951 = vmatprep.subr.mxu0 0.0
    %952 = vmatpush1.xpose.msra.mxu0 0.0
    %953 = vmatprep.subr.mxu0 0.0
    %954 = vmatpush1.xpose.msra.mxu0 0.0
    %955 = vmatprep.subr.mxu0 0.0
    %956 = vmatpush1.xpose.msra.mxu0 0.0
    %957 = vmatprep.subr.mxu0 0.0
    %958 = vmatpush1.xpose.msra.mxu0 0.0
    %959 = vmatprep.subr.mxu0 0.0
    %960 = vmatpush1.xpose.msra.mxu0 0.0
    %961 = vmatprep.subr.mxu0 0.0
    %962 = vmatpush1.xpose.msra.mxu0 0.0
    %963 = vmatprep.subr.mxu0 0.0
    %964 = vmatpush1.xpose.msra.mxu0 0.0
    %965 = vmatprep.subr.mxu0 0.0
    %966 = vmatpush1.xpose.msra.mxu0 0.0
    %967 = vmatprep.subr.mxu0 0.0
    %968 = vmatpush1.xpose.msra.mxu0 0.0
    %969 = vmatprep.subr.mxu0 0.0
    %970 = vmatpush1.xpose.msra.mxu0 0.0
    %971 = vmatprep.subr.mxu0 0.0
    %972 = vmatpush1.xpose.msra.mxu0 0.0
    %973 = vmatprep.subr.mxu0 0.0
    %974 = vmatpush1.xpose.msra.mxu0 0.0
    %975 = vmatprep.subr.mxu0 0.0
    %976 = vmatpush1.xpose.msra.mxu0 0.0
    %977 = vmatprep.subr.mxu0 0.0
    %978 = vmatpush1.xpose.msra.mxu0 0.0
    %979 = vmatprep.subr.mxu0 0.0
    %980 = vmatpush1.xpose.msra.mxu0 0.0
    %981 = vmatprep.subr.mxu0 0.0
    %982 = vmatpush1.xpose.msra.mxu0 0.0
    %983 = vmatprep.mubr.f32.mxu0 0.0
    %984 = vmatmul.mubr.f32.gmra.mrb[0].mxu0 %v911
    %v985 = vpop.f32.mrb[0].mxu0
    %v986 = vadd.f32 0.0, %v985
    %v987 = vpop.f32.mrb[0].mxu0
    %988 = vmatprep.mubr.f32.mxu0 0.0
    %989 = vmatmul.mubr.f32.gmra.mrb[0].mxu0 %v913
    %v990 = vpop.f32.mrb[0].mxu0
    %v991 = vadd.f32 0.0, %v990
    %v992 = vpop.f32.mrb[0].mxu0
    %993 = vdwg.mxu0
    %v994 = vsel %vm302, %v986, -inf
    %995 = vmax.xlane.f32.xlu0 %v994
    %v996 = vpop.xlane.xlu0 %995
    %v997 = vsel %vm302, %v991, -inf
    %998 = vmax.xlane.f32.xlu0 %v997
    %v999 = vpop.xlane.xlu0 %998
    %v1000 = vsub.f32 %v986, %v996
    %v1001 = vsub.f32 %v991, %v999
    %v1002 = vmul.f32 %v1000, 1.442695
    %v1003 = vpow.pop %v1002
    %v1004 = vmul.f32 %v1001, 1.442695
    %v1005 = vpow.pop %v1004
    %v1006 = vsel %vm302, %v1003, 0.0
    %1007 = vadd.xlane.f32.xlu0 %v1006
    %v1008 = vpop.xlane.xlu0 %1007
    %v1009 = vsel %vm302, %v1005, 0.0
    %1010 = vadd.xlane.f32.xlu0 %v1009
    %v1011 = vpop.xlane.xlu0 %1010
    %v1012 = vrcp.pop %v1008
    %v1013 = vrcp.pop %v1011
    %v1014 = vmul.f32 %v1003, %v1012
    %v1015 = vmul.f32 %v1005, %v1013
    %1016 = vrot.lane.b32.xlu0 %v288, 48
    %v1017 = vpop.permute.xlu0 %1016
    %1018 = vrot.lane.b32.xlu0 %v293, 48
    %v1019 = vpop.permute.xlu0 %1018
    %v1023 = vsel %vm302, %v1014, 0
    %v1026 = vsel %vm302, %v1015, 0
    %1028 = vmatprep.subr.mxu0 0.0
    %1029 = vmatpush1.msra.mxu0 %v1017
    %1030 = vmatprep.subr.mxu0 0.0
    %1031 = vmatpush1.msra.mxu0 %v1019
    %1032 = vmatprep.subr.mxu0 0.0
    %1033 = vmatpush1.msra.mxu0 0.0
    %1034 = vmatprep.subr.mxu0 0.0
    %1035 = vmatpush1.msra.mxu0 0.0
    %1036 = vmatprep.subr.mxu0 0.0
    %1037 = vmatpush1.msra.mxu0 0.0
    %1038 = vmatprep.subr.mxu0 0.0
    %1039 = vmatpush1.msra.mxu0 0.0
    %1040 = vmatprep.subr.mxu0 0.0
    %1041 = vmatpush1.msra.mxu0 0.0
    %1042 = vmatprep.subr.mxu0 0.0
    %1043 = vmatpush1.msra.mxu0 0.0
    %1044 = vmatprep.subr.mxu0 0.0
    %1045 = vmatpush1.msra.mxu0 0.0
    %1046 = vmatprep.subr.mxu0 0.0
    %1047 = vmatpush1.msra.mxu0 0.0
    %1048 = vmatprep.subr.mxu0 0.0
    %1049 = vmatpush1.msra.mxu0 0.0
    %1050 = vmatprep.subr.mxu0 0.0
    %1051 = vmatpush1.msra.mxu0 0.0
    %1052 = vmatprep.subr.mxu0 0.0
    %1053 = vmatpush1.msra.mxu0 0.0
    %1054 = vmatprep.subr.mxu0 0.0
    %1055 = vmatpush1.msra.mxu0 0.0
    %1056 = vmatprep.subr.mxu0 0.0
    %1057 = vmatpush1.msra.mxu0 0.0
    %1058 = vmatprep.subr.mxu0 0.0
    %1059 = vmatpush1.msra.mxu0 0.0
    %1060 = vmatprep.subr.mxu0 0.0
    %1061 = vmatpush1.msra.mxu0 0.0
    %1062 = vmatprep.subr.mxu0 0.0
    %1063 = vmatpush1.msra.mxu0 0.0
    %1064 = vmatprep.subr.mxu0 0.0
    %1065 = vmatpush1.msra.mxu0 0.0
    %1066 = vmatprep.subr.mxu0 0.0
    %1067 = vmatpush1.msra.mxu0 0.0
    %1068 = vmatprep.subr.mxu0 0.0
    %1069 = vmatpush1.msra.mxu0 0.0
    %1070 = vmatprep.subr.mxu0 0.0
    %1071 = vmatpush1.msra.mxu0 0.0
    %1072 = vmatprep.subr.mxu0 0.0
    %1073 = vmatpush1.msra.mxu0 0.0
    %1074 = vmatprep.subr.mxu0 0.0
    %1075 = vmatpush1.msra.mxu0 0.0
    %1076 = vmatprep.subr.mxu0 0.0
    %1077 = vmatpush1.msra.mxu0 0.0
    %1078 = vmatprep.subr.mxu0 0.0
    %1079 = vmatpush1.msra.mxu0 0.0
    %1080 = vmatprep.subr.mxu0 0.0
    %1081 = vmatpush1.msra.mxu0 0.0
    %1082 = vmatprep.subr.mxu0 0.0
    %1083 = vmatpush1.msra.mxu0 0.0
    %1084 = vmatprep.subr.mxu0 0.0
    %1085 = vmatpush1.msra.mxu0 0.0
    %1086 = vmatprep.subr.mxu0 0.0
    %1087 = vmatpush1.msra.mxu0 0.0
    %1088 = vmatprep.subr.mxu0 0.0
    %1089 = vmatpush1.msra.mxu0 0.0
    %1090 = vmatprep.subr.mxu0 0.0
    %1091 = vmatpush1.msra.mxu0 0.0
    %1092 = vmatprep.mubr.f32.mxu0 0.0
    %1093 = vmatmul.mubr.f32.gmra.mrb[0].mxu0 %v1023
    %v1094 = vpop.f32.mrb[0].mxu0
    %v1095 = vadd.f32 0.0, %v1094
    %v1096 = vpop.f32.mrb[0].mxu0
    %1097 = vmatprep.mubr.f32.mxu0 0.0
    %1098 = vmatmul.mubr.f32.gmra.mrb[0].mxu0 %v1026
    %v1099 = vpop.f32.mrb[0].mxu0
    %v1100 = vadd.f32 0.0, %v1099
    %v1101 = vpop.f32.mrb[0].mxu0
    %1102 = vdwg.mxu0
    %1105 = vrot.lane.b32.xlu0 %v1095, 16
    %v1106 = vpop.permute.xlu0 %1105
    %1107 = vrot.lane.b32.xlu0 %v1100, 16
    %v1108 = vpop.permute.xlu0 %1107
    %v1111 = vsel %vm302, %v895, %v1106
    %v1112 = vsel %vm302, %v900, %v1108
    %v1113 = vld [vmem:[%s7] sm:$0xff]
    %v1114 = vld [vmem:[%s7 + $0x8] sm:$0xff]
    %v1115 = vld [vmem:[%s7 + $0x10] sm:$0xff]
    %v1116 = vld [vmem:[%s7 + $0x18] sm:$0xff]
    %v1117 = vld [vmem:[%s8] sm:$0x1]
    %v1119 = vlaneseq
    %v1120 = vshrl.u32 %v1119, 7
    %v1121 = vsub.s32 0, %v1120
    %v1122 = vrot.slane %v1117, %v1121
    %v1125 = vsel %vm114, %v703, 0
    %v1128 = vsel %vm114, %v704, 0
    %v1131 = vsel %vm114, %v1111, 0
    %v1134 = vsel %vm114, %v1112, 0
    %1136 = vmatprep.subr.mxu0 0.0
    %1137 = vmatpush1.msra.mxu0 %v1113
    %1138 = vmatprep.subr.mxu0 0.0
    %1139 = vmatpush1.msra.mxu0 %v1114
    %1140 = vmatprep.subr.mxu0 0.0
    %1141 = vmatpush1.msra.mxu0 %v1115
    %1142 = vmatprep.subr.mxu0 0.0
    %1143 = vmatpush1.msra.mxu0 %v1116
    %1144 = vmatprep.subr.mxu0 0.0
    %1145 = vmatpush1.msra.mxu0 0.0
    %1146 = vmatprep.subr.mxu0 0.0
    %1147 = vmatpush1.msra.mxu0 0.0
    %1148 = vmatprep.subr.mxu0 0.0
    %1149 = vmatpush1.msra.mxu0 0.0
    %1150 = vmatprep.subr.mxu0 0.0
    %1151 = vmatpush1.msra.mxu0 0.0
    %1152 = vmatprep.subr.mxu0 0.0
    %1153 = vmatpush1.msra.mxu0 0.0
    %1154 = vmatprep.subr.mxu0 0.0
    %1155 = vmatpush1.msra.mxu0 0.0
    %1156 = vmatprep.subr.mxu0 0.0
    %1157 = vmatpush1.msra.mxu0 0.0
    %1158 = vmatprep.subr.mxu0 0.0
    %1159 = vmatpush1.msra.mxu0 0.0
    %1160 = vmatprep.subr.mxu0 0.0
    %1161 = vmatpush1.msra.mxu0 0.0
    %1162 = vmatprep.subr.mxu0 0.0
    %1163 = vmatpush1.msra.mxu0 0.0
    %1164 = vmatprep.subr.mxu0 0.0
    %1165 = vmatpush1.msra.mxu0 0.0
    %1166 = vmatprep.subr.mxu0 0.0
    %1167 = vmatpush1.msra.mxu0 0.0
    %1168 = vmatprep.subr.mxu0 0.0
    %1169 = vmatpush1.msra.mxu0 0.0
    %1170 = vmatprep.subr.mxu0 0.0
    %1171 = vmatpush1.msra.mxu0 0.0
    %1172 = vmatprep.subr.mxu0 0.0
    %1173 = vmatpush1.msra.mxu0 0.0
    %1174 = vmatprep.subr.mxu0 0.0
    %1175 = vmatpush1.msra.mxu0 0.0
    %1176 = vmatprep.subr.mxu0 0.0
    %1177 = vmatpush1.msra.mxu0 0.0
    %1178 = vmatprep.subr.mxu0 0.0
    %1179 = vmatpush1.msra.mxu0 0.0
    %1180 = vmatprep.subr.mxu0 0.0
    %1181 = vmatpush1.msra.mxu0 0.0
    %1182 = vmatprep.subr.mxu0 0.0
    %1183 = vmatpush1.msra.mxu0 0.0
    %1184 = vmatprep.subr.mxu0 0.0
    %1185 = vmatpush1.msra.mxu0 0.0
    %1186 = vmatprep.subr.mxu0 0.0
    %1187 = vmatpush1.msra.mxu0 0.0
    %1188 = vmatprep.subr.mxu0 0.0
    %1189 = vmatpush1.msra.mxu0 0.0
    %1190 = vmatprep.subr.mxu0 0.0
    %1191 = vmatpush1.msra.mxu0 0.0
    %1192 = vmatprep.subr.mxu0 0.0
    %1193 = vmatpush1.msra.mxu0 0.0
    %1194 = vmatprep.subr.mxu0 0.0
    %1195 = vmatpush1.msra.mxu0 0.0
    %1196 = vmatprep.subr.mxu0 0.0
    %1197 = vmatpush1.msra.mxu0 0.0
    %1198 = vmatprep.subr.mxu0 0.0
    %1199 = vmatpush1.msra.mxu0 0.0
    %1200 = vmatprep.mubr.f32.mxu0 0.0
    %1201 = vmatmul.mubr.f32.gmra.mrb[0].mxu0 %v1125
    %v1202 = vpop.f32.mrb[0].mxu0
    %v1203 = vadd.f32 %v1122, %v1202
    %v1204 = vpop.f32.mrb[0].mxu0
    %1205 = vmatprep.mubr.f32.mxu0 0.0
    %1206 = vmatmul.mubr.f32.gmra.mrb[0].mxu0 %v1128
    %v1207 = vpop.f32.mrb[0].mxu0
    %v1208 = vadd.f32 %v1122, %v1207
    %v1209 = vpop.f32.mrb[0].mxu0
    %1210 = vmatprep.mubr.f32.mxu0 0.0
    %1211 = vmatmul.mubr.f32.gmra.mrb[0].mxu0 %v1131
    %v1212 = vpop.f32.mrb[0].mxu0
    %v1213 = vadd.f32 %v1122, %v1212
    %v1214 = vpop.f32.mrb[0].mxu0
    %1215 = vmatprep.mubr.f32.mxu0 0.0
    %1216 = vmatmul.mubr.f32.gmra.mrb[0].mxu0 %v1134
    %v1217 = vpop.f32.mrb[0].mxu0
    %v1218 = vadd.f32 %v1122, %v1217
    %v1219 = vpop.f32.mrb[0].mxu0
    %1220 = vdwg.mxu0
    %v1221 = vadd.f32 %v184, %v1203
    %v1222 = vadd.f32 %v185, %v1208
    %v1223 = vadd.f32 %v186, %v1213
    %v1224 = vadd.f32 %v187, %v1218
    %v1225 = vld [vmem:[%s9] sm:$0x1]
    %v1226 = vld [vmem:[%s10] sm:$0x1]
    %v1227 = vsel %vm114, %v1221, 0.0
    %1228 = vadd.xlane.f32.xlu0 %v1227
    %v1229 = vpop.xlane.xlu0 %1228
    %v1230 = vsel %vm114, %v1222, 0.0
    %1231 = vadd.xlane.f32.xlu0 %v1230
    %v1232 = vpop.xlane.xlu0 %1231
    %v1233 = vsel %vm114, %v1223, 0.0
    %1234 = vadd.xlane.f32.xlu0 %v1233
    %v1235 = vpop.xlane.xlu0 %1234
    %v1236 = vsel %vm114, %v1224, 0.0
    %1237 = vadd.xlane.f32.xlu0 %v1236
    %v1238 = vpop.xlane.xlu0 %1237
    %v1239 = vmul.f32 %v1229, %v127
    %v1240 = vmul.f32 %v1232, %v127
    %v1241 = vmul.f32 %v1235, %v127
    %v1242 = vmul.f32 %v1238, %v127
    %v1243 = vsub.f32 %v1221, %v1239
    %v1244 = vsub.f32 %v1222, %v1240
    %v1245 = vsub.f32 %v1223, %v1241
    %v1246 = vsub.f32 %v1224, %v1242
    %v1247 = vmul.f32 %v1243, %v1243
    %v1248 = vmul.f32 %v1244, %v1244
    %v1249 = vmul.f32 %v1245, %v1245
    %v1250 = vmul.f32 %v1246, %v1246
    %v1251 = vsel %vm114, %v1247, 0.0
    %1252 = vadd.xlane.f32.xlu0 %v1251
    %v1253 = vpop.xlane.xlu0 %1252
    %v1254 = vsel %vm114, %v1248, 0.0
    %1255 = vadd.xlane.f32.xlu0 %v1254
    %v1256 = vpop.xlane.xlu0 %1255
    %v1257 = vsel %vm114, %v1249, 0.0
    %1258 = vadd.xlane.f32.xlu0 %v1257
    %v1259 = vpop.xlane.xlu0 %1258
    %v1260 = vsel %vm114, %v1250, 0.0
    %1261 = vadd.xlane.f32.xlu0 %v1260
    %v1262 = vpop.xlane.xlu0 %1261
    %v1263 = vmul.f32 %v1253, %v127
    %v1264 = vmul.f32 %v1256, %v127
    %v1265 = vmul.f32 %v1259, %v127
    %v1266 = vmul.f32 %v1262, %v127
    %v1267 = vadd.f32 %v1263, 1e-05
    %v1268 = vadd.f32 %v1264, 1e-05
    %v1269 = vadd.f32 %v1265, 1e-05
    %v1270 = vadd.f32 %v1266, 1e-05
    %v1271 = vrsqrt.pop %v1267
    %v1272 = vrsqrt.pop %v1268
    %v1273 = vrsqrt.pop %v1269
    %v1274 = vrsqrt.pop %v1270
    %v1275 = vmul.f32 %v1243, %v1271
    %v1276 = vmul.f32 %v1244, %v1272
    %v1277 = vmul.f32 %v1245, %v1273
    %v1278 = vmul.f32 %v1246, %v1274
    %v1280 = vlaneseq
    %v1281 = vshrl.u32 %v1280, 7
    %v1282 = vsub.s32 0, %v1281
    %v1283 = vrot.slane %v1225, %v1282
    %v1285 = vmul.f32 %v1275, %v1283
    %v1286 = vmul.f32 %v1276, %v1283
    %v1287 = vmul.f32 %v1277, %v1283
    %v1288 = vmul.f32 %v1278, %v1283
    %v1290 = vlaneseq
    %v1291 = vshrl.u32 %v1290, 7
    %v1292 = vsub.s32 0, %v1291
    %v1293 = vrot.slane %v1226, %v1292
    %v1295 = vadd.f32 %v1285, %v1293
    %v1296 = vadd.f32 %v1286, %v1293
    %v1297 = vadd.f32 %v1287, %v1293
    %v1298 = vadd.f32 %v1288, %v1293
    %v1299 = vld [vmem:[%s11] sm:$0xff]
    %v1300 = vld [vmem:[%s11 + $0x8] sm:$0xff]
    %v1301 = vld [vmem:[%s11 + $0x10] sm:$0xff]
    %v1302 = vld [vmem:[%s11 + $0x18] sm:$0xff]
    %v1303 = vld [vmem:[%s12] sm:$0x1]
    %v1305 = vlaneseq
    %v1306 = vshrl.u32 %v1305, 7
    %v1307 = vsub.s32 0, %v1306
    %v1308 = vrot.slane %v1303, %v1307
    %v1311 = vsel %vm114, %v1295, 0
    %v1314 = vsel %vm114, %v1296, 0
    %v1317 = vsel %vm114, %v1297, 0
    %v1320 = vsel %vm114, %v1298, 0
    %1322 = vmatprep.subr.mxu0 0.0
    %1323 = vmatpush1.msra.mxu0 %v1299
    %1324 = vmatprep.subr.mxu0 0.0
    %1325 = vmatpush1.msra.mxu0 %v1300
    %1326 = vmatprep.subr.mxu0 0.0
    %1327 = vmatpush1.msra.mxu0 %v1301
    %1328 = vmatprep.subr.mxu0 0.0
    %1329 = vmatpush1.msra.mxu0 %v1302
    %1330 = vmatprep.subr.mxu0 0.0
    %1331 = vmatpush1.msra.mxu0 0.0
    %1332 = vmatprep.subr.mxu0 0.0
    %1333 = vmatpush1.msra.mxu0 0.0
    %1334 = vmatprep.subr.mxu0 0.0
    %1335 = vmatpush1.msra.mxu0 0.0
    %1336 = vmatprep.subr.mxu0 0.0
    %1337 = vmatpush1.msra.mxu0 0.0
    %1338 = vmatprep.subr.mxu0 0.0
    %1339 = vmatpush1.msra.mxu0 0.0
    %1340 = vmatprep.subr.mxu0 0.0
    %1341 = vmatpush1.msra.mxu0 0.0
    %1342 = vmatprep.subr.mxu0 0.0
    %1343 = vmatpush1.msra.mxu0 0.0
    %1344 = vmatprep.subr.mxu0 0.0
    %1345 = vmatpush1.msra.mxu0 0.0
    %1346 = vmatprep.subr.mxu0 0.0
    %1347 = vmatpush1.msra.mxu0 0.0
    %1348 = vmatprep.subr.mxu0 0.0
    %1349 = vmatpush1.msra.mxu0 0.0
    %1350 = vmatprep.subr.mxu0 0.0
    %1351 = vmatpush1.msra.mxu0 0.0
    %1352 = vmatprep.subr.mxu0 0.0
    %1353 = vmatpush1.msra.mxu0 0.0
    %1354 = vmatprep.subr.mxu0 0.0
    %1355 = vmatpush1.msra.mxu0 0.0
    %1356 = vmatprep.subr.mxu0 0.0
    %1357 = vmatpush1.msra.mxu0 0.0
    %1358 = vmatprep.subr.mxu0 0.0
    %1359 = vmatpush1.msra.mxu0 0.0
    %1360 = vmatprep.subr.mxu0 0.0
    %1361 = vmatpush1.msra.mxu0 0.0
    %1362 = vmatprep.subr.mxu0 0.0
    %1363 = vmatpush1.msra.mxu0 0.0
    %1364 = vmatprep.subr.mxu0 0.0
    %1365 = vmatpush1.msra.mxu0 0.0
    %1366 = vmatprep.subr.mxu0 0.0
    %1367 = vmatpush1.msra.mxu0 0.0
    %1368 = vmatprep.subr.mxu0 0.0
    %1369 = vmatpush1.msra.mxu0 0.0
    %1370 = vmatprep.subr.mxu0 0.0
    %1371 = vmatpush1.msra.mxu0 0.0
    %1372 = vmatprep.subr.mxu0 0.0
    %1373 = vmatpush1.msra.mxu0 0.0
    %1374 = vmatprep.subr.mxu0 0.0
    %1375 = vmatpush1.msra.mxu0 0.0
    %1376 = vmatprep.subr.mxu0 0.0
    %1377 = vmatpush1.msra.mxu0 0.0
    %1378 = vmatprep.subr.mxu0 0.0
    %1379 = vmatpush1.msra.mxu0 0.0
    %1380 = vmatprep.subr.mxu0 0.0
    %1381 = vmatpush1.msra.mxu0 0.0
    %1382 = vmatprep.subr.mxu0 0.0
    %1383 = vmatpush1.msra.mxu0 0.0
    %1384 = vmatprep.subr.mxu0 0.0
    %1385 = vmatpush1.msra.mxu0 0.0
    %1386 = vmatprep.mubr.f32.mxu0 0.0
    %1387 = vmatmul.mubr.f32.gmra.mrb[0].mxu0 %v1311
    %v1388 = vpop.f32.mrb[0].mxu0
    %v1389 = vadd.f32 %v1308, %v1388
    %v1390 = vpop.f32.mrb[0].mxu0
    %1391 = vmatprep.mubr.f32.mxu0 0.0
    %1392 = vmatmul.mubr.f32.gmra.mrb[0].mxu0 %v1314
    %v1393 = vpop.f32.mrb[0].mxu0
    %v1394 = vadd.f32 %v1308, %v1393
    %v1395 = vpop.f32.mrb[0].mxu0
    %1396 = vmatprep.mubr.f32.mxu0 0.0
    %1397 = vmatmul.mubr.f32.gmra.mrb[0].mxu0 %v1317
    %v1398 = vpop.f32.mrb[0].mxu0
    %v1399 = vadd.f32 %v1308, %v1398
    %v1400 = vpop.f32.mrb[0].mxu0
    %1401 = vmatprep.mubr.f32.mxu0 0.0
    %1402 = vmatmul.mubr.f32.gmra.mrb[0].mxu0 %v1320
    %v1403 = vpop.f32.mrb[0].mxu0
    %v1404 = vadd.f32 %v1308, %v1403
    %v1405 = vpop.f32.mrb[0].mxu0
    %1406 = vdwg.mxu0
    %v1407 = vmax.f32 %v1389, 0.0
    %v1408 = vmax.f32 %v1394, 0.0
    %v1409 = vmax.f32 %v1399, 0.0
    %v1410 = vmax.f32 %v1404, 0.0
    %v1411 = vld [vmem:[%s13] sm:$0xff]
    %v1412 = vld [vmem:[%s13 + $0x8] sm:$0xff]
    %v1413 = vld [vmem:[%s13 + $0x10] sm:$0xff]
    %v1414 = vld [vmem:[%s13 + $0x18] sm:$0xff]
    %v1415 = vld [vmem:[%s13 + $0x20] sm:$0xff]
    %v1416 = vld [vmem:[%s13 + $0x28] sm:$0xff]
    %v1417 = vld [vmem:[%s13 + $0x30] sm:$0xff]
    %v1418 = vld [vmem:[%s13 + $0x38] sm:$0xff]
    %v1419 = vld [vmem:[%s14] sm:$0x1]
    %v1421 = vlaneseq
    %v1422 = vshrl.u32 %v1421, 7
    %v1423 = vsub.s32 0, %v1422
    %v1424 = vrot.slane %v1419, %v1423
    %vm1426 = vcmask 523264
    %v1428 = vsel %vm1426, %v1407, 0
    %v1431 = vsel %vm1426, %v1408, 0
    %v1434 = vsel %vm1426, %v1409, 0
    %v1437 = vsel %vm1426, %v1410, 0
    %1439 = vmatprep.subr.mxu0 0.0
    %1440 = vmatpush1.msra.mxu0 %v1411
    %1441 = vmatprep.subr.mxu0 0.0
    %1442 = vmatpush1.msra.mxu0 %v1412
    %1443 = vmatprep.subr.mxu0 0.0
    %1444 = vmatpush1.msra.mxu0 %v1413
    %1445 = vmatprep.subr.mxu0 0.0
    %1446 = vmatpush1.msra.mxu0 %v1414
    %1447 = vmatprep.subr.mxu0 0.0
    %1448 = vmatpush1.msra.mxu0 %v1415
    %1449 = vmatprep.subr.mxu0 0.0
    %1450 = vmatpush1.msra.mxu0 %v1416
    %1451 = vmatprep.subr.mxu0 0.0
    %1452 = vmatpush1.msra.mxu0 %v1417
    %1453 = vmatprep.subr.mxu0 0.0
    %1454 = vmatpush1.msra.mxu0 %v1418
    %1455 = vmatprep.subr.mxu0 0.0
    %1456 = vmatpush1.msra.mxu0 0.0
    %1457 = vmatprep.subr.mxu0 0.0
    %1458 = vmatpush1.msra.mxu0 0.0
    %1459 = vmatprep.subr.mxu0 0.0
    %1460 = vmatpush1.msra.mxu0 0.0
    %1461 = vmatprep.subr.mxu0 0.0
    %1462 = vmatpush1.msra.mxu0 0.0
    %1463 = vmatprep.subr.mxu0 0.0
    %1464 = vmatpush1.msra.mxu0 0.0
    %1465 = vmatprep.subr.mxu0 0.0
    %1466 = vmatpush1.msra.mxu0 0.0
    %1467 = vmatprep.subr.mxu0 0.0
    %1468 = vmatpush1.msra.mxu0 0.0
    %1469 = vmatprep.subr.mxu0 0.0
    %1470 = vmatpush1.msra.mxu0 0.0
    %1471 = vmatprep.subr.mxu0 0.0
    %1472 = vmatpush1.msra.mxu0 0.0
    %1473 = vmatprep.subr.mxu0 0.0
    %1474 = vmatpush1.msra.mxu0 0.0
    %1475 = vmatprep.subr.mxu0 0.0
    %1476 = vmatpush1.msra.mxu0 0.0
    %1477 = vmatprep.subr.mxu0 0.0
    %1478 = vmatpush1.msra.mxu0 0.0
    %1479 = vmatprep.subr.mxu0 0.0
    %1480 = vmatpush1.msra.mxu0 0.0
    %1481 = vmatprep.subr.mxu0 0.0
    %1482 = vmatpush1.msra.mxu0 0.0
    %1483 = vmatprep.subr.mxu0 0.0
    %1484 = vmatpush1.msra.mxu0 0.0
    %1485 = vmatprep.subr.mxu0 0.0
    %1486 = vmatpush1.msra.mxu0 0.0
    %1487 = vmatprep.subr.mxu0 0.0
    %1488 = vmatpush1.msra.mxu0 0.0
    %1489 = vmatprep.subr.mxu0 0.0
    %1490 = vmatpush1.msra.mxu0 0.0
    %1491 = vmatprep.subr.mxu0 0.0
    %1492 = vmatpush1.msra.mxu0 0.0
    %1493 = vmatprep.subr.mxu0 0.0
    %1494 = vmatpush1.msra.mxu0 0.0
    %1495 = vmatprep.subr.mxu0 0.0
    %1496 = vmatpush1.msra.mxu0 0.0
    %1497 = vmatprep.subr.mxu0 0.0
    %1498 = vmatpush1.msra.mxu0 0.0
    %1499 = vmatprep.subr.mxu0 0.0
    %1500 = vmatpush1.msra.mxu0 0.0
    %1501 = vmatprep.subr.mxu0 0.0
    %1502 = vmatpush1.msra.mxu0 0.0
    %1503 = vmatprep.mubr.f32.mxu0 0.0
    %1504 = vmatmul.mubr.f32.gmra.mrb[0].mxu0 %v1428
    %v1505 = vpop.f32.mrb[0].mxu0
    %v1506 = vadd.f32 %v1424, %v1505
    %v1507 = vpop.f32.mrb[0].mxu0
    %1508 = vmatprep.mubr.f32.mxu0 0.0
    %1509 = vmatmul.mubr.f32.gmra.mrb[0].mxu0 %v1431
    %v1510 = vpop.f32.mrb[0].mxu0
    %v1511 = vadd.f32 %v1424, %v1510
    %v1512 = vpop.f32.mrb[0].mxu0
    %1513 = vmatprep.mubr.f32.mxu0 0.0
    %1514 = vmatmul.mubr.f32.gmra.mrb[0].mxu0 %v1434
    %v1515 = vpop.f32.mrb[0].mxu0
    %v1516 = vadd.f32 %v1424, %v1515
    %v1517 = vpop.f32.mrb[0].mxu0
    %1518 = vmatprep.mubr.f32.mxu0 0.0
    %1519 = vmatmul.mubr.f32.gmra.mrb[0].mxu0 %v1437
    %v1520 = vpop.f32.mrb[0].mxu0
    %v1521 = vadd.f32 %v1424, %v1520
    %v1522 = vpop.f32.mrb[0].mxu0
    %1523 = vdwg.mxu0
    %v1524 = vadd.f32 %v1295, %v1506
    %v1525 = vadd.f32 %v1296, %v1511
    %v1526 = vadd.f32 %v1297, %v1516
    %v1527 = vadd.f32 %v1298, %v1521
    %v1528 = vld [vmem:[%s15] sm:$0x1]
    %v1529 = vld [vmem:[%s16] sm:$0x1]
    %v1530 = vsel %vm114, %v1524, 0.0
    %1531 = vadd.xlane.f32.xlu0 %v1530
    %v1532 = vpop.xlane.xlu0 %1531
    %v1533 = vsel %vm114, %v1525, 0.0
    %1534 = vadd.xlane.f32.xlu0 %v1533
    %v1535 = vpop.xlane.xlu0 %1534
    %v1536 = vsel %vm114, %v1526, 0.0
    %1537 = vadd.xlane.f32.xlu0 %v1536
    %v1538 = vpop.xlane.xlu0 %1537
    %v1539 = vsel %vm114, %v1527, 0.0
    %1540 = vadd.xlane.f32.xlu0 %v1539
    %v1541 = vpop.xlane.xlu0 %1540
    %v1542 = vmul.f32 %v1532, %v127
    %v1543 = vmul.f32 %v1535, %v127
    %v1544 = vmul.f32 %v1538, %v127
    %v1545 = vmul.f32 %v1541, %v127
    %v1546 = vsub.f32 %v1524, %v1542
    %v1547 = vsub.f32 %v1525, %v1543
    %v1548 = vsub.f32 %v1526, %v1544
    %v1549 = vsub.f32 %v1527, %v1545
    %v1550 = vmul.f32 %v1546, %v1546
    %v1551 = vmul.f32 %v1547, %v1547
    %v1552 = vmul.f32 %v1548, %v1548
    %v1553 = vmul.f32 %v1549, %v1549
    %v1554 = vsel %vm114, %v1550, 0.0
    %1555 = vadd.xlane.f32.xlu0 %v1554
    %v1556 = vpop.xlane.xlu0 %1555
    %v1557 = vsel %vm114, %v1551, 0.0
    %1558 = vadd.xlane.f32.xlu0 %v1557
    %v1559 = vpop.xlane.xlu0 %1558
    %v1560 = vsel %vm114, %v1552, 0.0
    %1561 = vadd.xlane.f32.xlu0 %v1560
    %v1562 = vpop.xlane.xlu0 %1561
    %v1563 = vsel %vm114, %v1553, 0.0
    %1564 = vadd.xlane.f32.xlu0 %v1563
    %v1565 = vpop.xlane.xlu0 %1564
    %v1566 = vmul.f32 %v1556, %v127
    %v1567 = vmul.f32 %v1559, %v127
    %v1568 = vmul.f32 %v1562, %v127
    %v1569 = vmul.f32 %v1565, %v127
    %v1570 = vadd.f32 %v1566, 1e-05
    %v1571 = vadd.f32 %v1567, 1e-05
    %v1572 = vadd.f32 %v1568, 1e-05
    %v1573 = vadd.f32 %v1569, 1e-05
    %v1574 = vrsqrt.pop %v1570
    %v1575 = vrsqrt.pop %v1571
    %v1576 = vrsqrt.pop %v1572
    %v1577 = vrsqrt.pop %v1573
    %v1578 = vmul.f32 %v1546, %v1574
    %v1579 = vmul.f32 %v1547, %v1575
    %v1580 = vmul.f32 %v1548, %v1576
    %v1581 = vmul.f32 %v1549, %v1577
    %v1583 = vlaneseq
    %v1584 = vshrl.u32 %v1583, 7
    %v1585 = vsub.s32 0, %v1584
    %v1586 = vrot.slane %v1528, %v1585
    %v1588 = vmul.f32 %v1578, %v1586
    %v1589 = vmul.f32 %v1579, %v1586
    %v1590 = vmul.f32 %v1580, %v1586
    %v1591 = vmul.f32 %v1581, %v1586
    %v1593 = vlaneseq
    %v1594 = vshrl.u32 %v1593, 7
    %v1595 = vsub.s32 0, %v1594
    %v1596 = vrot.slane %v1529, %v1595
    %v1598 = vadd.f32 %v1588, %v1596
    %v1599 = vadd.f32 %v1589, %v1596
    %v1600 = vadd.f32 %v1590, %v1596
    %v1601 = vadd.f32 %v1591, %v1596
    %s1602 = scalar_lea.vmem %s5, 32
    %v1603 = vld [vmem:[%s1602] sm:$0xff]
    %v1604 = vld [vmem:[%s1602 + $0x8] sm:$0xff]
    %v1605 = vld [vmem:[%s1602 + $0x10] sm:$0xff]
    %v1606 = vld [vmem:[%s1602 + $0x18] sm:$0xff]
    %s1607 = scalar_lea.vmem %s6, 1
    %v1608 = vld [vmem:[%s1607] sm:$0x1]
    %v1610 = vlaneseq
    %v1611 = vshrl.u32 %v1610, 7
    %v1612 = vsub.s32 0, %v1611
    %v1613 = vrot.slane %v1608, %v1612
    %v1616 = vsel %vm114, %v1598, 0
    %v1619 = vsel %vm114, %v1599, 0
    %v1622 = vsel %vm114, %v1600, 0
    %v1625 = vsel %vm114, %v1601, 0
    %1627 = vmatprep.subr.mxu0 0.0
    %1628 = vmatpush1.msra.mxu0 %v1603
    %1629 = vmatprep.subr.mxu0 0.0
    %1630 = vmatpush1.msra.mxu0 %v1604
    %1631 = vmatprep.subr.mxu0 0.0
    %1632 = vmatpush1.msra.mxu0 %v1605
    %1633 = vmatprep.subr.mxu0 0.0
    %1634 = vmatpush1.msra.mxu0 %v1606
    %1635 = vmatprep.subr.mxu0 0.0
    %1636 = vmatpush1.msra.mxu0 0.0
    %1637 = vmatprep.subr.mxu0 0.0
    %1638 = vmatpush1.msra.mxu0 0.0
    %1639 = vmatprep.subr.mxu0 0.0
    %1640 = vmatpush1.msra.mxu0 0.0
    %1641 = vmatprep.subr.mxu0 0.0
    %1642 = vmatpush1.msra.mxu0 0.0
    %1643 = vmatprep.subr.mxu0 0.0
    %1644 = vmatpush1.msra.mxu0 0.0
    %1645 = vmatprep.subr.mxu0 0.0
    %1646 = vmatpush1.msra.mxu0 0.0
    %1647 = vmatprep.subr.mxu0 0.0
    %1648 = vmatpush1.msra.mxu0 0.0
    %1649 = vmatprep.subr.mxu0 0.0
    %1650 = vmatpush1.msra.mxu0 0.0
    %1651 = vmatprep.subr.mxu0 0.0
    %1652 = vmatpush1.msra.mxu0 0.0
    %1653 = vmatprep.subr.mxu0 0.0
    %1654 = vmatpush1.msra.mxu0 0.0
    %1655 = vmatprep.subr.mxu0 0.0
    %1656 = vmatpush1.msra.mxu0 0.0
    %1657 = vmatprep.subr.mxu0 0.0
    %1658 = vmatpush1.msra.mxu0 0.0
    %1659 = vmatprep.subr.mxu0 0.0
    %1660 = vmatpush1.msra.mxu0 0.0
    %1661 = vmatprep.subr.mxu0 0.0
    %1662 = vmatpush1.msra.mxu0 0.0
    %1663 = vmatprep.subr.mxu0 0.0
    %1664 = vmatpush1.msra.mxu0 0.0
    %1665 = vmatprep.subr.mxu0 0.0
    %1666 = vmatpush1.msra.mxu0 0.0
    %1667 = vmatprep.subr.mxu0 0.0
    %1668 = vmatpush1.msra.mxu0 0.0
    %1669 = vmatprep.subr.mxu0 0.0
    %1670 = vmatpush1.msra.mxu0 0.0
    %1671 = vmatprep.subr.mxu0 0.0
    %1672 = vmatpush1.msra.mxu0 0.0
    %1673 = vmatprep.subr.mxu0 0.0
    %1674 = vmatpush1.msra.mxu0 0.0
    %1675 = vmatprep.subr.mxu0 0.0
    %1676 = vmatpush1.msra.mxu0 0.0
    %1677 = vmatprep.subr.mxu0 0.0
    %1678 = vmatpush1.msra.mxu0 0.0
    %1679 = vmatprep.subr.mxu0 0.0
    %1680 = vmatpush1.msra.mxu0 0.0
    %1681 = vmatprep.subr.mxu0 0.0
    %1682 = vmatpush1.msra.mxu0 0.0
    %1683 = vmatprep.subr.mxu0 0.0
    %1684 = vmatpush1.msra.mxu0 0.0
    %1685 = vmatprep.subr.mxu0 0.0
    %1686 = vmatpush1.msra.mxu0 0.0
    %1687 = vmatprep.subr.mxu0 0.0
    %1688 = vmatpush1.msra.mxu0 0.0
    %1689 = vmatprep.subr.mxu0 0.0
    %1690 = vmatpush1.msra.mxu0 0.0
    %1691 = vmatprep.mubr.f32.mxu0 0.0
    %1692 = vmatmul.mubr.f32.gmra.mrb[0].mxu0 %v1616
    %v1693 = vpop.f32.mrb[0].mxu0
    %v1694 = vadd.f32 %v1613, %v1693
    %v1695 = vpop.f32.mrb[0].mxu0
    %1696 = vmatprep.mubr.f32.mxu0 0.0
    %1697 = vmatmul.mubr.f32.gmra.mrb[0].mxu0 %v1619
    %v1698 = vpop.f32.mrb[0].mxu0
    %v1699 = vadd.f32 %v1613, %v1698
    %v1700 = vpop.f32.mrb[0].mxu0
    %1701 = vmatprep.mubr.f32.mxu0 0.0
    %1702 = vmatmul.mubr.f32.gmra.mrb[0].mxu0 %v1622
    %v1703 = vpop.f32.mrb[0].mxu0
    %v1704 = vadd.f32 %v1613, %v1703
    %v1705 = vpop.f32.mrb[0].mxu0
    %1706 = vmatprep.mubr.f32.mxu0 0.0
    %1707 = vmatmul.mubr.f32.gmra.mrb[0].mxu0 %v1625
    %v1708 = vpop.f32.mrb[0].mxu0
    %v1709 = vadd.f32 %v1613, %v1708
    %v1710 = vpop.f32.mrb[0].mxu0
    %1711 = vdwg.mxu0
    %1714 = vrot.lane.b32.xlu0 %v1694, 96
    %v1715 = vpop.permute.xlu0 %1714
    %1716 = vrot.lane.b32.xlu0 %v1699, 96
    %v1717 = vpop.permute.xlu0 %1716
    %v1718 = vsel %vm302, %v1694, 0
    %v1720 = vsel %vm302, %v1699, 0
    %v1722 = vsel %vm302, %v1715, 0
    %v1724 = vsel %vm302, %v1717, 0
    %1726 = vmatprep.subr.mxu0 0.0
    %1727 = vmatpush1.xpose.msra.mxu0 %v1722
    %1728 = vmatprep.subr.mxu0 0.0
    %1729 = vmatpush1.xpose.msra.mxu0 %v1724
    %1730 = vmatprep.subr.mxu0 0.0
    %1731 = vmatpush1.xpose.msra.mxu0 0.0
    %1732 = vmatprep.subr.mxu0 0.0
    %1733 = vmatpush1.xpose.msra.mxu0 0.0
    %1734 = vmatprep.subr.mxu0 0.0
    %1735 = vmatpush1.xpose.msra.mxu0 0.0
    %1736 = vmatprep.subr.mxu0 0.0
    %1737 = vmatpush1.xpose.msra.mxu0 0.0
    %1738 = vmatprep.subr.mxu0 0.0
    %1739 = vmatpush1.xpose.msra.mxu0 0.0
    %1740 = vmatprep.subr.mxu0 0.0
    %1741 = vmatpush1.xpose.msra.mxu0 0.0
    %1742 = vmatprep.subr.mxu0 0.0
    %1743 = vmatpush1.xpose.msra.mxu0 0.0
    %1744 = vmatprep.subr.mxu0 0.0
    %1745 = vmatpush1.xpose.msra.mxu0 0.0
    %1746 = vmatprep.subr.mxu0 0.0
    %1747 = vmatpush1.xpose.msra.mxu0 0.0
    %1748 = vmatprep.subr.mxu0 0.0
    %1749 = vmatpush1.xpose.msra.mxu0 0.0
    %1750 = vmatprep.subr.mxu0 0.0
    %1751 = vmatpush1.xpose.msra.mxu0 0.0
    %1752 = vmatprep.subr.mxu0 0.0
    %1753 = vmatpush1.xpose.msra.mxu0 0.0
    %1754 = vmatprep.subr.mxu0 0.0
    %1755 = vmatpush1.xpose.msra.mxu0 0.0
    %1756 = vmatprep.subr.mxu0 0.0
    %1757 = vmatpush1.xpose.msra.mxu0 0.0
    %1758 = vmatprep.subr.mxu0 0.0
    %1759 = vmatpush1.xpose.msra.mxu0 0.0
    %1760 = vmatprep.subr.mxu0 0.0
    %1761 = vmatpush1.xpose.msra.mxu0 0.0
    %1762 = vmatprep.subr.mxu0 0.0
    %1763 = vmatpush1.xpose.msra.mxu0 0.0
    %1764 = vmatprep.subr.mxu0 0.0
    %1765 = vmatpush1.xpose.msra.mxu0 0.0
    %1766 = vmatprep.subr.mxu0 0.0
    %1767 = vmatpush1.xpose.msra.mxu0 0.0
    %1768 = vmatprep.subr.mxu0 0.0
    %1769 = vmatpush1.xpose.msra.mxu0 0.0
    %1770 = vmatprep.subr.mxu0 0.0
    %1771 = vmatpush1.xpose.msra.mxu0 0.0
    %1772 = vmatprep.subr.mxu0 0.0
    %1773 = vmatpush1.xpose.msra.mxu0 0.0
    %1774 = vmatprep.subr.mxu0 0.0
    %1775 = vmatpush1.xpose.msra.mxu0 0.0
    %1776 = vmatprep.subr.mxu0 0.0
    %1777 = vmatpush1.xpose.msra.mxu0 0.0
    %1778 = vmatprep.subr.mxu0 0.0
    %1779 = vmatpush1.xpose.msra.mxu0 0.0
    %1780 = vmatprep.subr.mxu0 0.0
    %1781 = vmatpush1.xpose.msra.mxu0 0.0
    %1782 = vmatprep.subr.mxu0 0.0
    %1783 = vmatpush1.xpose.msra.mxu0 0.0
    %1784 = vmatprep.subr.mxu0 0.0
    %1785 = vmatpush1.xpose.msra.mxu0 0.0
    %1786 = vmatprep.subr.mxu0 0.0
    %1787 = vmatpush1.xpose.msra.mxu0 0.0
    %1788 = vmatprep.subr.mxu0 0.0
    %1789 = vmatpush1.xpose.msra.mxu0 0.0
    %1790 = vmatprep.mubr.f32.mxu0 0.0
    %1791 = vmatmul.mubr.f32.gmra.mrb[0].mxu0 %v1718
    %v1792 = vpop.f32.mrb[0].mxu0
    %v1793 = vadd.f32 0.0, %v1792
    %v1794 = vpop.f32.mrb[0].mxu0
    %1795 = vmatprep.mubr.f32.mxu0 0.0
    %1796 = vmatmul.mubr.f32.gmra.mrb[0].mxu0 %v1720
    %v1797 = vpop.f32.mrb[0].mxu0
    %v1798 = vadd.f32 0.0, %v1797
    %v1799 = vpop.f32.mrb[0].mxu0
    %1800 = vdwg.mxu0
    %v1801 = vsel %vm302, %v1793, -inf
    %1802 = vmax.xlane.f32.xlu0 %v1801
    %v1803 = vpop.xlane.xlu0 %1802
    %v1804 = vsel %vm302, %v1798, -inf
    %1805 = vmax.xlane.f32.xlu0 %v1804
    %v1806 = vpop.xlane.xlu0 %1805
    %v1807 = vsub.f32 %v1793, %v1803
    %v1808 = vsub.f32 %v1798, %v1806
    %v1809 = vmul.f32 %v1807, 1.442695
    %v1810 = vpow.pop %v1809
    %v1811 = vmul.f32 %v1808, 1.442695
    %v1812 = vpow.pop %v1811
    %v1813 = vsel %vm302, %v1810, 0.0
    %1814 = vadd.xlane.f32.xlu0 %v1813
    %v1815 = vpop.xlane.xlu0 %1814
    %v1816 = vsel %vm302, %v1812, 0.0
    %1817 = vadd.xlane.f32.xlu0 %v1816
    %v1818 = vpop.xlane.xlu0 %1817
    %v1819 = vrcp.pop %v1815
    %v1820 = vrcp.pop %v1818
    %v1821 = vmul.f32 %v1810, %v1819
    %v1822 = vmul.f32 %v1812, %v1820
    %1823 = vrot.lane.b32.xlu0 %v1694, 64
    %v1824 = vpop.permute.xlu0 %1823
    %1825 = vrot.lane.b32.xlu0 %v1699, 64
    %v1826 = vpop.permute.xlu0 %1825
    %v1830 = vsel %vm302, %v1821, 0
    %v1833 = vsel %vm302, %v1822, 0
    %1835 = vmatprep.subr.mxu0 0.0
    %1836 = vmatpush1.msra.mxu0 %v1824
    %1837 = vmatprep.subr.mxu0 0.0
    %1838 = vmatpush1.msra.mxu0 %v1826
    %1839 = vmatprep.subr.mxu0 0.0
    %1840 = vmatpush1.msra.mxu0 0.0
    %1841 = vmatprep.subr.mxu0 0.0
    %1842 = vmatpush1.msra.mxu0 0.0
    %1843 = vmatprep.subr.mxu0 0.0
    %1844 = vmatpush1.msra.mxu0 0.0
    %1845 = vmatprep.subr.mxu0 0.0
    %1846 = vmatpush1.msra.mxu0 0.0
    %1847 = vmatprep.subr.mxu0 0.0
    %1848 = vmatpush1.msra.mxu0 0.0
    %1849 = vmatprep.subr.mxu0 0.0
    %1850 = vmatpush1.msra.mxu0 0.0
    %1851 = vmatprep.subr.mxu0 0.0
    %1852 = vmatpush1.msra.mxu0 0.0
    %1853 = vmatprep.subr.mxu0 0.0
    %1854 = vmatpush1.msra.mxu0 0.0
    %1855 = vmatprep.subr.mxu0 0.0
    %1856 = vmatpush1.msra.mxu0 0.0
    %1857 = vmatprep.subr.mxu0 0.0
    %1858 = vmatpush1.msra.mxu0 0.0
    %1859 = vmatprep.subr.mxu0 0.0
    %1860 = vmatpush1.msra.mxu0 0.0
    %1861 = vmatprep.subr.mxu0 0.0
    %1862 = vmatpush1.msra.mxu0 0.0
    %1863 = vmatprep.subr.mxu0 0.0
    %1864 = vmatpush1.msra.mxu0 0.0
    %1865 = vmatprep.subr.mxu0 0.0
    %1866 = vmatpush1.msra.mxu0 0.0
    %1867 = vmatprep.subr.mxu0 0.0
    %1868 = vmatpush1.msra.mxu0 0.0
    %1869 = vmatprep.subr.mxu0 0.0
    %1870 = vmatpush1.msra.mxu0 0.0
    %1871 = vmatprep.subr.mxu0 0.0
    %1872 = vmatpush1.msra.mxu0 0.0
    %1873 = vmatprep.subr.mxu0 0.0
    %1874 = vmatpush1.msra.mxu0 0.0
    %1875 = vmatprep.subr.mxu0 0.0
    %1876 = vmatpush1.msra.mxu0 0.0
    %1877 = vmatprep.subr.mxu0 0.0
    %1878 = vmatpush1.msra.mxu0 0.0
    %1879 = vmatprep.subr.mxu0 0.0
    %1880 = vmatpush1.msra.mxu0 0.0
    %1881 = vmatprep.subr.mxu0 0.0
    %1882 = vmatpush1.msra.mxu0 0.0
    %1883 = vmatprep.subr.mxu0 0.0
    %1884 = vmatpush1.msra.mxu0 0.0
    %1885 = vmatprep.subr.mxu0 0.0
    %1886 = vmatpush1.msra.mxu0 0.0
    %1887 = vmatprep.subr.mxu0 0.0
    %1888 = vmatpush1.msra.mxu0 0.0
    %1889 = vmatprep.subr.mxu0 0.0
    %1890 = vmatpush1.msra.mxu0 0.0
    %1891 = vmatprep.subr.mxu0 0.0
    %1892 = vmatpush1.msra.mxu0 0.0
    %1893 = vmatprep.subr.mxu0 0.0
    %1894 = vmatpush1.msra.mxu0 0.0
    %1895 = vmatprep.subr.mxu0 0.0
    %1896 = vmatpush1.msra.mxu0 0.0
    %1897 = vmatprep.subr.mxu0 0.0
    %1898 = vmatpush1.msra.mxu0 0.0
    %1899 = vmatprep.mubr.f32.mxu0 0.0
    %1900 = vmatmul.mubr.f32.gmra.mrb[0].mxu0 %v1830
    %v1901 = vpop.f32.mrb[0].mxu0
    %v1902 = vadd.f32 0.0, %v1901
    %v1903 = vpop.f32.mrb[0].mxu0
    %1904 = vmatprep.mubr.f32.mxu0 0.0
    %1905 = vmatmul.mubr.f32.gmra.mrb[0].mxu0 %v1833
    %v1906 = vpop.f32.mrb[0].mxu0
    %v1907 = vadd.f32 0.0, %v1906
    %v1908 = vpop.f32.mrb[0].mxu0
    %1909 = vdwg.mxu0
    %1910 = vrot.lane.b32.xlu0 %v1694, 112
    %v1911 = vpop.permute.xlu0 %1910
    %1912 = vrot.lane.b32.xlu0 %v1699, 112
    %v1913 = vpop.permute.xlu0 %1912
    %1914 = vrot.lane.b32.xlu0 %v1694, 80
    %v1915 = vpop.permute.xlu0 %1914
    %1916 = vrot.lane.b32.xlu0 %v1699, 80
    %v1917 = vpop.permute.xlu0 %1916
    %v1918 = vsel %vm302, %v1911, 0
    %v1920 = vsel %vm302, %v1913, 0
    %v1922 = vsel %vm302, %v1915, 0
    %v1924 = vsel %vm302, %v1917, 0
    %1926 = vmatprep.subr.mxu0 0.0
    %1927 = vmatpush1.xpose.msra.mxu0 %v1922
    %1928 = vmatprep.subr.mxu0 0.0
    %1929 = vmatpush1.xpose.msra.mxu0 %v1924
    %1930 = vmatprep.subr.mxu0 0.0
    %1931 = vmatpush1.xpose.msra.mxu0 0.0
    %1932 = vmatprep.subr.mxu0 0.0
    %1933 = vmatpush1.xpose.msra.mxu0 0.0
    %1934 = vmatprep.subr.mxu0 0.0
    %1935 = vmatpush1.xpose.msra.mxu0 0.0
    %1936 = vmatprep.subr.mxu0 0.0
    %1937 = vmatpush1.xpose.msra.mxu0 0.0
    %1938 = vmatprep.subr.mxu0 0.0
    %1939 = vmatpush1.xpose.msra.mxu0 0.0
    %1940 = vmatprep.subr.mxu0 0.0
    %1941 = vmatpush1.xpose.msra.mxu0 0.0
    %1942 = vmatprep.subr.mxu0 0.0
    %1943 = vmatpush1.xpose.msra.mxu0 0.0
    %1944 = vmatprep.subr.mxu0 0.0
    %1945 = vmatpush1.xpose.msra.mxu0 0.0
    %1946 = vmatprep.subr.mxu0 0.0
    %1947 = vmatpush1.xpose.msra.mxu0 0.0
    %1948 = vmatprep.subr.mxu0 0.0
    %1949 = vmatpush1.xpose.msra.mxu0 0.0
    %1950 = vmatprep.subr.mxu0 0.0
    %1951 = vmatpush1.xpose.msra.mxu0 0.0
    %1952 = vmatprep.subr.mxu0 0.0
    %1953 = vmatpush1.xpose.msra.mxu0 0.0
    %1954 = vmatprep.subr.mxu0 0.0
    %1955 = vmatpush1.xpose.msra.mxu0 0.0
    %1956 = vmatprep.subr.mxu0 0.0
    %1957 = vmatpush1.xpose.msra.mxu0 0.0
    %1958 = vmatprep.subr.mxu0 0.0
    %1959 = vmatpush1.xpose.msra.mxu0 0.0
    %1960 = vmatprep.subr.mxu0 0.0
    %1961 = vmatpush1.xpose.msra.mxu0 0.0
    %1962 = vmatprep.subr.mxu0 0.0
    %1963 = vmatpush1.xpose.msra.mxu0 0.0
    %1964 = vmatprep.subr.mxu0 0.0
    %1965 = vmatpush1.xpose.msra.mxu0 0.0
    %1966 = vmatprep.subr.mxu0 0.0
    %1967 = vmatpush1.xpose.msra.mxu0 0.0
    %1968 = vmatprep.subr.mxu0 0.0
    %1969 = vmatpush1.xpose.msra.mxu0 0.0
    %1970 = vmatprep.subr.mxu0 0.0
    %1971 = vmatpush1.xpose.msra.mxu0 0.0
    %1972 = vmatprep.subr.mxu0 0.0
    %1973 = vmatpush1.xpose.msra.mxu0 0.0
    %1974 = vmatprep.subr.mxu0 0.0
    %1975 = vmatpush1.xpose.msra.mxu0 0.0
    %1976 = vmatprep.subr.mxu0 0.0
    %1977 = vmatpush1.xpose.msra.mxu0 0.0
    %1978 = vmatprep.subr.mxu0 0.0
    %1979 = vmatpush1.xpose.msra.mxu0 0.0
    %1980 = vmatprep.subr.mxu0 0.0
    %1981 = vmatpush1.xpose.msra.mxu0 0.0
    %1982 = vmatprep.subr.mxu0 0.0
    %1983 = vmatpush1.xpose.msra.mxu0 0.0
    %1984 = vmatprep.subr.mxu0 0.0
    %1985 = vmatpush1.xpose.msra.mxu0 0.0
    %1986 = vmatprep.subr.mxu0 0.0
    %1987 = vmatpush1.xpose.msra.mxu0 0.0
    %1988 = vmatprep.subr.mxu0 0.0
    %1989 = vmatpush1.xpose.msra.mxu0 0.0
    %1990 = vmatprep.mubr.f32.mxu0 0.0
    %1991 = vmatmul.mubr.f32.gmra.mrb[0].mxu0 %v1918
    %v1992 = vpop.f32.mrb[0].mxu0
    %v1993 = vadd.f32 0.0, %v1992
    %v1994 = vpop.f32.mrb[0].mxu0
    %1995 = vmatprep.mubr.f32.mxu0 0.0
    %1996 = vmatmul.mubr.f32.gmra.mrb[0].mxu0 %v1920
    %v1997 = vpop.f32.mrb[0].mxu0
    %v1998 = vadd.f32 0.0, %v1997
    %v1999 = vpop.f32.mrb[0].mxu0
    %2000 = vdwg.mxu0
    %v2001 = vsel %vm302, %v1993, -inf
    %2002 = vmax.xlane.f32.xlu0 %v2001
    %v2003 = vpop.xlane.xlu0 %2002
    %v2004 = vsel %vm302, %v1998, -inf
    %2005 = vmax.xlane.f32.xlu0 %v2004
    %v2006 = vpop.xlane.xlu0 %2005
    %v2007 = vsub.f32 %v1993, %v2003
    %v2008 = vsub.f32 %v1998, %v2006
    %v2009 = vmul.f32 %v2007, 1.442695
    %v2010 = vpow.pop %v2009
    %v2011 = vmul.f32 %v2008, 1.442695
    %v2012 = vpow.pop %v2011
    %v2013 = vsel %vm302, %v2010, 0.0
    %2014 = vadd.xlane.f32.xlu0 %v2013
    %v2015 = vpop.xlane.xlu0 %2014
    %v2016 = vsel %vm302, %v2012, 0.0
    %2017 = vadd.xlane.f32.xlu0 %v2016
    %v2018 = vpop.xlane.xlu0 %2017
    %v2019 = vrcp.pop %v2015
    %v2020 = vrcp.pop %v2018
    %v2021 = vmul.f32 %v2010, %v2019
    %v2022 = vmul.f32 %v2012, %v2020
    %2023 = vrot.lane.b32.xlu0 %v1694, 48
    %v2024 = vpop.permute.xlu0 %2023
    %2025 = vrot.lane.b32.xlu0 %v1699, 48
    %v2026 = vpop.permute.xlu0 %2025
    %v2030 = vsel %vm302, %v2021, 0
    %v2033 = vsel %vm302, %v2022, 0
    %2035 = vmatprep.subr.mxu0 0.0
    %2036 = vmatpush1.msra.mxu0 %v2024
    %2037 = vmatprep.subr.mxu0 0.0
    %2038 = vmatpush1.msra.mxu0 %v2026
    %2039 = vmatprep.subr.mxu0 0.0
    %2040 = vmatpush1.msra.mxu0 0.0
    %2041 = vmatprep.subr.mxu0 0.0
    %2042 = vmatpush1.msra.mxu0 0.0
    %2043 = vmatprep.subr.mxu0 0.0
    %2044 = vmatpush1.msra.mxu0 0.0
    %2045 = vmatprep.subr.mxu0 0.0
    %2046 = vmatpush1.msra.mxu0 0.0
    %2047 = vmatprep.subr.mxu0 0.0
    %2048 = vmatpush1.msra.mxu0 0.0
    %2049 = vmatprep.subr.mxu0 0.0
    %2050 = vmatpush1.msra.mxu0 0.0
    %2051 = vmatprep.subr.mxu0 0.0
    %2052 = vmatpush1.msra.mxu0 0.0
    %2053 = vmatprep.subr.mxu0 0.0
    %2054 = vmatpush1.msra.mxu0 0.0
    %2055 = vmatprep.subr.mxu0 0.0
    %2056 = vmatpush1.msra.mxu0 0.0
    %2057 = vmatprep.subr.mxu0 0.0
    %2058 = vmatpush1.msra.mxu0 0.0
    %2059 = vmatprep.subr.mxu0 0.0
    %2060 = vmatpush1.msra.mxu0 0.0
    %2061 = vmatprep.subr.mxu0 0.0
    %2062 = vmatpush1.msra.mxu0 0.0
    %2063 = vmatprep.subr.mxu0 0.0
    %2064 = vmatpush1.msra.mxu0 0.0
    %2065 = vmatprep.subr.mxu0 0.0
    %2066 = vmatpush1.msra.mxu0 0.0
    %2067 = vmatprep.subr.mxu0 0.0
    %2068 = vmatpush1.msra.mxu0 0.0
    %2069 = vmatprep.subr.mxu0 0.0
    %2070 = vmatpush1.msra.mxu0 0.0
    %2071 = vmatprep.subr.mxu0 0.0
    %2072 = vmatpush1.msra.mxu0 0.0
    %2073 = vmatprep.subr.mxu0 0.0
    %2074 = vmatpush1.msra.mxu0 0.0
    %2075 = vmatprep.subr.mxu0 0.0
    %2076 = vmatpush1.msra.mxu0 0.0
    %2077 = vmatprep.subr.mxu0 0.0
    %2078 = vmatpush1.msra.mxu0 0.0
    %2079 = vmatprep.subr.mxu0 0.0
    %2080 = vmatpush1.msra.mxu0 0.0
    %2081 = vmatprep.subr.mxu0 0.0
    %2082 = vmatpush1.msra.mxu0 0.0
    %2083 = vmatprep.subr.mxu0 0.0
    %2084 = vmatpush1.msra.mxu0 0.0
    %2085 = vmatprep.subr.mxu0 0.0
    %2086 = vmatpush1.msra.mxu0 0.0
    %2087 = vmatprep.subr.mxu0 0.0
    %2088 = vmatpush1.msra.mxu0 0.0
    %2089 = vmatprep.subr.mxu0 0.0
    %2090 = vmatpush1.msra.mxu0 0.0
    %2091 = vmatprep.subr.mxu0 0.0
    %2092 = vmatpush1.msra.mxu0 0.0
    %2093 = vmatprep.subr.mxu0 0.0
    %2094 = vmatpush1.msra.mxu0 0.0
    %2095 = vmatprep.subr.mxu0 0.0
    %2096 = vmatpush1.msra.mxu0 0.0
    %2097 = vmatprep.subr.mxu0 0.0
    %2098 = vmatpush1.msra.mxu0 0.0
    %2099 = vmatprep.mubr.f32.mxu0 0.0
    %2100 = vmatmul.mubr.f32.gmra.mrb[0].mxu0 %v2030
    %v2101 = vpop.f32.mrb[0].mxu0
    %v2102 = vadd.f32 0.0, %v2101
    %v2103 = vpop.f32.mrb[0].mxu0
    %2104 = vmatprep.mubr.f32.mxu0 0.0
    %2105 = vmatmul.mubr.f32.gmra.mrb[0].mxu0 %v2033
    %v2106 = vpop.f32.mrb[0].mxu0
    %v2107 = vadd.f32 0.0, %v2106
    %v2108 = vpop.f32.mrb[0].mxu0
    %2109 = vdwg.mxu0
    %2112 = vrot.lane.b32.xlu0 %v2102, 16
    %v2113 = vpop.permute.xlu0 %2112
    %2114 = vrot.lane.b32.xlu0 %v2107, 16
    %v2115 = vpop.permute.xlu0 %2114
    %v2118 = vsel %vm302, %v1902, %v2113
    %v2119 = vsel %vm302, %v1907, %v2115
    %2122 = vrot.lane.b32.xlu0 %v1704, 96
    %v2123 = vpop.permute.xlu0 %2122
    %2124 = vrot.lane.b32.xlu0 %v1709, 96
    %v2125 = vpop.permute.xlu0 %2124
    %v2126 = vsel %vm302, %v1704, 0
    %v2128 = vsel %vm302, %v1709, 0
    %v2130 = vsel %vm302, %v2123, 0
    %v2132 = vsel %vm302, %v2125, 0
    %2134 = vmatprep.subr.mxu0 0.0
    %2135 = vmatpush1.xpose.msra.mxu0 %v2130
    %2136 = vmatprep.subr.mxu0 0.0
    %2137 = vmatpush1.xpose.msra.mxu0 %v2132
    %2138 = vmatprep.subr.mxu0 0.0
    %2139 = vmatpush1.xpose.msra.mxu0 0.0
    %2140 = vmatprep.subr.mxu0 0.0
    %2141 = vmatpush1.xpose.msra.mxu0 0.0
    %2142 = vmatprep.subr.mxu0 0.0
    %2143 = vmatpush1.xpose.msra.mxu0 0.0
    %2144 = vmatprep.subr.mxu0 0.0
    %2145 = vmatpush1.xpose.msra.mxu0 0.0
    %2146 = vmatprep.subr.mxu0 0.0
    %2147 = vmatpush1.xpose.msra.mxu0 0.0
    %2148 = vmatprep.subr.mxu0 0.0
    %2149 = vmatpush1.xpose.msra.mxu0 0.0
    %2150 = vmatprep.subr.mxu0 0.0
    %2151 = vmatpush1.xpose.msra.mxu0 0.0
    %2152 = vmatprep.subr.mxu0 0.0
    %2153 = vmatpush1.xpose.msra.mxu0 0.0
    %2154 = vmatprep.subr.mxu0 0.0
    %2155 = vmatpush1.xpose.msra.mxu0 0.0
    %2156 = vmatprep.subr.mxu0 0.0
    %2157 = vmatpush1.xpose.msra.mxu0 0.0
    %2158 = vmatprep.subr.mxu0 0.0
    %2159 = vmatpush1.xpose.msra.mxu0 0.0
    %2160 = vmatprep.subr.mxu0 0.0
    %2161 = vmatpush1.xpose.msra.mxu0 0.0
    %2162 = vmatprep.subr.mxu0 0.0
    %2163 = vmatpush1.xpose.msra.mxu0 0.0
    %2164 = vmatprep.subr.mxu0 0.0
    %2165 = vmatpush1.xpose.msra.mxu0 0.0
    %2166 = vmatprep.subr.mxu0 0.0
    %2167 = vmatpush1.xpose.msra.mxu0 0.0
    %2168 = vmatprep.subr.mxu0 0.0
    %2169 = vmatpush1.xpose.msra.mxu0 0.0
    %2170 = vmatprep.subr.mxu0 0.0
    %2171 = vmatpush1.xpose.msra.mxu0 0.0
    %2172 = vmatprep.subr.mxu0 0.0
    %2173 = vmatpush1.xpose.msra.mxu0 0.0
    %2174 = vmatprep.subr.mxu0 0.0
    %2175 = vmatpush1.xpose.msra.mxu0 0.0
    %2176 = vmatprep.subr.mxu0 0.0
    %2177 = vmatpush1.xpose.msra.mxu0 0.0
    %2178 = vmatprep.subr.mxu0 0.0
    %2179 = vmatpush1.xpose.msra.mxu0 0.0
    %2180 = vmatprep.subr.mxu0 0.0
    %2181 = vmatpush1.xpose.msra.mxu0 0.0
    %2182 = vmatprep.subr.mxu0 0.0
    %2183 = vmatpush1.xpose.msra.mxu0 0.0
    %2184 = vmatprep.subr.mxu0 0.0
    %2185 = vmatpush1.xpose.msra.mxu0 0.0
    %2186 = vmatprep.subr.mxu0 0.0
    %2187 = vmatpush1.xpose.msra.mxu0 0.0
    %2188 = vmatprep.subr.mxu0 0.0
    %2189 = vmatpush1.xpose.msra.mxu0 0.0
    %2190 = vmatprep.subr.mxu0 0.0
    %2191 = vmatpush1.xpose.msra.mxu0 0.0
    %2192 = vmatprep.subr.mxu0 0.0
    %2193 = vmatpush1.xpose.msra.mxu0 0.0
    %2194 = vmatprep.subr.mxu0 0.0
    %2195 = vmatpush1.xpose.msra.mxu0 0.0
    %2196 = vmatprep.subr.mxu0 0.0
    %2197 = vmatpush1.xpose.msra.mxu0 0.0
    %2198 = vmatprep.mubr.f32.mxu0 0.0
    %2199 = vmatmul.mubr.f32.gmra.mrb[0].mxu0 %v2126
    %v2200 = vpop.f32.mrb[0].mxu0
    %v2201 = vadd.f32 0.0, %v2200
    %v2202 = vpop.f32.mrb[0].mxu0
    %2203 = vmatprep.mubr.f32.mxu0 0.0
    %2204 = vmatmul.mubr.f32.gmra.mrb[0].mxu0 %v2128
    %v2205 = vpop.f32.mrb[0].mxu0
    %v2206 = vadd.f32 0.0, %v2205
    %v2207 = vpop.f32.mrb[0].mxu0
    %2208 = vdwg.mxu0
    %v2209 = vsel %vm302, %v2201, -inf
    %2210 = vmax.xlane.f32.xlu0 %v2209
    %v2211 = vpop.xlane.xlu0 %2210
    %v2212 = vsel %vm302, %v2206, -inf
    %2213 = vmax.xlane.f32.xlu0 %v2212
    %v2214 = vpop.xlane.xlu0 %2213
    %v2215 = vsub.f32 %v2201, %v2211
    %v2216 = vsub.f32 %v2206, %v2214
    %v2217 = vmul.f32 %v2215, 1.442695
    %v2218 = vpow.pop %v2217
    %v2219 = vmul.f32 %v2216, 1.442695
    %v2220 = vpow.pop %v2219
    %v2221 = vsel %vm302, %v2218, 0.0
    %2222 = vadd.xlane.f32.xlu0 %v2221
    %v2223 = vpop.xlane.xlu0 %2222
    %v2224 = vsel %vm302, %v2220, 0.0
    %2225 = vadd.xlane.f32.xlu0 %v2224
    %v2226 = vpop.xlane.xlu0 %2225
    %v2227 = vrcp.pop %v2223
    %v2228 = vrcp.pop %v2226
    %v2229 = vmul.f32 %v2218, %v2227
    %v2230 = vmul.f32 %v2220, %v2228
    %2231 = vrot.lane.b32.xlu0 %v1704, 64
    %v2232 = vpop.permute.xlu0 %2231
    %2233 = vrot.lane.b32.xlu0 %v1709, 64
    %v2234 = vpop.permute.xlu0 %2233
    %v2238 = vsel %vm302, %v2229, 0
    %v2241 = vsel %vm302, %v2230, 0
    %2243 = vmatprep.subr.mxu0 0.0
    %2244 = vmatpush1.msra.mxu0 %v2232
    %2245 = vmatprep.subr.mxu0 0.0
    %2246 = vmatpush1.msra.mxu0 %v2234
    %2247 = vmatprep.subr.mxu0 0.0
    %2248 = vmatpush1.msra.mxu0 0.0
    %2249 = vmatprep.subr.mxu0 0.0
    %2250 = vmatpush1.msra.mxu0 0.0
    %2251 = vmatprep.subr.mxu0 0.0
    %2252 = vmatpush1.msra.mxu0 0.0
    %2253 = vmatprep.subr.mxu0 0.0
    %2254 = vmatpush1.msra.mxu0 0.0
    %2255 = vmatprep.subr.mxu0 0.0
    %2256 = vmatpush1.msra.mxu0 0.0
    %2257 = vmatprep.subr.mxu0 0.0
    %2258 = vmatpush1.msra.mxu0 0.0
    %2259 = vmatprep.subr.mxu0 0.0
    %2260 = vmatpush1.msra.mxu0 0.0
    %2261 = vmatprep.subr.mxu0 0.0
    %2262 = vmatpush1.msra.mxu0 0.0
    %2263 = vmatprep.subr.mxu0 0.0
    %2264 = vmatpush1.msra.mxu0 0.0
    %2265 = vmatprep.subr.mxu0 0.0
    %2266 = vmatpush1.msra.mxu0 0.0
    %2267 = vmatprep.subr.mxu0 0.0
    %2268 = vmatpush1.msra.mxu0 0.0
    %2269 = vmatprep.subr.mxu0 0.0
    %2270 = vmatpush1.msra.mxu0 0.0
    %2271 = vmatprep.subr.mxu0 0.0
    %2272 = vmatpush1.msra.mxu0 0.0
    %2273 = vmatprep.subr.mxu0 0.0
    %2274 = vmatpush1.msra.mxu0 0.0
    %2275 = vmatprep.subr.mxu0 0.0
    %2276 = vmatpush1.msra.mxu0 0.0
    %2277 = vmatprep.subr.mxu0 0.0
    %2278 = vmatpush1.msra.mxu0 0.0
    %2279 = vmatprep.subr.mxu0 0.0
    %2280 = vmatpush1.msra.mxu0 0.0
    %2281 = vmatprep.subr.mxu0 0.0
    %2282 = vmatpush1.msra.mxu0 0.0
    %2283 = vmatprep.subr.mxu0 0.0
    %2284 = vmatpush1.msra.mxu0 0.0
    %2285 = vmatprep.subr.mxu0 0.0
    %2286 = vmatpush1.msra.mxu0 0.0
    %2287 = vmatprep.subr.mxu0 0.0
    %2288 = vmatpush1.msra.mxu0 0.0
    %2289 = vmatprep.subr.mxu0 0.0
    %2290 = vmatpush1.msra.mxu0 0.0
    %2291 = vmatprep.subr.mxu0 0.0
    %2292 = vmatpush1.msra.mxu0 0.0
    %2293 = vmatprep.subr.mxu0 0.0
    %2294 = vmatpush1.msra.mxu0 0.0
    %2295 = vmatprep.subr.mxu0 0.0
    %2296 = vmatpush1.msra.mxu0 0.0
    %2297 = vmatprep.subr.mxu0 0.0
    %2298 = vmatpush1.msra.mxu0 0.0
    %2299 = vmatprep.subr.mxu0 0.0
    %2300 = vmatpush1.msra.mxu0 0.0
    %2301 = vmatprep.subr.mxu0 0.0
    %2302 = vmatpush1.msra.mxu0 0.0
    %2303 = vmatprep.subr.mxu0 0.0
    %2304 = vmatpush1.msra.mxu0 0.0
    %2305 = vmatprep.subr.mxu0 0.0
    %2306 = vmatpush1.msra.mxu0 0.0
    %2307 = vmatprep.mubr.f32.mxu0 0.0
    %2308 = vmatmul.mubr.f32.gmra.mrb[0].mxu0 %v2238
    %v2309 = vpop.f32.mrb[0].mxu0
    %v2310 = vadd.f32 0.0, %v2309
    %v2311 = vpop.f32.mrb[0].mxu0
    %2312 = vmatprep.mubr.f32.mxu0 0.0
    %2313 = vmatmul.mubr.f32.gmra.mrb[0].mxu0 %v2241
    %v2314 = vpop.f32.mrb[0].mxu0
    %v2315 = vadd.f32 0.0, %v2314
    %v2316 = vpop.f32.mrb[0].mxu0
    %2317 = vdwg.mxu0
    %2318 = vrot.lane.b32.xlu0 %v1704, 112
    %v2319 = vpop.permute.xlu0 %2318
    %2320 = vrot.lane.b32.xlu0 %v1709, 112
    %v2321 = vpop.permute.xlu0 %2320
    %2322 = vrot.lane.b32.xlu0 %v1704, 80
    %v2323 = vpop.permute.xlu0 %2322
    %2324 = vrot.lane.b32.xlu0 %v1709, 80
    %v2325 = vpop.permute.xlu0 %2324
    %v2326 = vsel %vm302, %v2319, 0
    %v2328 = vsel %vm302, %v2321, 0
    %v2330 = vsel %vm302, %v2323, 0
    %v2332 = vsel %vm302, %v2325, 0
    %2334 = vmatprep.subr.mxu0 0.0
    %2335 = vmatpush1.xpose.msra.mxu0 %v2330
    %2336 = vmatprep.subr.mxu0 0.0
    %2337 = vmatpush1.xpose.msra.mxu0 %v2332
    %2338 = vmatprep.subr.mxu0 0.0
    %2339 = vmatpush1.xpose.msra.mxu0 0.0
    %2340 = vmatprep.subr.mxu0 0.0
    %2341 = vmatpush1.xpose.msra.mxu0 0.0
    %2342 = vmatprep.subr.mxu0 0.0
    %2343 = vmatpush1.xpose.msra.mxu0 0.0
    %2344 = vmatprep.subr.mxu0 0.0
    %2345 = vmatpush1.xpose.msra.mxu0 0.0
    %2346 = vmatprep.subr.mxu0 0.0
    %2347 = vmatpush1.xpose.msra.mxu0 0.0
    %2348 = vmatprep.subr.mxu0 0.0
    %2349 = vmatpush1.xpose.msra.mxu0 0.0
    %2350 = vmatprep.subr.mxu0 0.0
    %2351 = vmatpush1.xpose.msra.mxu0 0.0
    %2352 = vmatprep.subr.mxu0 0.0
    %2353 = vmatpush1.xpose.msra.mxu0 0.0
    %2354 = vmatprep.subr.mxu0 0.0
    %2355 = vmatpush1.xpose.msra.mxu0 0.0
    %2356 = vmatprep.subr.mxu0 0.0
    %2357 = vmatpush1.xpose.msra.mxu0 0.0
    %2358 = vmatprep.subr.mxu0 0.0
    %2359 = vmatpush1.xpose.msra.mxu0 0.0
    %2360 = vmatprep.subr.mxu0 0.0
    %2361 = vmatpush1.xpose.msra.mxu0 0.0
    %2362 = vmatprep.subr.mxu0 0.0
    %2363 = vmatpush1.xpose.msra.mxu0 0.0
    %2364 = vmatprep.subr.mxu0 0.0
    %2365 = vmatpush1.xpose.msra.mxu0 0.0
    %2366 = vmatprep.subr.mxu0 0.0
    %2367 = vmatpush1.xpose.msra.mxu0 0.0
    %2368 = vmatprep.subr.mxu0 0.0
    %2369 = vmatpush1.xpose.msra.mxu0 0.0
    %2370 = vmatprep.subr.mxu0 0.0
    %2371 = vmatpush1.xpose.msra.mxu0 0.0
    %2372 = vmatprep.subr.mxu0 0.0
    %2373 = vmatpush1.xpose.msra.mxu0 0.0
    %2374 = vmatprep.subr.mxu0 0.0
    %2375 = vmatpush1.xpose.msra.mxu0 0.0
    %2376 = vmatprep.subr.mxu0 0.0
    %2377 = vmatpush1.xpose.msra.mxu0 0.0
    %2378 = vmatprep.subr.mxu0 0.0
    %2379 = vmatpush1.xpose.msra.mxu0 0.0
    %2380 = vmatprep.subr.mxu0 0.0
    %2381 = vmatpush1.xpose.msra.mxu0 0.0
    %2382 = vmatprep.subr.mxu0 0.0
    %2383 = vmatpush1.xpose.msra.mxu0 0.0
    %2384 = vmatprep.subr.mxu0 0.0
    %2385 = vmatpush1.xpose.msra.mxu0 0.0
    %2386 = vmatprep.subr.mxu0 0.0
    %2387 = vmatpush1.xpose.msra.mxu0 0.0
    %2388 = vmatprep.subr.mxu0 0.0
    %2389 = vmatpush1.xpose.msra.mxu0 0.0
    %2390 = vmatprep.subr.mxu0 0.0
    %2391 = vmatpush1.xpose.msra.mxu0 0.0
    %2392 = vmatprep.subr.mxu0 0.0
    %2393 = vmatpush1.xpose.msra.mxu0 0.0
    %2394 = vmatprep.subr.mxu0 0.0
    %2395 = vmatpush1.xpose.msra.mxu0 0.0
    %2396 = vmatprep.subr.mxu0 0.0
    %2397 = vmatpush1.xpose.msra.mxu0 0.0
    %2398 = vmatprep.mubr.f32.mxu0 0.0
    %2399 = vmatmul.mubr.f32.gmra.mrb[0].mxu0 %v2326
    %v2400 = vpop.f32.mrb[0].mxu0
    %v2401 = vadd.f32 0.0, %v2400
    %v2402 = vpop.f32.mrb[0].mxu0
    %2403 = vmatprep.mubr.f32.mxu0 0.0
    %2404 = vmatmul.mubr.f32.gmra.mrb[0].mxu0 %v2328
    %v2405 = vpop.f32.mrb[0].mxu0
    %v2406 = vadd.f32 0.0, %v2405
    %v2407 = vpop.f32.mrb[0].mxu0
    %2408 = vdwg.mxu0
    %v2409 = vsel %vm302, %v2401, -inf
    %2410 = vmax.xlane.f32.xlu0 %v2409
    %v2411 = vpop.xlane.xlu0 %2410
    %v2412 = vsel %vm302, %v2406, -inf
    %2413 = vmax.xlane.f32.xlu0 %v2412
    %v2414 = vpop.xlane.xlu0 %2413
    %v2415 = vsub.f32 %v2401, %v2411
    %v2416 = vsub.f32 %v2406, %v2414
    %v2417 = vmul.f32 %v2415, 1.442695
    %v2418 = vpow.pop %v2417
    %v2419 = vmul.f32 %v2416, 1.442695
    %v2420 = vpow.pop %v2419
    %v2421 = vsel %vm302, %v2418, 0.0
    %2422 = vadd.xlane.f32.xlu0 %v2421
    %v2423 = vpop.xlane.xlu0 %2422
    %v2424 = vsel %vm302, %v2420, 0.0
    %2425 = vadd.xlane.f32.xlu0 %v2424
    %v2426 = vpop.xlane.xlu0 %2425
    %v2427 = vrcp.pop %v2423
    %v2428 = vrcp.pop %v2426
    %v2429 = vmul.f32 %v2418, %v2427
    %v2430 = vmul.f32 %v2420, %v2428
    %2431 = vrot.lane.b32.xlu0 %v1704, 48
    %v2432 = vpop.permute.xlu0 %2431
    %2433 = vrot.lane.b32.xlu0 %v1709, 48
    %v2434 = vpop.permute.xlu0 %2433
    %v2438 = vsel %vm302, %v2429, 0
    %v2441 = vsel %vm302, %v2430, 0
    %2443 = vmatprep.subr.mxu0 0.0
    %2444 = vmatpush1.msra.mxu0 %v2432
    %2445 = vmatprep.subr.mxu0 0.0
    %2446 = vmatpush1.msra.mxu0 %v2434
    %2447 = vmatprep.subr.mxu0 0.0
    %2448 = vmatpush1.msra.mxu0 0.0
    %2449 = vmatprep.subr.mxu0 0.0
    %2450 = vmatpush1.msra.mxu0 0.0
    %2451 = vmatprep.subr.mxu0 0.0
    %2452 = vmatpush1.msra.mxu0 0.0
    %2453 = vmatprep.subr.mxu0 0.0
    %2454 = vmatpush1.msra.mxu0 0.0
    %2455 = vmatprep.subr.mxu0 0.0
    %2456 = vmatpush1.msra.mxu0 0.0
    %2457 = vmatprep.subr.mxu0 0.0
    %2458 = vmatpush1.msra.mxu0 0.0
    %2459 = vmatprep.subr.mxu0 0.0
    %2460 = vmatpush1.msra.mxu0 0.0
    %2461 = vmatprep.subr.mxu0 0.0
    %2462 = vmatpush1.msra.mxu0 0.0
    %2463 = vmatprep.subr.mxu0 0.0
    %2464 = vmatpush1.msra.mxu0 0.0
    %2465 = vmatprep.subr.mxu0 0.0
    %2466 = vmatpush1.msra.mxu0 0.0
    %2467 = vmatprep.subr.mxu0 0.0
    %2468 = vmatpush1.msra.mxu0 0.0
    %2469 = vmatprep.subr.mxu0 0.0
    %2470 = vmatpush1.msra.mxu0 0.0
    %2471 = vmatprep.subr.mxu0 0.0
    %2472 = vmatpush1.msra.mxu0 0.0
    %2473 = vmatprep.subr.mxu0 0.0
    %2474 = vmatpush1.msra.mxu0 0.0
    %2475 = vmatprep.subr.mxu0 0.0
    %2476 = vmatpush1.msra.mxu0 0.0
    %2477 = vmatprep.subr.mxu0 0.0
    %2478 = vmatpush1.msra.mxu0 0.0
    %2479 = vmatprep.subr.mxu0 0.0
    %2480 = vmatpush1.msra.mxu0 0.0
    %2481 = vmatprep.subr.mxu0 0.0
    %2482 = vmatpush1.msra.mxu0 0.0
    %2483 = vmatprep.subr.mxu0 0.0
    %2484 = vmatpush1.msra.mxu0 0.0
    %2485 = vmatprep.subr.mxu0 0.0
    %2486 = vmatpush1.msra.mxu0 0.0
    %2487 = vmatprep.subr.mxu0 0.0
    %2488 = vmatpush1.msra.mxu0 0.0
    %2489 = vmatprep.subr.mxu0 0.0
    %2490 = vmatpush1.msra.mxu0 0.0
    %2491 = vmatprep.subr.mxu0 0.0
    %2492 = vmatpush1.msra.mxu0 0.0
    %2493 = vmatprep.subr.mxu0 0.0
    %2494 = vmatpush1.msra.mxu0 0.0
    %2495 = vmatprep.subr.mxu0 0.0
    %2496 = vmatpush1.msra.mxu0 0.0
    %2497 = vmatprep.subr.mxu0 0.0
    %2498 = vmatpush1.msra.mxu0 0.0
    %2499 = vmatprep.subr.mxu0 0.0
    %2500 = vmatpush1.msra.mxu0 0.0
    %2501 = vmatprep.subr.mxu0 0.0
    %2502 = vmatpush1.msra.mxu0 0.0
    %2503 = vmatprep.subr.mxu0 0.0
    %2504 = vmatpush1.msra.mxu0 0.0
    %2505 = vmatprep.subr.mxu0 0.0
    %2506 = vmatpush1.msra.mxu0 0.0
    %2507 = vmatprep.mubr.f32.mxu0 0.0
    %2508 = vmatmul.mubr.f32.gmra.mrb[0].mxu0 %v2438
    %v2509 = vpop.f32.mrb[0].mxu0
    %v2510 = vadd.f32 0.0, %v2509
    %v2511 = vpop.f32.mrb[0].mxu0
    %2512 = vmatprep.mubr.f32.mxu0 0.0
    %2513 = vmatmul.mubr.f32.gmra.mrb[0].mxu0 %v2441
    %v2514 = vpop.f32.mrb[0].mxu0
    %v2515 = vadd.f32 0.0, %v2514
    %v2516 = vpop.f32.mrb[0].mxu0
    %2517 = vdwg.mxu0
    %2520 = vrot.lane.b32.xlu0 %v2510, 16
    %v2521 = vpop.permute.xlu0 %2520
    %2522 = vrot.lane.b32.xlu0 %v2515, 16
    %v2523 = vpop.permute.xlu0 %2522
    %v2526 = vsel %vm302, %v2310, %v2521
    %v2527 = vsel %vm302, %v2315, %v2523
    %s2528 = scalar_lea.vmem %s7, 32
    %v2529 = vld [vmem:[%s2528] sm:$0xff]
    %v2530 = vld [vmem:[%s2528 + $0x8] sm:$0xff]
    %v2531 = vld [vmem:[%s2528 + $0x10] sm:$0xff]
    %v2532 = vld [vmem:[%s2528 + $0x18] sm:$0xff]
    %s2533 = scalar_lea.vmem %s8, 1
    %v2534 = vld [vmem:[%s2533] sm:$0x1]
    %v2536 = vlaneseq
    %v2537 = vshrl.u32 %v2536, 7
    %v2538 = vsub.s32 0, %v2537
    %v2539 = vrot.slane %v2534, %v2538
    %v2542 = vsel %vm114, %v2118, 0
    %v2545 = vsel %vm114, %v2119, 0
    %v2548 = vsel %vm114, %v2526, 0
    %v2551 = vsel %vm114, %v2527, 0
    %2553 = vmatprep.subr.mxu0 0.0
    %2554 = vmatpush1.msra.mxu0 %v2529
    %2555 = vmatprep.subr.mxu0 0.0
    %2556 = vmatpush1.msra.mxu0 %v2530
    %2557 = vmatprep.subr.mxu0 0.0
    %2558 = vmatpush1.msra.mxu0 %v2531
    %2559 = vmatprep.subr.mxu0 0.0
    %2560 = vmatpush1.msra.mxu0 %v2532
    %2561 = vmatprep.subr.mxu0 0.0
    %2562 = vmatpush1.msra.mxu0 0.0
    %2563 = vmatprep.subr.mxu0 0.0
    %2564 = vmatpush1.msra.mxu0 0.0
    %2565 = vmatprep.subr.mxu0 0.0
    %2566 = vmatpush1.msra.mxu0 0.0
    %2567 = vmatprep.subr.mxu0 0.0
    %2568 = vmatpush1.msra.mxu0 0.0
    %2569 = vmatprep.subr.mxu0 0.0
    %2570 = vmatpush1.msra.mxu0 0.0
    %2571 = vmatprep.subr.mxu0 0.0
    %2572 = vmatpush1.msra.mxu0 0.0
    %2573 = vmatprep.subr.mxu0 0.0
    %2574 = vmatpush1.msra.mxu0 0.0
    %2575 = vmatprep.subr.mxu0 0.0
    %2576 = vmatpush1.msra.mxu0 0.0
    %2577 = vmatprep.subr.mxu0 0.0
    %2578 = vmatpush1.msra.mxu0 0.0
    %2579 = vmatprep.subr.mxu0 0.0
    %2580 = vmatpush1.msra.mxu0 0.0
    %2581 = vmatprep.subr.mxu0 0.0
    %2582 = vmatpush1.msra.mxu0 0.0
    %2583 = vmatprep.subr.mxu0 0.0
    %2584 = vmatpush1.msra.mxu0 0.0
    %2585 = vmatprep.subr.mxu0 0.0
    %2586 = vmatpush1.msra.mxu0 0.0
    %2587 = vmatprep.subr.mxu0 0.0
    %2588 = vmatpush1.msra.mxu0 0.0
    %2589 = vmatprep.subr.mxu0 0.0
    %2590 = vmatpush1.msra.mxu0 0.0
    %2591 = vmatprep.subr.mxu0 0.0
    %2592 = vmatpush1.msra.mxu0 0.0
    %2593 = vmatprep.subr.mxu0 0.0
    %2594 = vmatpush1.msra.mxu0 0.0
    %2595 = vmatprep.subr.mxu0 0.0
    %2596 = vmatpush1.msra.mxu0 0.0
    %2597 = vmatprep.subr.mxu0 0.0
    %2598 = vmatpush1.msra.mxu0 0.0
    %2599 = vmatprep.subr.mxu0 0.0
    %2600 = vmatpush1.msra.mxu0 0.0
    %2601 = vmatprep.subr.mxu0 0.0
    %2602 = vmatpush1.msra.mxu0 0.0
    %2603 = vmatprep.subr.mxu0 0.0
    %2604 = vmatpush1.msra.mxu0 0.0
    %2605 = vmatprep.subr.mxu0 0.0
    %2606 = vmatpush1.msra.mxu0 0.0
    %2607 = vmatprep.subr.mxu0 0.0
    %2608 = vmatpush1.msra.mxu0 0.0
    %2609 = vmatprep.subr.mxu0 0.0
    %2610 = vmatpush1.msra.mxu0 0.0
    %2611 = vmatprep.subr.mxu0 0.0
    %2612 = vmatpush1.msra.mxu0 0.0
    %2613 = vmatprep.subr.mxu0 0.0
    %2614 = vmatpush1.msra.mxu0 0.0
    %2615 = vmatprep.subr.mxu0 0.0
    %2616 = vmatpush1.msra.mxu0 0.0
    %2617 = vmatprep.mubr.f32.mxu0 0.0
    %2618 = vmatmul.mubr.f32.gmra.mrb[0].mxu0 %v2542
    %v2619 = vpop.f32.mrb[0].mxu0
    %v2620 = vadd.f32 %v2539, %v2619
    %v2621 = vpop.f32.mrb[0].mxu0
    %2622 = vmatprep.mubr.f32.mxu0 0.0
    %2623 = vmatmul.mubr.f32.gmra.mrb[0].mxu0 %v2545
    %v2624 = vpop.f32.mrb[0].mxu0
    %v2625 = vadd.f32 %v2539, %v2624
    %v2626 = vpop.f32.mrb[0].mxu0
    %2627 = vmatprep.mubr.f32.mxu0 0.0
    %2628 = vmatmul.mubr.f32.gmra.mrb[0].mxu0 %v2548
    %v2629 = vpop.f32.mrb[0].mxu0
    %v2630 = vadd.f32 %v2539, %v2629
    %v2631 = vpop.f32.mrb[0].mxu0
    %2632 = vmatprep.mubr.f32.mxu0 0.0
    %2633 = vmatmul.mubr.f32.gmra.mrb[0].mxu0 %v2551
    %v2634 = vpop.f32.mrb[0].mxu0
    %v2635 = vadd.f32 %v2539, %v2634
    %v2636 = vpop.f32.mrb[0].mxu0
    %2637 = vdwg.mxu0
    %v2638 = vadd.f32 %v1598, %v2620
    %v2639 = vadd.f32 %v1599, %v2625
    %v2640 = vadd.f32 %v1600, %v2630
    %v2641 = vadd.f32 %v1601, %v2635
    %s2642 = scalar_lea.vmem %s9, 1
    %v2643 = vld [vmem:[%s2642] sm:$0x1]
    %s2644 = scalar_lea.vmem %s10, 1
    %v2645 = vld [vmem:[%s2644] sm:$0x1]
    %v2646 = vsel %vm114, %v2638, 0.0
    %2647 = vadd.xlane.f32.xlu0 %v2646
    %v2648 = vpop.xlane.xlu0 %2647
    %v2649 = vsel %vm114, %v2639, 0.0
    %2650 = vadd.xlane.f32.xlu0 %v2649
    %v2651 = vpop.xlane.xlu0 %2650
    %v2652 = vsel %vm114, %v2640, 0.0
    %2653 = vadd.xlane.f32.xlu0 %v2652
    %v2654 = vpop.xlane.xlu0 %2653
    %v2655 = vsel %vm114, %v2641, 0.0
    %2656 = vadd.xlane.f32.xlu0 %v2655
    %v2657 = vpop.xlane.xlu0 %2656
    %v2658 = vmul.f32 %v2648, %v127
    %v2659 = vmul.f32 %v2651, %v127
    %v2660 = vmul.f32 %v2654, %v127
    %v2661 = vmul.f32 %v2657, %v127
    %v2662 = vsub.f32 %v2638, %v2658
    %v2663 = vsub.f32 %v2639, %v2659
    %v2664 = vsub.f32 %v2640, %v2660
    %v2665 = vsub.f32 %v2641, %v2661
    %v2666 = vmul.f32 %v2662, %v2662
    %v2667 = vmul.f32 %v2663, %v2663
    %v2668 = vmul.f32 %v2664, %v2664
    %v2669 = vmul.f32 %v2665, %v2665
    %v2670 = vsel %vm114, %v2666, 0.0
    %2671 = vadd.xlane.f32.xlu0 %v2670
    %v2672 = vpop.xlane.xlu0 %2671
    %v2673 = vsel %vm114, %v2667, 0.0
    %2674 = vadd.xlane.f32.xlu0 %v2673
    %v2675 = vpop.xlane.xlu0 %2674
    %v2676 = vsel %vm114, %v2668, 0.0
    %2677 = vadd.xlane.f32.xlu0 %v2676
    %v2678 = vpop.xlane.xlu0 %2677
    %v2679 = vsel %vm114, %v2669, 0.0
    %2680 = vadd.xlane.f32.xlu0 %v2679
    %v2681 = vpop.xlane.xlu0 %2680
    %v2682 = vmul.f32 %v2672, %v127
    %v2683 = vmul.f32 %v2675, %v127
    %v2684 = vmul.f32 %v2678, %v127
    %v2685 = vmul.f32 %v2681, %v127
    %v2686 = vadd.f32 %v2682, 1e-05
    %v2687 = vadd.f32 %v2683, 1e-05
    %v2688 = vadd.f32 %v2684, 1e-05
    %v2689 = vadd.f32 %v2685, 1e-05
    %v2690 = vrsqrt.pop %v2686
    %v2691 = vrsqrt.pop %v2687
    %v2692 = vrsqrt.pop %v2688
    %v2693 = vrsqrt.pop %v2689
    %v2694 = vmul.f32 %v2662, %v2690
    %v2695 = vmul.f32 %v2663, %v2691
    %v2696 = vmul.f32 %v2664, %v2692
    %v2697 = vmul.f32 %v2665, %v2693
    %v2699 = vlaneseq
    %v2700 = vshrl.u32 %v2699, 7
    %v2701 = vsub.s32 0, %v2700
    %v2702 = vrot.slane %v2643, %v2701
    %v2704 = vmul.f32 %v2694, %v2702
    %v2705 = vmul.f32 %v2695, %v2702
    %v2706 = vmul.f32 %v2696, %v2702
    %v2707 = vmul.f32 %v2697, %v2702
    %v2709 = vlaneseq
    %v2710 = vshrl.u32 %v2709, 7
    %v2711 = vsub.s32 0, %v2710
    %v2712 = vrot.slane %v2645, %v2711
    %v2714 = vadd.f32 %v2704, %v2712
    %v2715 = vadd.f32 %v2705, %v2712
    %v2716 = vadd.f32 %v2706, %v2712
    %v2717 = vadd.f32 %v2707, %v2712
    %s2718 = scalar_lea.vmem %s11, 32
    %v2719 = vld [vmem:[%s2718] sm:$0xff]
    %v2720 = vld [vmem:[%s2718 + $0x8] sm:$0xff]
    %v2721 = vld [vmem:[%s2718 + $0x10] sm:$0xff]
    %v2722 = vld [vmem:[%s2718 + $0x18] sm:$0xff]
    %s2723 = scalar_lea.vmem %s12, 1
    %v2724 = vld [vmem:[%s2723] sm:$0x1]
    %v2726 = vlaneseq
    %v2727 = vshrl.u32 %v2726, 7
    %v2728 = vsub.s32 0, %v2727
    %v2729 = vrot.slane %v2724, %v2728
    %v2732 = vsel %vm114, %v2714, 0
    %v2735 = vsel %vm114, %v2715, 0
    %v2738 = vsel %vm114, %v2716, 0
    %v2741 = vsel %vm114, %v2717, 0
    %2743 = vmatprep.subr.mxu0 0.0
    %2744 = vmatpush1.msra.mxu0 %v2719
    %2745 = vmatprep.subr.mxu0 0.0
    %2746 = vmatpush1.msra.mxu0 %v2720
    %2747 = vmatprep.subr.mxu0 0.0
    %2748 = vmatpush1.msra.mxu0 %v2721
    %2749 = vmatprep.subr.mxu0 0.0
    %2750 = vmatpush1.msra.mxu0 %v2722
    %2751 = vmatprep.subr.mxu0 0.0
    %2752 = vmatpush1.msra.mxu0 0.0
    %2753 = vmatprep.subr.mxu0 0.0
    %2754 = vmatpush1.msra.mxu0 0.0
    %2755 = vmatprep.subr.mxu0 0.0
    %2756 = vmatpush1.msra.mxu0 0.0
    %2757 = vmatprep.subr.mxu0 0.0
    %2758 = vmatpush1.msra.mxu0 0.0
    %2759 = vmatprep.subr.mxu0 0.0
    %2760 = vmatpush1.msra.mxu0 0.0
    %2761 = vmatprep.subr.mxu0 0.0
    %2762 = vmatpush1.msra.mxu0 0.0
    %2763 = vmatprep.subr.mxu0 0.0
    %2764 = vmatpush1.msra.mxu0 0.0
    %2765 = vmatprep.subr.mxu0 0.0
    %2766 = vmatpush1.msra.mxu0 0.0
    %2767 = vmatprep.subr.mxu0 0.0
    %2768 = vmatpush1.msra.mxu0 0.0
    %2769 = vmatprep.subr.mxu0 0.0
    %2770 = vmatpush1.msra.mxu0 0.0
    %2771 = vmatprep.subr.mxu0 0.0
    %2772 = vmatpush1.msra.mxu0 0.0
    %2773 = vmatprep.subr.mxu0 0.0
    %2774 = vmatpush1.msra.mxu0 0.0
    %2775 = vmatprep.subr.mxu0 0.0
    %2776 = vmatpush1.msra.mxu0 0.0
    %2777 = vmatprep.subr.mxu0 0.0
    %2778 = vmatpush1.msra.mxu0 0.0
    %2779 = vmatprep.subr.mxu0 0.0
    %2780 = vmatpush1.msra.mxu0 0.0
    %2781 = vmatprep.subr.mxu0 0.0
    %2782 = vmatpush1.msra.mxu0 0.0
    %2783 = vmatprep.subr.mxu0 0.0
    %2784 = vmatpush1.msra.mxu0 0.0
    %2785 = vmatprep.subr.mxu0 0.0
    %2786 = vmatpush1.msra.mxu0 0.0
    %2787 = vmatprep.subr.mxu0 0.0
    %2788 = vmatpush1.msra.mxu0 0.0
    %2789 = vmatprep.subr.mxu0 0.0
    %2790 = vmatpush1.msra.mxu0 0.0
    %2791 = vmatprep.subr.mxu0 0.0
    %2792 = vmatpush1.msra.mxu0 0.0
    %2793 = vmatprep.subr.mxu0 0.0
    %2794 = vmatpush1.msra.mxu0 0.0
    %2795 = vmatprep.subr.mxu0 0.0
    %2796 = vmatpush1.msra.mxu0 0.0
    %2797 = vmatprep.subr.mxu0 0.0
    %2798 = vmatpush1.msra.mxu0 0.0
    %2799 = vmatprep.subr.mxu0 0.0
    %2800 = vmatpush1.msra.mxu0 0.0
    %2801 = vmatprep.subr.mxu0 0.0
    %2802 = vmatpush1.msra.mxu0 0.0
    %2803 = vmatprep.subr.mxu0 0.0
    %2804 = vmatpush1.msra.mxu0 0.0
    %2805 = vmatprep.subr.mxu0 0.0
    %2806 = vmatpush1.msra.mxu0 0.0
    %2807 = vmatprep.mubr.f32.mxu0 0.0
    %2808 = vmatmul.mubr.f32.gmra.mrb[0].mxu0 %v2732
    %v2809 = vpop.f32.mrb[0].mxu0
    %v2810 = vadd.f32 %v2729, %v2809
    %v2811 = vpop.f32.mrb[0].mxu0
    %2812 = vmatprep.mubr.f32.mxu0 0.0
    %2813 = vmatmul.mubr.f32.gmra.mrb[0].mxu0 %v2735
    %v2814 = vpop.f32.mrb[0].mxu0
    %v2815 = vadd.f32 %v2729, %v2814
    %v2816 = vpop.f32.mrb[0].mxu0
    %2817 = vmatprep.mubr.f32.mxu0 0.0
    %2818 = vmatmul.mubr.f32.gmra.mrb[0].mxu0 %v2738
    %v2819 = vpop.f32.mrb[0].mxu0
    %v2820 = vadd.f32 %v2729, %v2819
    %v2821 = vpop.f32.mrb[0].mxu0
    %2822 = vmatprep.mubr.f32.mxu0 0.0
    %2823 = vmatmul.mubr.f32.gmra.mrb[0].mxu0 %v2741
    %v2824 = vpop.f32.mrb[0].mxu0
    %v2825 = vadd.f32 %v2729, %v2824
    %v2826 = vpop.f32.mrb[0].mxu0
    %2827 = vdwg.mxu0
    %v2828 = vmax.f32 %v2810, 0.0
    %v2829 = vmax.f32 %v2815, 0.0
    %v2830 = vmax.f32 %v2820, 0.0
    %v2831 = vmax.f32 %v2825, 0.0
    %s2832 = scalar_lea.vmem %s13, 64
    %v2833 = vld [vmem:[%s2832] sm:$0xff]
    %v2834 = vld [vmem:[%s2832 + $0x8] sm:$0xff]
    %v2835 = vld [vmem:[%s2832 + $0x10] sm:$0xff]
    %v2836 = vld [vmem:[%s2832 + $0x18] sm:$0xff]
    %v2837 = vld [vmem:[%s2832 + $0x20] sm:$0xff]
    %v2838 = vld [vmem:[%s2832 + $0x28] sm:$0xff]
    %v2839 = vld [vmem:[%s2832 + $0x30] sm:$0xff]
    %v2840 = vld [vmem:[%s2832 + $0x38] sm:$0xff]
    %s2841 = scalar_lea.vmem %s14, 1
    %v2842 = vld [vmem:[%s2841] sm:$0x1]
    %v2844 = vlaneseq
    %v2845 = vshrl.u32 %v2844, 7
    %v2846 = vsub.s32 0, %v2845
    %v2847 = vrot.slane %v2842, %v2846
    %v2850 = vsel %vm1426, %v2828, 0
    %v2853 = vsel %vm1426, %v2829, 0
    %v2856 = vsel %vm1426, %v2830, 0
    %v2859 = vsel %vm1426, %v2831, 0
    %2861 = vmatprep.subr.mxu0 0.0
    %2862 = vmatpush1.msra.mxu0 %v2833
    %2863 = vmatprep.subr.mxu0 0.0
    %2864 = vmatpush1.msra.mxu0 %v2834
    %2865 = vmatprep.subr.mxu0 0.0
    %2866 = vmatpush1.msra.mxu0 %v2835
    %2867 = vmatprep.subr.mxu0 0.0
    %2868 = vmatpush1.msra.mxu0 %v2836
    %2869 = vmatprep.subr.mxu0 0.0
    %2870 = vmatpush1.msra.mxu0 %v2837
    %2871 = vmatprep.subr.mxu0 0.0
    %2872 = vmatpush1.msra.mxu0 %v2838
    %2873 = vmatprep.subr.mxu0 0.0
    %2874 = vmatpush1.msra.mxu0 %v2839
    %2875 = vmatprep.subr.mxu0 0.0
    %2876 = vmatpush1.msra.mxu0 %v2840
    %2877 = vmatprep.subr.mxu0 0.0
    %2878 = vmatpush1.msra.mxu0 0.0
    %2879 = vmatprep.subr.mxu0 0.0
    %2880 = vmatpush1.msra.mxu0 0.0
    %2881 = vmatprep.subr.mxu0 0.0
    %2882 = vmatpush1.msra.mxu0 0.0
    %2883 = vmatprep.subr.mxu0 0.0
    %2884 = vmatpush1.msra.mxu0 0.0
    %2885 = vmatprep.subr.mxu0 0.0
    %2886 = vmatpush1.msra.mxu0 0.0
    %2887 = vmatprep.subr.mxu0 0.0
    %2888 = vmatpush1.msra.mxu0 0.0
    %2889 = vmatprep.subr.mxu0 0.0
    %2890 = vmatpush1.msra.mxu0 0.0
    %2891 = vmatprep.subr.mxu0 0.0
    %2892 = vmatpush1.msra.mxu0 0.0
    %2893 = vmatprep.subr.mxu0 0.0
    %2894 = vmatpush1.msra.mxu0 0.0
    %2895 = vmatprep.subr.mxu0 0.0
    %2896 = vmatpush1.msra.mxu0 0.0
    %2897 = vmatprep.subr.mxu0 0.0
    %2898 = vmatpush1.msra.mxu0 0.0
    %2899 = vmatprep.subr.mxu0 0.0
    %2900 = vmatpush1.msra.mxu0 0.0
    %2901 = vmatprep.subr.mxu0 0.0
    %2902 = vmatpush1.msra.mxu0 0.0
    %2903 = vmatprep.subr.mxu0 0.0
    %2904 = vmatpush1.msra.mxu0 0.0
    %2905 = vmatprep.subr.mxu0 0.0
    %2906 = vmatpush1.msra.mxu0 0.0
    %2907 = vmatprep.subr.mxu0 0.0
    %2908 = vmatpush1.msra.mxu0 0.0
    %2909 = vmatprep.subr.mxu0 0.0
    %2910 = vmatpush1.msra.mxu0 0.0
    %2911 = vmatprep.subr.mxu0 0.0
    %2912 = vmatpush1.msra.mxu0 0.0
    %2913 = vmatprep.subr.mxu0 0.0
    %2914 = vmatpush1.msra.mxu0 0.0
    %2915 = vmatprep.subr.mxu0 0.0
    %2916 = vmatpush1.msra.mxu0 0.0
    %2917 = vmatprep.subr.mxu0 0.0
    %2918 = vmatpush1.msra.mxu0 0.0
    %2919 = vmatprep.subr.mxu0 0.0
    %2920 = vmatpush1.msra.mxu0 0.0
    %2921 = vmatprep.subr.mxu0 0.0
    %2922 = vmatpush1.msra.mxu0 0.0
    %2923 = vmatprep.subr.mxu0 0.0
    %2924 = vmatpush1.msra.mxu0 0.0
    %2925 = vmatprep.mubr.f32.mxu0 0.0
    %2926 = vmatmul.mubr.f32.gmra.mrb[0].mxu0 %v2850
    %v2927 = vpop.f32.mrb[0].mxu0
    %v2928 = vadd.f32 %v2847, %v2927
    %v2929 = vpop.f32.mrb[0].mxu0
    %2930 = vmatprep.mubr.f32.mxu0 0.0
    %2931 = vmatmul.mubr.f32.gmra.mrb[0].mxu0 %v2853
    %v2932 = vpop.f32.mrb[0].mxu0
    %v2933 = vadd.f32 %v2847, %v2932
    %v2934 = vpop.f32.mrb[0].mxu0
    %2935 = vmatprep.mubr.f32.mxu0 0.0
    %2936 = vmatmul.mubr.f32.gmra.mrb[0].mxu0 %v2856
    %v2937 = vpop.f32.mrb[0].mxu0
    %v2938 = vadd.f32 %v2847, %v2937
    %v2939 = vpop.f32.mrb[0].mxu0
    %2940 = vmatprep.mubr.f32.mxu0 0.0
    %2941 = vmatmul.mubr.f32.gmra.mrb[0].mxu0 %v2859
    %v2942 = vpop.f32.mrb[0].mxu0
    %v2943 = vadd.f32 %v2847, %v2942
    %v2944 = vpop.f32.mrb[0].mxu0
    %2945 = vdwg.mxu0
    %v2946 = vadd.f32 %v2714, %v2928
    %v2947 = vadd.f32 %v2715, %v2933
    %v2948 = vadd.f32 %v2716, %v2938
    %v2949 = vadd.f32 %v2717, %v2943
    %s2950 = scalar_lea.vmem %s15, 1
    %v2951 = vld [vmem:[%s2950] sm:$0x1]
    %s2952 = scalar_lea.vmem %s16, 1
    %v2953 = vld [vmem:[%s2952] sm:$0x1]
    %v2954 = vsel %vm114, %v2946, 0.0
    %2955 = vadd.xlane.f32.xlu0 %v2954
    %v2956 = vpop.xlane.xlu0 %2955
    %v2957 = vsel %vm114, %v2947, 0.0
    %2958 = vadd.xlane.f32.xlu0 %v2957
    %v2959 = vpop.xlane.xlu0 %2958
    %v2960 = vsel %vm114, %v2948, 0.0
    %2961 = vadd.xlane.f32.xlu0 %v2960
    %v2962 = vpop.xlane.xlu0 %2961
    %v2963 = vsel %vm114, %v2949, 0.0
    %2964 = vadd.xlane.f32.xlu0 %v2963
    %v2965 = vpop.xlane.xlu0 %2964
    %v2966 = vmul.f32 %v2956, %v127
    %v2967 = vmul.f32 %v2959, %v127
    %v2968 = vmul.f32 %v2962, %v127
    %v2969 = vmul.f32 %v2965, %v127
    %v2970 = vsub.f32 %v2946, %v2966
    %v2971 = vsub.f32 %v2947, %v2967
    %v2972 = vsub.f32 %v2948, %v2968
    %v2973 = vsub.f32 %v2949, %v2969
    %v2974 = vmul.f32 %v2970, %v2970
    %v2975 = vmul.f32 %v2971, %v2971
    %v2976 = vmul.f32 %v2972, %v2972
    %v2977 = vmul.f32 %v2973, %v2973
    %v2978 = vsel %vm114, %v2974, 0.0
    %2979 = vadd.xlane.f32.xlu0 %v2978
    %v2980 = vpop.xlane.xlu0 %2979
    %v2981 = vsel %vm114, %v2975, 0.0
    %2982 = vadd.xlane.f32.xlu0 %v2981
    %v2983 = vpop.xlane.xlu0 %2982
    %v2984 = vsel %vm114, %v2976, 0.0
    %2985 = vadd.xlane.f32.xlu0 %v2984
    %v2986 = vpop.xlane.xlu0 %2985
    %v2987 = vsel %vm114, %v2977, 0.0
    %2988 = vadd.xlane.f32.xlu0 %v2987
    %v2989 = vpop.xlane.xlu0 %2988
    %v2990 = vmul.f32 %v2980, %v127
    %v2991 = vmul.f32 %v2983, %v127
    %v2992 = vmul.f32 %v2986, %v127
    %v2993 = vmul.f32 %v2989, %v127
    %v2994 = vadd.f32 %v2990, 1e-05
    %v2995 = vadd.f32 %v2991, 1e-05
    %v2996 = vadd.f32 %v2992, 1e-05
    %v2997 = vadd.f32 %v2993, 1e-05
    %v2998 = vrsqrt.pop %v2994
    %v2999 = vrsqrt.pop %v2995
    %v3000 = vrsqrt.pop %v2996
    %v3001 = vrsqrt.pop %v2997
    %v3002 = vmul.f32 %v2970, %v2998
    %v3003 = vmul.f32 %v2971, %v2999
    %v3004 = vmul.f32 %v2972, %v3000
    %v3005 = vmul.f32 %v2973, %v3001
    %v3007 = vlaneseq
    %v3008 = vshrl.u32 %v3007, 7
    %v3009 = vsub.s32 0, %v3008
    %v3010 = vrot.slane %v2951, %v3009
    %v3012 = vmul.f32 %v3002, %v3010
    %v3013 = vmul.f32 %v3003, %v3010
    %v3014 = vmul.f32 %v3004, %v3010
    %v3015 = vmul.f32 %v3005, %v3010
    %v3017 = vlaneseq
    %v3018 = vshrl.u32 %v3017, 7
    %v3019 = vsub.s32 0, %v3018
    %v3020 = vrot.slane %v2953, %v3019
    %v3022 = vadd.f32 %v3012, %v3020
    %v3023 = vadd.f32 %v3013, %v3020
    %v3024 = vadd.f32 %v3014, %v3020
    %v3025 = vadd.f32 %v3015, %v3020
    %3030 = vrot.lane.b32.xlu0 %v3022, 32
    %v3031 = vpop.permute.xlu0 %3030
    %3032 = vrot.lane.b32.xlu0 %v3023, 32
    %v3033 = vpop.permute.xlu0 %3032
    %3034 = vrot.lane.b32.xlu0 %v3024, 32
    %v3035 = vpop.permute.xlu0 %3034
    %3036 = vrot.lane.b32.xlu0 %v3025, 32
    %v3037 = vpop.permute.xlu0 %3036
    %3042 = vrot.lane.b32.xlu0 %v3022, 64
    %v3043 = vpop.permute.xlu0 %3042
    %3044 = vrot.lane.b32.xlu0 %v3023, 64
    %v3045 = vpop.permute.xlu0 %3044
    %3046 = vrot.lane.b32.xlu0 %v3024, 64
    %v3047 = vpop.permute.xlu0 %3046
    %3048 = vrot.lane.b32.xlu0 %v3025, 64
    %v3049 = vpop.permute.xlu0 %3048
    %3054 = vrot.lane.b32.xlu0 %v3022, 96
    %v3055 = vpop.permute.xlu0 %3054
    %3056 = vrot.lane.b32.xlu0 %v3023, 96
    %v3057 = vpop.permute.xlu0 %3056
    %3058 = vrot.lane.b32.xlu0 %v3024, 96
    %v3059 = vpop.permute.xlu0 %3058
    %3060 = vrot.lane.b32.xlu0 %v3025, 96
    %v3061 = vpop.permute.xlu0 %3060
    %v3066 = vsel %vm114, %v3022, %v3031
    %v3067 = vsel %vm114, %v3023, %v3033
    %v3068 = vsel %vm114, %v3024, %v3035
    %v3069 = vsel %vm114, %v3025, %v3037
    %v3070 = vsel %vm1426, %v3066, %v3043
    %v3071 = vsel %vm1426, %v3067, %v3045
    %v3072 = vsel %vm1426, %v3068, %v3047
    %v3073 = vsel %vm1426, %v3069, %v3049
    %vm3074 = vcmask 785408
    %v3075 = vsel %vm3074, %v3070, %v3055
    %v3076 = vsel %vm3074, %v3071, %v3057
    %v3077 = vsel %vm3074, %v3072, %v3059
    %v3078 = vsel %vm3074, %v3073, %v3061
    %v3079 = vld [vmem:[%s17] sm:$0xff]
    %v3080 = vld [vmem:[%s17 + $0x8] sm:$0xff]
    %v3081 = vld [vmem:[%s17 + $0x10] sm:$0xff]
    %v3082 = vld [vmem:[%s17 + $0x18] sm:$0xff]
    %v3083 = vld [vmem:[%s17 + $0x20] sm:$0xff]
    %v3084 = vld [vmem:[%s17 + $0x28] sm:$0xff]
    %v3085 = vld [vmem:[%s17 + $0x30] sm:$0xff]
    %v3086 = vld [vmem:[%s17 + $0x38] sm:$0xff]
    %v3087 = vld [vmem:[%s17 + $0x40] sm:$0xff]
    %v3088 = vld [vmem:[%s17 + $0x48] sm:$0xff]
    %v3089 = vld [vmem:[%s17 + $0x50] sm:$0xff]
    %v3090 = vld [vmem:[%s17 + $0x58] sm:$0xff]
    %v3091 = vld [vmem:[%s17 + $0x60] sm:$0xff]
    %v3092 = vld [vmem:[%s17 + $0x68] sm:$0xff]
    %v3093 = vld [vmem:[%s17 + $0x70] sm:$0xff]
    %v3094 = vld [vmem:[%s17 + $0x78] sm:$0xff]
    %v3095 = vmul.f32 %v3075, %v3079
    %v3096 = vmul.f32 %v3075, %v3080
    %v3097 = vmul.f32 %v3075, %v3081
    %v3098 = vmul.f32 %v3075, %v3082
    %v3099 = vmul.f32 %v3076, %v3083
    %v3100 = vmul.f32 %v3076, %v3084
    %v3101 = vmul.f32 %v3076, %v3085
    %v3102 = vmul.f32 %v3076, %v3086
    %v3103 = vmul.f32 %v3077, %v3087
    %v3104 = vmul.f32 %v3077, %v3088
    %v3105 = vmul.f32 %v3077, %v3089
    %v3106 = vmul.f32 %v3077, %v3090
    %v3107 = vmul.f32 %v3078, %v3091
    %v3108 = vmul.f32 %v3078, %v3092
    %v3109 = vmul.f32 %v3078, %v3093
    %v3110 = vmul.f32 %v3078, %v3094
    %v3111 = vld [vmem:[%s19] sm:$0xff]
    %v3112 = vld [vmem:[%s19 + $0x8] sm:$0xff]
    %v3113 = vld [vmem:[%s19 + $0x10] sm:$0xff]
    %v3114 = vld [vmem:[%s19 + $0x18] sm:$0xff]
    %v3115 = vld [vmem:[%s19 + $0x20] sm:$0xff]
    %v3116 = vld [vmem:[%s19 + $0x28] sm:$0xff]
    %v3117 = vld [vmem:[%s19 + $0x30] sm:$0xff]
    %v3118 = vld [vmem:[%s19 + $0x38] sm:$0xff]
    %v3119 = vld [vmem:[%s19 + $0x40] sm:$0xff]
    %v3120 = vld [vmem:[%s19 + $0x48] sm:$0xff]
    %v3121 = vld [vmem:[%s19 + $0x50] sm:$0xff]
    %v3122 = vld [vmem:[%s19 + $0x58] sm:$0xff]
    %v3123 = vld [vmem:[%s19 + $0x60] sm:$0xff]
    %v3124 = vld [vmem:[%s19 + $0x68] sm:$0xff]
    %v3125 = vld [vmem:[%s19 + $0x70] sm:$0xff]
    %v3126 = vld [vmem:[%s19 + $0x78] sm:$0xff]
    %v3127 = vld [vmem:[%s19 + $0x80] sm:$0xff]
    %v3128 = vld [vmem:[%s19 + $0x88] sm:$0xff]
    %v3129 = vld [vmem:[%s19 + $0x90] sm:$0xff]
    %v3130 = vld [vmem:[%s19 + $0x98] sm:$0xff]
    %v3131 = vld [vmem:[%s19 + $0xa0] sm:$0xff]
    %v3132 = vld [vmem:[%s19 + $0xa8] sm:$0xff]
    %v3133 = vld [vmem:[%s19 + $0xb0] sm:$0xff]
    %v3134 = vld [vmem:[%s19 + $0xb8] sm:$0xff]
    %v3135 = vld [vmem:[%s19 + $0xc0] sm:$0xff]
    %v3136 = vld [vmem:[%s19 + $0xc8] sm:$0xff]
    %v3137 = vld [vmem:[%s19 + $0xd0] sm:$0xff]
    %v3138 = vld [vmem:[%s19 + $0xd8] sm:$0xff]
    %v3139 = vld [vmem:[%s19 + $0xe0] sm:$0xff]
    %v3140 = vld [vmem:[%s19 + $0xe8] sm:$0xff]
    %v3141 = vld [vmem:[%s19 + $0xf0] sm:$0xff]
    %v3142 = vld [vmem:[%s19 + $0xf8] sm:$0xff]
    %v3143 = vld [vmem:[%s19 + $0x100] sm:$0xff]
    %v3144 = vld [vmem:[%s19 + $0x108] sm:$0xff]
    %v3145 = vld [vmem:[%s19 + $0x110] sm:$0xff]
    %v3146 = vld [vmem:[%s19 + $0x118] sm:$0xff]
    %v3147 = vld [vmem:[%s19 + $0x120] sm:$0xff]
    %v3148 = vld [vmem:[%s19 + $0x128] sm:$0xff]
    %v3149 = vld [vmem:[%s19 + $0x130] sm:$0xff]
    %v3150 = vld [vmem:[%s19 + $0x138] sm:$0xff]
    %v3151 = vld [vmem:[%s19 + $0x140] sm:$0xff]
    %v3152 = vld [vmem:[%s19 + $0x148] sm:$0xff]
    %v3153 = vld [vmem:[%s19 + $0x150] sm:$0xff]
    %v3154 = vld [vmem:[%s19 + $0x158] sm:$0xff]
    %v3155 = vld [vmem:[%s19 + $0x160] sm:$0xff]
    %v3156 = vld [vmem:[%s19 + $0x168] sm:$0xff]
    %v3157 = vld [vmem:[%s19 + $0x170] sm:$0xff]
    %v3158 = vld [vmem:[%s19 + $0x178] sm:$0xff]
    %v3159 = vld [vmem:[%s19 + $0x180] sm:$0xff]
    %v3160 = vld [vmem:[%s19 + $0x188] sm:$0xff]
    %v3161 = vld [vmem:[%s19 + $0x190] sm:$0xff]
    %v3162 = vld [vmem:[%s19 + $0x198] sm:$0xff]
    %v3163 = vld [vmem:[%s19 + $0x1a0] sm:$0xff]
    %v3164 = vld [vmem:[%s19 + $0x1a8] sm:$0xff]
    %v3165 = vld [vmem:[%s19 + $0x1b0] sm:$0xff]
    %v3166 = vld [vmem:[%s19 + $0x1b8] sm:$0xff]
    %v3167 = vld [vmem:[%s19 + $0x1c0] sm:$0xff]
    %v3168 = vld [vmem:[%s19 + $0x1c8] sm:$0xff]
    %v3169 = vld [vmem:[%s19 + $0x1d0] sm:$0xff]
    %v3170 = vld [vmem:[%s19 + $0x1d8] sm:$0xff]
    %v3171 = vld [vmem:[%s19 + $0x1e0] sm:$0xff]
    %v3172 = vld [vmem:[%s19 + $0x1e8] sm:$0xff]
    %v3173 = vld [vmem:[%s19 + $0x1f0] sm:$0xff]
    %v3174 = vld [vmem:[%s19 + $0x1f8] sm:$0xff]
    %3175 = vmatprep.subr.mxu0 0.0
    %3176 = vmatpush1.msra.mxu0 %v3111
    %3177 = vmatprep.subr.mxu0 0.0
    %3178 = vmatpush1.msra.mxu0 %v3112
    %3179 = vmatprep.subr.mxu0 0.0
    %3180 = vmatpush1.msra.mxu0 %v3113
    %3181 = vmatprep.subr.mxu0 0.0
    %3182 = vmatpush1.msra.mxu0 %v3114
    %3183 = vmatprep.subr.mxu0 0.0
    %3184 = vmatpush1.msra.mxu0 %v3115
    %3185 = vmatprep.subr.mxu0 0.0
    %3186 = vmatpush1.msra.mxu0 %v3116
    %3187 = vmatprep.subr.mxu0 0.0
    %3188 = vmatpush1.msra.mxu0 %v3117
    %3189 = vmatprep.subr.mxu0 0.0
    %3190 = vmatpush1.msra.mxu0 %v3118
    %3191 = vmatprep.subr.mxu0 0.0
    %3192 = vmatpush1.msra.mxu0 %v3119
    %3193 = vmatprep.subr.mxu0 0.0
    %3194 = vmatpush1.msra.mxu0 %v3120
    %3195 = vmatprep.subr.mxu0 0.0
    %3196 = vmatpush1.msra.mxu0 %v3121
    %3197 = vmatprep.subr.mxu0 0.0
    %3198 = vmatpush1.msra.mxu0 %v3122
    %3199 = vmatprep.subr.mxu0 0.0
    %3200 = vmatpush1.msra.mxu0 %v3123
    %3201 = vmatprep.subr.mxu0 0.0
    %3202 = vmatpush1.msra.mxu0 %v3124
    %3203 = vmatprep.subr.mxu0 0.0
    %3204 = vmatpush1.msra.mxu0 %v3125
    %3205 = vmatprep.subr.mxu0 0.0
    %3206 = vmatpush1.msra.mxu0 %v3126
    %3207 = vmatprep.subr.mxu0 0.0
    %3208 = vmatpush1.msra.mxu0 %v3127
    %3209 = vmatprep.subr.mxu0 0.0
    %3210 = vmatpush1.msra.mxu0 %v3128
    %3211 = vmatprep.subr.mxu0 0.0
    %3212 = vmatpush1.msra.mxu0 %v3129
    %3213 = vmatprep.subr.mxu0 0.0
    %3214 = vmatpush1.msra.mxu0 %v3130
    %3215 = vmatprep.subr.mxu0 0.0
    %3216 = vmatpush1.msra.mxu0 %v3131
    %3217 = vmatprep.subr.mxu0 0.0
    %3218 = vmatpush1.msra.mxu0 %v3132
    %3219 = vmatprep.subr.mxu0 0.0
    %3220 = vmatpush1.msra.mxu0 %v3133
    %3221 = vmatprep.subr.mxu0 0.0
    %3222 = vmatpush1.msra.mxu0 %v3134
    %3223 = vmatprep.subr.mxu0 0.0
    %3224 = vmatpush1.msra.mxu0 %v3135
    %3225 = vmatprep.subr.mxu0 0.0
    %3226 = vmatpush1.msra.mxu0 %v3136
    %3227 = vmatprep.subr.mxu0 0.0
    %3228 = vmatpush1.msra.mxu0 %v3137
    %3229 = vmatprep.subr.mxu0 0.0
    %3230 = vmatpush1.msra.mxu0 %v3138
    %3231 = vmatprep.subr.mxu0 0.0
    %3232 = vmatpush1.msra.mxu0 %v3139
    %3233 = vmatprep.subr.mxu0 0.0
    %3234 = vmatpush1.msra.mxu0 %v3140
    %3235 = vmatprep.subr.mxu0 0.0
    %3236 = vmatpush1.msra.mxu0 %v3141
    %3237 = vmatprep.subr.mxu0 0.0
    %3238 = vmatpush1.msra.mxu0 %v3142
    %3239 = vmatprep.mubr.f32.mxu0 %v3096
    %3240 = vmatmul.mubr.f32.gmra.mrb[0].mxu0 %v3095
    %v3241 = vpop.f32.mrb[0].mxu0
    %v3242 = vadd.f32 0.0, %v3241
    %v3243 = vpop.f32.mrb[0].mxu0
    %3244 = vmatprep.mubr.f32.mxu0 %v3100
    %3245 = vmatmul.mubr.f32.gmra.mrb[0].mxu0 %v3099
    %v3246 = vpop.f32.mrb[0].mxu0
    %v3247 = vadd.f32 0.0, %v3246
    %v3248 = vpop.f32.mrb[0].mxu0
    %3249 = vmatprep.mubr.f32.mxu0 %v3104
    %3250 = vmatmul.mubr.f32.gmra.mrb[0].mxu0 %v3103
    %v3251 = vpop.f32.mrb[0].mxu0
    %v3252 = vadd.f32 0.0, %v3251
    %v3253 = vpop.f32.mrb[0].mxu0
    %3254 = vmatprep.mubr.f32.mxu0 %v3108
    %3255 = vmatmul.mubr.f32.gmra.mrb[0].mxu0 %v3107
    %v3256 = vpop.f32.mrb[0].mxu0
    %v3257 = vadd.f32 0.0, %v3256
    %v3258 = vpop.f32.mrb[0].mxu0
    %3259 = vdwg.mxu0
    %3260 = vmatprep.subr.mxu0 0.0
    %3261 = vmatpush1.msra.mxu0 %v3143
    %3262 = vmatprep.subr.mxu0 0.0
    %3263 = vmatpush1.msra.mxu0 %v3144
    %3264 = vmatprep.subr.mxu0 0.0
    %3265 = vmatpush1.msra.mxu0 %v3145
    %3266 = vmatprep.subr.mxu0 0.0
    %3267 = vmatpush1.msra.mxu0 %v3146
    %3268 = vmatprep.subr.mxu0 0.0
    %3269 = vmatpush1.msra.mxu0 %v3147
    %3270 = vmatprep.subr.mxu0 0.0
    %3271 = vmatpush1.msra.mxu0 %v3148
    %3272 = vmatprep.subr.mxu0 0.0
    %3273 = vmatpush1.msra.mxu0 %v3149
    %3274 = vmatprep.subr.mxu0 0.0
    %3275 = vmatpush1.msra.mxu0 %v3150
    %3276 = vmatprep.subr.mxu0 0.0
    %3277 = vmatpush1.msra.mxu0 %v3151
    %3278 = vmatprep.subr.mxu0 0.0
    %3279 = vmatpush1.msra.mxu0 %v3152
    %3280 = vmatprep.subr.mxu0 0.0
    %3281 = vmatpush1.msra.mxu0 %v3153
    %3282 = vmatprep.subr.mxu0 0.0
    %3283 = vmatpush1.msra.mxu0 %v3154
    %3284 = vmatprep.subr.mxu0 0.0
    %3285 = vmatpush1.msra.mxu0 %v3155
    %3286 = vmatprep.subr.mxu0 0.0
    %3287 = vmatpush1.msra.mxu0 %v3156
    %3288 = vmatprep.subr.mxu0 0.0
    %3289 = vmatpush1.msra.mxu0 %v3157
    %3290 = vmatprep.subr.mxu0 0.0
    %3291 = vmatpush1.msra.mxu0 %v3158
    %3292 = vmatprep.subr.mxu0 0.0
    %3293 = vmatpush1.msra.mxu0 %v3159
    %3294 = vmatprep.subr.mxu0 0.0
    %3295 = vmatpush1.msra.mxu0 %v3160
    %3296 = vmatprep.subr.mxu0 0.0
    %3297 = vmatpush1.msra.mxu0 %v3161
    %3298 = vmatprep.subr.mxu0 0.0
    %3299 = vmatpush1.msra.mxu0 %v3162
    %3300 = vmatprep.subr.mxu0 0.0
    %3301 = vmatpush1.msra.mxu0 %v3163
    %3302 = vmatprep.subr.mxu0 0.0
    %3303 = vmatpush1.msra.mxu0 %v3164
    %3304 = vmatprep.subr.mxu0 0.0
    %3305 = vmatpush1.msra.mxu0 %v3165
    %3306 = vmatprep.subr.mxu0 0.0
    %3307 = vmatpush1.msra.mxu0 %v3166
    %3308 = vmatprep.subr.mxu0 0.0
    %3309 = vmatpush1.msra.mxu0 %v3167
    %3310 = vmatprep.subr.mxu0 0.0
    %3311 = vmatpush1.msra.mxu0 %v3168
    %3312 = vmatprep.subr.mxu0 0.0
    %3313 = vmatpush1.msra.mxu0 %v3169
    %3314 = vmatprep.subr.mxu0 0.0
    %3315 = vmatpush1.msra.mxu0 %v3170
    %3316 = vmatprep.subr.mxu0 0.0
    %3317 = vmatpush1.msra.mxu0 %v3171
    %3318 = vmatprep.subr.mxu0 0.0
    %3319 = vmatpush1.msra.mxu0 %v3172
    %3320 = vmatprep.subr.mxu0 0.0
    %3321 = vmatpush1.msra.mxu0 %v3173
    %3322 = vmatprep.subr.mxu0 0.0
    %3323 = vmatpush1.msra.mxu0 %v3174
    %3324 = vmatprep.mubr.f32.mxu0 %v3098
    %3325 = vmatmul.mubr.f32.gmra.mrb[0].mxu0 %v3097
    %v3326 = vpop.f32.mrb[0].mxu0
    %v3327 = vadd.f32 %v3242, %v3326
    %v3328 = vpop.f32.mrb[0].mxu0
    %3329 = vmatprep.mubr.f32.mxu0 %v3102
    %3330 = vmatmul.mubr.f32.gmra.mrb[0].mxu0 %v3101
    %v3331 = vpop.f32.mrb[0].mxu0
    %v3332 = vadd.f32 %v3247, %v3331
    %v3333 = vpop.f32.mrb[0].mxu0
    %3334 = vmatprep.mubr.f32.mxu0 %v3106
    %3335 = vmatmul.mubr.f32.gmra.mrb[0].mxu0 %v3105
    %v3336 = vpop.f32.mrb[0].mxu0
    %v3337 = vadd.f32 %v3252, %v3336
    %v3338 = vpop.f32.mrb[0].mxu0
    %3339 = vmatprep.mubr.f32.mxu0 %v3110
    %3340 = vmatmul.mubr.f32.gmra.mrb[0].mxu0 %v3109
    %v3341 = vpop.f32.mrb[0].mxu0
    %v3342 = vadd.f32 %v3257, %v3341
    %v3343 = vpop.f32.mrb[0].mxu0
    %3344 = vdwg.mxu0
    %v3345 = vld [vmem:[%s18] sm:$0x3]
    %v3346 = vld [vmem:[%s20] sm:$0x1]
    %v3348 = vlaneseq
    %v3349 = vshrl.u32 %v3348, 7
    %v3350 = vsub.s32 0, %v3349
    %v3351 = vrot.slane %v3346, %v3350
    %v3354 = vsel %vm114, %v3345, 0
    %3356 = vmatprep.subr.mxu0 0.0
    %3357 = vmatpush1.msra.mxu0 %v3327
    %3358 = vmatprep.subr.mxu0 0.0
    %3359 = vmatpush1.msra.mxu0 %v3332
    %3360 = vmatprep.subr.mxu0 0.0
    %3361 = vmatpush1.msra.mxu0 %v3337
    %3362 = vmatprep.subr.mxu0 0.0
    %3363 = vmatpush1.msra.mxu0 %v3342
    %3364 = vmatprep.subr.mxu0 0.0
    %3365 = vmatpush1.msra.mxu0 0.0
    %3366 = vmatprep.subr.mxu0 0.0
    %3367 = vmatpush1.msra.mxu0 0.0
    %3368 = vmatprep.subr.mxu0 0.0
    %3369 = vmatpush1.msra.mxu0 0.0
    %3370 = vmatprep.subr.mxu0 0.0
    %3371 = vmatpush1.msra.mxu0 0.0
    %3372 = vmatprep.subr.mxu0 0.0
    %3373 = vmatpush1.msra.mxu0 0.0
    %3374 = vmatprep.subr.mxu0 0.0
    %3375 = vmatpush1.msra.mxu0 0.0
    %3376 = vmatprep.subr.mxu0 0.0
    %3377 = vmatpush1.msra.mxu0 0.0
    %3378 = vmatprep.subr.mxu0 0.0
    %3379 = vmatpush1.msra.mxu0 0.0
    %3380 = vmatprep.subr.mxu0 0.0
    %3381 = vmatpush1.msra.mxu0 0.0
    %3382 = vmatprep.subr.mxu0 0.0
    %3383 = vmatpush1.msra.mxu0 0.0
    %3384 = vmatprep.subr.mxu0 0.0
    %3385 = vmatpush1.msra.mxu0 0.0
    %3386 = vmatprep.subr.mxu0 0.0
    %3387 = vmatpush1.msra.mxu0 0.0
    %3388 = vmatprep.subr.mxu0 0.0
    %3389 = vmatpush1.msra.mxu0 0.0
    %3390 = vmatprep.subr.mxu0 0.0
    %3391 = vmatpush1.msra.mxu0 0.0
    %3392 = vmatprep.subr.mxu0 0.0
    %3393 = vmatpush1.msra.mxu0 0.0
    %3394 = vmatprep.subr.mxu0 0.0
    %3395 = vmatpush1.msra.mxu0 0.0
    %3396 = vmatprep.subr.mxu0 0.0
    %3397 = vmatpush1.msra.mxu0 0.0
    %3398 = vmatprep.subr.mxu0 0.0
    %3399 = vmatpush1.msra.mxu0 0.0
    %3400 = vmatprep.subr.mxu0 0.0
    %3401 = vmatpush1.msra.mxu0 0.0
    %3402 = vmatprep.subr.mxu0 0.0
    %3403 = vmatpush1.msra.mxu0 0.0
    %3404 = vmatprep.subr.mxu0 0.0
    %3405 = vmatpush1.msra.mxu0 0.0
    %3406 = vmatprep.subr.mxu0 0.0
    %3407 = vmatpush1.msra.mxu0 0.0
    %3408 = vmatprep.subr.mxu0 0.0
    %3409 = vmatpush1.msra.mxu0 0.0
    %3410 = vmatprep.subr.mxu0 0.0
    %3411 = vmatpush1.msra.mxu0 0.0
    %3412 = vmatprep.subr.mxu0 0.0
    %3413 = vmatpush1.msra.mxu0 0.0
    %3414 = vmatprep.subr.mxu0 0.0
    %3415 = vmatpush1.msra.mxu0 0.0
    %3416 = vmatprep.subr.mxu0 0.0
    %3417 = vmatpush1.msra.mxu0 0.0
    %3418 = vmatprep.subr.mxu0 0.0
    %3419 = vmatpush1.msra.mxu0 0.0
    %3420 = vmatprep.mubr.f32.mxu0 0.0
    %3421 = vmatmul.mubr.f32.gmra.mrb[0].mxu0 %v3354
    %v3422 = vpop.f32.mrb[0].mxu0
    %v3423 = vadd.f32 %v3351, %v3422
    %v3424 = vpop.f32.mrb[0].mxu0
    %3425 = vdwg.mxu0
    %vm3426 = vcmask 254976
    %3427 = vst.msk [vmem:[#allocation2] sm:$0x3] %vm3426, %v3423
    // Predicated region
    $region86: #{transformer_ps.1} parent=1 // pred_check
      _
    $region87: #{transformer_ps.1} parent=1 // pred_check_branch
      %3429 = sbr.rel (0) target = $region89
    $region88: #{transformer_ps.1} parent=1 // pred_region
      %s3431 = ssub.s32 32, 32
      %3432 = vsyncadd [#allocation3], %s3431
      %s3434 = sshll.u32 [#allocation2], 4
      %s3435 = int_to_ptr.vmem [resolvable:$true] %s3434
      %3437 = dma.vmem_to_hbm [thread:$0]  %s3435, 32, %s21, [#allocation3]
    $region89: #{transformer_ps.1} parent=1 // pred_fallthru
      _
    // Predicated region
    $region90: #{transformer_ps.1} parent=1 // pred_check
      _
    $region91: #{transformer_ps.1} parent=1 // pred_check_branch
      %3439 = sbr.rel (0) target = $region93
    $region92: #{transformer_ps.1} parent=1 // pred_region
      %3440 = dma.done [#allocation3], 32
    $region93: #{transformer_ps.1} parent=1 // pred_fallthru
      _
    %3441 = vsyncpa [#allocation3], 1

</llo_original>
